<compile_context>
chip_gen: v7x
topology: tpu7x:2x2x1
jax: 0.10.0
libtpu: 0.0.40
codegen_flags: <defaults>
</compile_context>

<pallas_src>
import functools

import jax
import jax.numpy as jnp
from jax.experimental import pallas as pl
from jax.experimental.pallas import tpu as pltpu

# ----------------------------- dimensions -----------------------------------
B = 2          # real batch
BP = 8         # padded batch (f32 sublane count)
S = 8          # src length
T = 8          # trg length
E = 16         # embedding dim
H = 32         # hidden dim (4H = 128, lane aligned)
SRC_V = 48     # src vocab
TRG_V = 64     # trg vocab
F32 = jnp.float32


# =========================== fused seq2seq kernel ============================
def seq2seq_kernel(tf_ref,                                   # SMEM scalar prefetch
                   src_ids_ref, trg_ids_ref,
                   enc_emb_ref, enc_w_ref, enc_b_ref,
                   dec_emb_ref, dec_w_ref, dec_b_ref,
                   dec_wout_ref, dec_bout_ref,
                   out_ref,
                   enc_sc):
    # LSTM cell with gate columns laid out [i f o | g]:
    #   sigmoid over the first 3H lanes, tanh over the last H lanes.
    def lstm_cell(x_cat, h, c, w_ref, b_ref):
        gates = jnp.dot(x_cat, w_ref[...], preferred_element_type=F32) + b_ref[...]
        sig = jax.nn.sigmoid(gates[:, :3 * H])
        g = jnp.tanh(gates[:, 3 * H:])
        i = sig[:, 0 * H:1 * H]
        f = sig[:, 1 * H:2 * H]
        o = sig[:, 2 * H:3 * H]
        c_new = f * c + i * g
        h_new = o * jnp.tanh(c_new)
        return h_new, c_new

    iota_src = jax.lax.broadcasted_iota(jnp.int32, (BP, SRC_V), 1)
    iota_trg = jax.lax.broadcasted_iota(jnp.int32, (BP, TRG_V), 1)
    enc_emb = enc_emb_ref[...]                    # [SRC_V, E]
    dec_emb = dec_emb_ref[...]                    # [TRG_V, E]

    # ---------------- encoder: fully unrolled recurrence ---------------------
    h = jnp.zeros((BP, H), F32)
    c = jnp.zeros((BP, H), F32)
    for s in range(S):
        onehot = (iota_src == src_ids_ref[s]).astype(F32)              # [BP, SRC_V]
        emb = jnp.dot(onehot, enc_emb, preferred_element_type=F32)     # [BP, E]
        x_cat = jnp.concatenate([emb, h], axis=-1)                     # [BP, E+H]
        h, c = lstm_cell(x_cat, h, c, enc_w_ref, enc_b_ref)
        enc_sc[s] = h                                                  # keep in VMEM

    enc_all = enc_sc[...]                                              # [S, BP, H]

    # ---------------- decoder: fully unrolled recurrence ---------------------
    out_ref[0] = jnp.zeros((BP, TRG_V), F32)        # outputs[:, 0] stays zero
    inp_oh = (iota_trg == trg_ids_ref[0]).astype(F32)                  # trg[:, 0]

    for k in range(T - 1):
        emb = jnp.dot(inp_oh, dec_emb, preferred_element_type=F32)     # [BP, E]

        # dot-product attention over encoder outputs (VPU mul + XLU reduce).
        prod = enc_all * h                                             # [S, BP, H]
        scores = jnp.sum(prod, axis=2, keepdims=True)                  # [S, BP, 1]
        m = jnp.max(scores, axis=0, keepdims=True)                     # [1, BP, 1]
        e = jnp.exp(scores - m)
        ssum = jnp.sum(e, axis=0, keepdims=True)                       # [1, BP, 1]
        attn = e * pl.reciprocal(ssum, approx=True)                    # [S, BP, 1]
        ctx = jnp.sum(attn * enc_all, axis=0)                          # [BP, H]

        # LSTM cell on fused [emb ; ctx ; h].
        x_cat = jnp.concatenate([emb, ctx, h], axis=-1)                # [BP, E+2H]
        h, c = lstm_cell(x_cat, h, c, dec_w_ref, dec_b_ref)

        # fc_out on fused [h ; ctx].
        out_cat = jnp.concatenate([h, ctx], axis=-1)                   # [BP, 2H]
        logits = (jnp.dot(out_cat, dec_wout_ref[...],
                          preferred_element_type=F32)
                  + dec_bout_ref[...])                                 # [BP, V]
        out_ref[k + 1] = logits

        # top1 = argmax(logits) -> one-hot (first-max, matches torch.argmax)
        mx = jnp.max(logits, axis=-1, keepdims=True)
        idx = jnp.min(jnp.where(logits >= mx, iota_trg, TRG_V),
                      axis=-1, keepdims=True)                          # [BP, 1]
        top1_oh = (iota_trg == idx).astype(F32)                        # [BP, V]

        # teacher-forcing decision (deterministic prefetched flag in SMEM)
        teach_oh = (iota_trg == trg_ids_ref[k + 1]).astype(F32)
        tf = tf_ref[k]
        inp_oh = jnp.where(tf != 0, teach_oh, top1_oh)


def run_seq2seq(tf_flags, src_ids_t, trg_ids_t, p):
    grid_spec = pltpu.PrefetchScalarGridSpec(
        num_scalar_prefetch=1,
        grid=(1,),
        in_specs=[
            pl.BlockSpec((S, BP, 1), lambda i, tf: (0, 0, 0)),          # src ids
            pl.BlockSpec((T, BP, 1), lambda i, tf: (0, 0, 0)),          # trg ids
            pl.BlockSpec((SRC_V, E), lambda i, tf: (0, 0)),             # enc emb
            pl.BlockSpec((E + H, 4 * H), lambda i, tf: (0, 0)),         # enc W_in
            pl.BlockSpec((1, 4 * H), lambda i, tf: (0, 0)),             # enc b
            pl.BlockSpec((TRG_V, E), lambda i, tf: (0, 0)),             # dec emb
            pl.BlockSpec((E + 2 * H, 4 * H), lambda i, tf: (0, 0)),     # dec W_in
            pl.BlockSpec((1, 4 * H), lambda i, tf: (0, 0)),             # dec b
            pl.BlockSpec((2 * H, TRG_V), lambda i, tf: (0, 0)),         # dec W_out
            pl.BlockSpec((1, TRG_V), lambda i, tf: (0, 0)),             # dec b_out
        ],
        out_specs=pl.BlockSpec((T, BP, TRG_V), lambda i, tf: (0, 0, 0)),
        scratch_shapes=[pltpu.VMEM((S, BP, H), F32)],
    )
    return pl.pallas_call(
        seq2seq_kernel,
        out_shape=jax.ShapeDtypeStruct((T, BP, TRG_V), F32),
        grid_spec=grid_spec,
        compiler_params=pltpu.CompilerParams(
            dimension_semantics=("arbitrary",)),
    )(tf_flags, src_ids_t, trg_ids_t,
      p["enc_emb"], p["enc_w_in"], p["enc_b"],
      p["dec_emb"], p["dec_w_in"], p["dec_b"],
      p["dec_w_out"], p["dec_b_out"])


# ============================== wrapper ======================================
@functools.partial(jax.jit, static_argnames=("teacher_forcing_ratio",))
def seq2seq_forward(src, trg, params, tf_key, teacher_forcing_ratio=0.5):
    # deterministic per-step teacher-forcing flags (replaces torch.rand(1))
    tf_flags = (jax.random.uniform(tf_key, (T - 1,)) <
                teacher_forcing_ratio).astype(jnp.int32)

    # pad batch to the f32 sublane count and go time-major (tiny int ops only;
    # all embedding / activation work happens inside the kernel).
    src_p = jnp.zeros((BP, S), jnp.int32).at[:B].set(src)
    trg_p = jnp.zeros((BP, T), jnp.int32).at[:B].set(trg)
    src_t = jnp.transpose(src_p)[:, :, None]        # [S, BP, 1]
    trg_t = jnp.transpose(trg_p)[:, :, None]        # [T, BP, 1]

    out_t = run_seq2seq(tf_flags, src_t, trg_t, params)   # [T, BP, V]
    return jnp.transpose(out_t, (1, 0, 2))[:B]            # [B, T, V]


# ============================== params =======================================
def init_params(key):
    ks = jax.random.split(key, 8)
    n = lambda k, shape: (0.1 * jax.random.normal(k, shape)).astype(F32)
    return {
        # encoder
        "enc_emb":  n(ks[0], (SRC_V, E)),
        "enc_w_in": n(ks[1], (E + H, 4 * H)),      # rows [emb; h], cols [i f o | g]
        "enc_b":    n(ks[2], (1, 4 * H)),
        # decoder
        "dec_emb":   n(ks[3], (TRG_V, E)),
        "dec_w_in":  n(ks[4], (E + 2 * H, 4 * H)), # rows [emb; ctx; h]
        "dec_b":     n(ks[5], (1, 4 * H)),
        "dec_w_out": n(ks[6], (2 * H, TRG_V)),     # rows [h; ctx]
        "dec_b_out": n(ks[7], (1, TRG_V)),
    }


if __name__ == "__main__":
    root = jax.random.PRNGKey(0)
    k_param, k_src, k_trg, k_tf = jax.random.split(root, 4)

    params = init_params(k_param)
    src = jax.random.randint(k_src, (B, S), 0, SRC_V, dtype=jnp.int32)
    trg = jax.random.randint(k_trg, (B, T), 0, TRG_V, dtype=jnp.int32)

    out = seq2seq_forward(src, trg, params, k_tf, teacher_forcing_ratio=0.5)
    out = jax.block_until_ready(out)

    assert out.shape == (B, T, TRG_V), out.shape
    assert bool(jnp.all(out[:, 0] == 0.0))          # first step left as zeros
    assert bool(jnp.all(jnp.isfinite(out)))
    print("KERNEL_OK")
</pallas_src>

<mosaic_0001>
module attributes {stable_mosaic.version = 11 : i64} {
  func.func @seq2seq_kernel(%arg0: i32, %arg1: memref<7xi32, #tpu.memory_space<smem>>, %arg2: memref<8x8x1xi32, #tpu.memory_space<vmem>>, %arg3: memref<8x8x1xi32, #tpu.memory_space<vmem>>, %arg4: memref<48x16xf32, #tpu.memory_space<vmem>>, %arg5: memref<48x128xf32, #tpu.memory_space<vmem>>, %arg6: memref<1x128xf32, #tpu.memory_space<vmem>>, %arg7: memref<64x16xf32, #tpu.memory_space<vmem>>, %arg8: memref<80x128xf32, #tpu.memory_space<vmem>>, %arg9: memref<1x128xf32, #tpu.memory_space<vmem>>, %arg10: memref<64x64xf32, #tpu.memory_space<vmem>>, %arg11: memref<1x64xf32, #tpu.memory_space<vmem>>, %arg12: memref<8x8x64xf32, #tpu.memory_space<vmem>>, %arg13: memref<8x8x32xf32, #tpu.memory_space<vmem>>) attributes {dimension_semantics = [#tpu.dimension_semantics<arbitrary>], iteration_bounds = array<i64: 1>, scalar_prefetch = 1 : i64, scratch_operands = 1 : i64, tpu.core_type = #tpu.core_type<tc>, window_params = [{pipeline_mode = #tpu.pipeline_mode<synchronous>, transform_indices = @transform_0, window_bounds = array<i64: 8, 8, 1>}, {pipeline_mode = #tpu.pipeline_mode<synchronous>, transform_indices = @transform_1, window_bounds = array<i64: 8, 8, 1>}, {pipeline_mode = #tpu.pipeline_mode<synchronous>, transform_indices = @transform_2, window_bounds = array<i64: 48, 16>}, {pipeline_mode = #tpu.pipeline_mode<synchronous>, transform_indices = @transform_3, window_bounds = array<i64: 48, 128>}, {pipeline_mode = #tpu.pipeline_mode<synchronous>, transform_indices = @transform_4, window_bounds = array<i64: 1, 128>}, {pipeline_mode = #tpu.pipeline_mode<synchronous>, transform_indices = @transform_5, window_bounds = array<i64: 64, 16>}, {pipeline_mode = #tpu.pipeline_mode<synchronous>, transform_indices = @transform_6, window_bounds = array<i64: 80, 128>}, {pipeline_mode = #tpu.pipeline_mode<synchronous>, transform_indices = @transform_7, window_bounds = array<i64: 1, 128>}, {pipeline_mode = #tpu.pipeline_mode<synchronous>, transform_indices = @transform_8, window_bounds = array<i64: 64, 64>}, {pipeline_mode = #tpu.pipeline_mode<synchronous>, transform_indices = @transform_9, window_bounds = array<i64: 1, 64>}, {pipeline_mode = #tpu.pipeline_mode<synchronous>, transform_indices = @transform_10, window_bounds = array<i64: 8, 8, 64>}]} {
    %0 = tpu.iota {dimensions = array<i32: 1>} : vector<8x48xi32>
    %1 = tpu.iota {dimensions = array<i32: 1>} : vector<8x64xi32>
    %c0 = arith.constant 0 : index
    %c0_0 = arith.constant 0 : index
    %2 = vector.load %arg4[%c0, %c0_0] : memref<48x16xf32, #tpu.memory_space<vmem>>, vector<48x16xf32>
    %c0_1 = arith.constant 0 : index
    %c0_2 = arith.constant 0 : index
    %3 = vector.load %arg7[%c0_1, %c0_2] : memref<64x16xf32, #tpu.memory_space<vmem>>, vector<64x16xf32>
    %cst = arith.constant 0.000000e+00 : f32
    %4 = vector.broadcast %cst : f32 to vector<8x32xf32>
    %cst_3 = arith.constant 0.000000e+00 : f32
    %5 = vector.broadcast %cst_3 : f32 to vector<8x32xf32>
    %c0_4 = arith.constant 0 : index
    %c0_5 = arith.constant 0 : index
    %c0_6 = arith.constant 0 : index
    %6 = vector.load %arg2[%c0_4, %c0_5, %c0_6] : memref<8x8x1xi32, #tpu.memory_space<vmem>>, vector<1x8x1xi32>
    %7 = vector.shape_cast %6 : vector<1x8x1xi32> to vector<8x1xi32>
    %8 = vector.broadcast %7 : vector<8x1xi32> to vector<8x48xi32>
    %9 = arith.cmpi eq, %0, %8 : vector<8x48xi32>
    %10 = arith.extui %9 : vector<8x48xi1> to vector<8x48xi32>
    %11 = arith.sitofp %10 : vector<8x48xi32> to vector<8x48xf32>
    %cst_7 = arith.constant dense<0.000000e+00> : vector<8x16xf32>
    %12 = tpu.matmul %11, %2, %cst_7 {dimension_numbers = #tpu.dot_dimension_numbers<[1], [0], [0], [1], [0, 0, 1, 1], [], []>} : vector<8x48xf32>, vector<48x16xf32>, vector<8x16xf32> -> vector<8x16xf32>
    %13 = tpu.concatenate %12, %4 in 1 : vector<8x16xf32>, vector<8x32xf32> -> vector<8x48xf32>
    %c0_8 = arith.constant 0 : index
    %c0_9 = arith.constant 0 : index
    %14 = vector.load %arg5[%c0_8, %c0_9] : memref<48x128xf32, #tpu.memory_space<vmem>>, vector<48x128xf32>
    %cst_10 = arith.constant dense<0.000000e+00> : vector<8x128xf32>
    %15 = tpu.matmul %13, %14, %cst_10 {dimension_numbers = #tpu.dot_dimension_numbers<[1], [0], [0], [1], [0, 0, 1, 1], [], []>} : vector<8x48xf32>, vector<48x128xf32>, vector<8x128xf32> -> vector<8x128xf32>
    %c0_11 = arith.constant 0 : index
    %c0_12 = arith.constant 0 : index
    %16 = vector.load %arg6[%c0_11, %c0_12] : memref<1x128xf32, #tpu.memory_space<vmem>>, vector<1x128xf32>
    %17 = vector.broadcast %16 : vector<1x128xf32> to vector<8x128xf32>
    %18 = arith.addf %15, %17 : vector<8x128xf32>
    %19 = vector.extract_strided_slice %18 {offsets = [0, 0], sizes = [8, 96], strides = [1, 1]} : vector<8x128xf32> to vector<8x96xf32>
    %20 = arith.negf %19 : vector<8x96xf32>
    %21 = math.exp %20 : vector<8x96xf32>
    %cst_13 = arith.constant 1.000000e+00 : f32
    %22 = vector.broadcast %cst_13 : f32 to vector<8x96xf32>
    %23 = arith.addf %22, %21 : vector<8x96xf32>
    %24 = arith.divf %22, %23 : vector<8x96xf32>
    %25 = vector.extract_strided_slice %18 {offsets = [0, 96], sizes = [8, 32], strides = [1, 1]} : vector<8x128xf32> to vector<8x32xf32>
    %26 = math.tanh %25 : vector<8x32xf32>
    %27 = vector.extract_strided_slice %24 {offsets = [0, 0], sizes = [8, 32], strides = [1, 1]} : vector<8x96xf32> to vector<8x32xf32>
    %28 = vector.extract_strided_slice %24 {offsets = [0, 32], sizes = [8, 32], strides = [1, 1]} : vector<8x96xf32> to vector<8x32xf32>
    %29 = vector.extract_strided_slice %24 {offsets = [0, 64], sizes = [8, 32], strides = [1, 1]} : vector<8x96xf32> to vector<8x32xf32>
    %30 = arith.mulf %28, %5 : vector<8x32xf32>
    %31 = arith.mulf %27, %26 : vector<8x32xf32>
    %32 = arith.addf %30, %31 : vector<8x32xf32>
    %33 = math.tanh %32 : vector<8x32xf32>
    %34 = arith.mulf %29, %33 : vector<8x32xf32>
    %c0_14 = arith.constant 0 : index
    %c0_15 = arith.constant 0 : index
    %c0_16 = arith.constant 0 : index
    %35 = vector.load %arg13[%c0_14, %c0_15, %c0_16] : memref<8x8x32xf32, #tpu.memory_space<vmem>>, vector<1x8x32xf32>
    %36 = vector.shape_cast %35 : vector<1x8x32xf32> to vector<8x32xf32>
    %37 = vector.shape_cast %34 : vector<8x32xf32> to vector<1x8x32xf32>
    tpu.vector_store %arg13[%c0_14, %c0_15, %c0_16], %37 {strides = array<i32>} : memref<8x8x32xf32, #tpu.memory_space<vmem>>, vector<1x8x32xf32>,
    %c1 = arith.constant 1 : index
    %c0_17 = arith.constant 0 : index
    %c0_18 = arith.constant 0 : index
    %38 = vector.load %arg2[%c1, %c0_17, %c0_18] : memref<8x8x1xi32, #tpu.memory_space<vmem>>, vector<1x8x1xi32>
    %39 = vector.shape_cast %38 : vector<1x8x1xi32> to vector<8x1xi32>
    %40 = vector.broadcast %39 : vector<8x1xi32> to vector<8x48xi32>
    %41 = arith.cmpi eq, %0, %40 : vector<8x48xi32>
    %42 = arith.extui %41 : vector<8x48xi1> to vector<8x48xi32>
    %43 = arith.sitofp %42 : vector<8x48xi32> to vector<8x48xf32>
    %cst_19 = arith.constant dense<0.000000e+00> : vector<8x16xf32>
    %44 = tpu.matmul %43, %2, %cst_19 {dimension_numbers = #tpu.dot_dimension_numbers<[1], [0], [0], [1], [0, 0, 1, 1], [], []>} : vector<8x48xf32>, vector<48x16xf32>, vector<8x16xf32> -> vector<8x16xf32>
    %45 = tpu.concatenate %44, %34 in 1 : vector<8x16xf32>, vector<8x32xf32> -> vector<8x48xf32>
    %c0_20 = arith.constant 0 : index
    %c0_21 = arith.constant 0 : index
    %46 = vector.load %arg5[%c0_20, %c0_21] : memref<48x128xf32, #tpu.memory_space<vmem>>, vector<48x128xf32>
    %cst_22 = arith.constant dense<0.000000e+00> : vector<8x128xf32>
    %47 = tpu.matmul %45, %46, %cst_22 {dimension_numbers = #tpu.dot_dimension_numbers<[1], [0], [0], [1], [0, 0, 1, 1], [], []>} : vector<8x48xf32>, vector<48x128xf32>, vector<8x128xf32> -> vector<8x128xf32>
    %c0_23 = arith.constant 0 : index
    %c0_24 = arith.constant 0 : index
    %48 = vector.load %arg6[%c0_23, %c0_24] : memref<1x128xf32, #tpu.memory_space<vmem>>, vector<1x128xf32>
    %49 = vector.broadcast %48 : vector<1x128xf32> to vector<8x128xf32>
    %50 = arith.addf %47, %49 : vector<8x128xf32>
    %51 = vector.extract_strided_slice %50 {offsets = [0, 0], sizes = [8, 96], strides = [1, 1]} : vector<8x128xf32> to vector<8x96xf32>
    %52 = arith.negf %51 : vector<8x96xf32>
    %53 = math.exp %52 : vector<8x96xf32>
    %cst_25 = arith.constant 1.000000e+00 : f32
    %54 = vector.broadcast %cst_25 : f32 to vector<8x96xf32>
    %55 = arith.addf %54, %53 : vector<8x96xf32>
    %56 = arith.divf %54, %55 : vector<8x96xf32>
    %57 = vector.extract_strided_slice %50 {offsets = [0, 96], sizes = [8, 32], strides = [1, 1]} : vector<8x128xf32> to vector<8x32xf32>
    %58 = math.tanh %57 : vector<8x32xf32>
    %59 = vector.extract_strided_slice %56 {offsets = [0, 0], sizes = [8, 32], strides = [1, 1]} : vector<8x96xf32> to vector<8x32xf32>
    %60 = vector.extract_strided_slice %56 {offsets = [0, 32], sizes = [8, 32], strides = [1, 1]} : vector<8x96xf32> to vector<8x32xf32>
    %61 = vector.extract_strided_slice %56 {offsets = [0, 64], sizes = [8, 32], strides = [1, 1]} : vector<8x96xf32> to vector<8x32xf32>
    %62 = arith.mulf %60, %32 : vector<8x32xf32>
    %63 = arith.mulf %59, %58 : vector<8x32xf32>
    %64 = arith.addf %62, %63 : vector<8x32xf32>
    %65 = math.tanh %64 : vector<8x32xf32>
    %66 = arith.mulf %61, %65 : vector<8x32xf32>
    %c1_26 = arith.constant 1 : index
    %c0_27 = arith.constant 0 : index
    %c0_28 = arith.constant 0 : index
    %67 = vector.load %arg13[%c1_26, %c0_27, %c0_28] : memref<8x8x32xf32, #tpu.memory_space<vmem>>, vector<1x8x32xf32>
    %68 = vector.shape_cast %67 : vector<1x8x32xf32> to vector<8x32xf32>
    %69 = vector.shape_cast %66 : vector<8x32xf32> to vector<1x8x32xf32>
    tpu.vector_store %arg13[%c1_26, %c0_27, %c0_28], %69 {strides = array<i32>} : memref<8x8x32xf32, #tpu.memory_space<vmem>>, vector<1x8x32xf32>,
    %c2 = arith.constant 2 : index
    %c0_29 = arith.constant 0 : index
    %c0_30 = arith.constant 0 : index
    %70 = vector.load %arg2[%c2, %c0_29, %c0_30] : memref<8x8x1xi32, #tpu.memory_space<vmem>>, vector<1x8x1xi32>
    %71 = vector.shape_cast %70 : vector<1x8x1xi32> to vector<8x1xi32>
    %72 = vector.broadcast %71 : vector<8x1xi32> to vector<8x48xi32>
    %73 = arith.cmpi eq, %0, %72 : vector<8x48xi32>
    %74 = arith.extui %73 : vector<8x48xi1> to vector<8x48xi32>
    %75 = arith.sitofp %74 : vector<8x48xi32> to vector<8x48xf32>
    %cst_31 = arith.constant dense<0.000000e+00> : vector<8x16xf32>
    %76 = tpu.matmul %75, %2, %cst_31 {dimension_numbers = #tpu.dot_dimension_numbers<[1], [0], [0], [1], [0, 0, 1, 1], [], []>} : vector<8x48xf32>, vector<48x16xf32>, vector<8x16xf32> -> vector<8x16xf32>
    %77 = tpu.concatenate %76, %66 in 1 : vector<8x16xf32>, vector<8x32xf32> -> vector<8x48xf32>
    %c0_32 = arith.constant 0 : index
    %c0_33 = arith.constant 0 : index
    %78 = vector.load %arg5[%c0_32, %c0_33] : memref<48x128xf32, #tpu.memory_space<vmem>>, vector<48x128xf32>
    %cst_34 = arith.constant dense<0.000000e+00> : vector<8x128xf32>
    %79 = tpu.matmul %77, %78, %cst_34 {dimension_numbers = #tpu.dot_dimension_numbers<[1], [0], [0], [1], [0, 0, 1, 1], [], []>} : vector<8x48xf32>, vector<48x128xf32>, vector<8x128xf32> -> vector<8x128xf32>
    %c0_35 = arith.constant 0 : index
    %c0_36 = arith.constant 0 : index
    %80 = vector.load %arg6[%c0_35, %c0_36] : memref<1x128xf32, #tpu.memory_space<vmem>>, vector<1x128xf32>
    %81 = vector.broadcast %80 : vector<1x128xf32> to vector<8x128xf32>
    %82 = arith.addf %79, %81 : vector<8x128xf32>
    %83 = vector.extract_strided_slice %82 {offsets = [0, 0], sizes = [8, 96], strides = [1, 1]} : vector<8x128xf32> to vector<8x96xf32>
    %84 = arith.negf %83 : vector<8x96xf32>
    %85 = math.exp %84 : vector<8x96xf32>
    %cst_37 = arith.constant 1.000000e+00 : f32
    %86 = vector.broadcast %cst_37 : f32 to vector<8x96xf32>
    %87 = arith.addf %86, %85 : vector<8x96xf32>
    %88 = arith.divf %86, %87 : vector<8x96xf32>
    %89 = vector.extract_strided_slice %82 {offsets = [0, 96], sizes = [8, 32], strides = [1, 1]} : vector<8x128xf32> to vector<8x32xf32>
    %90 = math.tanh %89 : vector<8x32xf32>
    %91 = vector.extract_strided_slice %88 {offsets = [0, 0], sizes = [8, 32], strides = [1, 1]} : vector<8x96xf32> to vector<8x32xf32>
    %92 = vector.extract_strided_slice %88 {offsets = [0, 32], sizes = [8, 32], strides = [1, 1]} : vector<8x96xf32> to vector<8x32xf32>
    %93 = vector.extract_strided_slice %88 {offsets = [0, 64], sizes = [8, 32], strides = [1, 1]} : vector<8x96xf32> to vector<8x32xf32>
    %94 = arith.mulf %92, %64 : vector<8x32xf32>
    %95 = arith.mulf %91, %90 : vector<8x32xf32>
    %96 = arith.addf %94, %95 : vector<8x32xf32>
    %97 = math.tanh %96 : vector<8x32xf32>
    %98 = arith.mulf %93, %97 : vector<8x32xf32>
    %c2_38 = arith.constant 2 : index
    %c0_39 = arith.constant 0 : index
    %c0_40 = arith.constant 0 : index
    %99 = vector.load %arg13[%c2_38, %c0_39, %c0_40] : memref<8x8x32xf32, #tpu.memory_space<vmem>>, vector<1x8x32xf32>
    %100 = vector.shape_cast %99 : vector<1x8x32xf32> to vector<8x32xf32>
    %101 = vector.shape_cast %98 : vector<8x32xf32> to vector<1x8x32xf32>
    tpu.vector_store %arg13[%c2_38, %c0_39, %c0_40], %101 {strides = array<i32>} : memref<8x8x32xf32, #tpu.memory_space<vmem>>, vector<1x8x32xf32>,
    %c3 = arith.constant 3 : index
    %c0_41 = arith.constant 0 : index
    %c0_42 = arith.constant 0 : index
    %102 = vector.load %arg2[%c3, %c0_41, %c0_42] : memref<8x8x1xi32, #tpu.memory_space<vmem>>, vector<1x8x1xi32>
    %103 = vector.shape_cast %102 : vector<1x8x1xi32> to vector<8x1xi32>
    %104 = vector.broadcast %103 : vector<8x1xi32> to vector<8x48xi32>
    %105 = arith.cmpi eq, %0, %104 : vector<8x48xi32>
    %106 = arith.extui %105 : vector<8x48xi1> to vector<8x48xi32>
    %107 = arith.sitofp %106 : vector<8x48xi32> to vector<8x48xf32>
    %cst_43 = arith.constant dense<0.000000e+00> : vector<8x16xf32>
    %108 = tpu.matmul %107, %2, %cst_43 {dimension_numbers = #tpu.dot_dimension_numbers<[1], [0], [0], [1], [0, 0, 1, 1], [], []>} : vector<8x48xf32>, vector<48x16xf32>, vector<8x16xf32> -> vector<8x16xf32>
    %109 = tpu.concatenate %108, %98 in 1 : vector<8x16xf32>, vector<8x32xf32> -> vector<8x48xf32>
    %c0_44 = arith.constant 0 : index
    %c0_45 = arith.constant 0 : index
    %110 = vector.load %arg5[%c0_44, %c0_45] : memref<48x128xf32, #tpu.memory_space<vmem>>, vector<48x128xf32>
    %cst_46 = arith.constant dense<0.000000e+00> : vector<8x128xf32>
    %111 = tpu.matmul %109, %110, %cst_46 {dimension_numbers = #tpu.dot_dimension_numbers<[1], [0], [0], [1], [0, 0, 1, 1], [], []>} : vector<8x48xf32>, vector<48x128xf32>, vector<8x128xf32> -> vector<8x128xf32>
    %c0_47 = arith.constant 0 : index
    %c0_48 = arith.constant 0 : index
    %112 = vector.load %arg6[%c0_47, %c0_48] : memref<1x128xf32, #tpu.memory_space<vmem>>, vector<1x128xf32>
    %113 = vector.broadcast %112 : vector<1x128xf32> to vector<8x128xf32>
    %114 = arith.addf %111, %113 : vector<8x128xf32>
    %115 = vector.extract_strided_slice %114 {offsets = [0, 0], sizes = [8, 96], strides = [1, 1]} : vector<8x128xf32> to vector<8x96xf32>
    %116 = arith.negf %115 : vector<8x96xf32>
    %117 = math.exp %116 : vector<8x96xf32>
    %cst_49 = arith.constant 1.000000e+00 : f32
    %118 = vector.broadcast %cst_49 : f32 to vector<8x96xf32>
    %119 = arith.addf %118, %117 : vector<8x96xf32>
    %120 = arith.divf %118, %119 : vector<8x96xf32>
    %121 = vector.extract_strided_slice %114 {offsets = [0, 96], sizes = [8, 32], strides = [1, 1]} : vector<8x128xf32> to vector<8x32xf32>
    %122 = math.tanh %121 : vector<8x32xf32>
    %123 = vector.extract_strided_slice %120 {offsets = [0, 0], sizes = [8, 32], strides = [1, 1]} : vector<8x96xf32> to vector<8x32xf32>
    %124 = vector.extract_strided_slice %120 {offsets = [0, 32], sizes = [8, 32], strides = [1, 1]} : vector<8x96xf32> to vector<8x32xf32>
    %125 = vector.extract_strided_slice %120 {offsets = [0, 64], sizes = [8, 32], strides = [1, 1]} : vector<8x96xf32> to vector<8x32xf32>
    %126 = arith.mulf %124, %96 : vector<8x32xf32>
    %127 = arith.mulf %123, %122 : vector<8x32xf32>
    %128 = arith.addf %126, %127 : vector<8x32xf32>
    %129 = math.tanh %128 : vector<8x32xf32>
    %130 = arith.mulf %125, %129 : vector<8x32xf32>
    %c3_50 = arith.constant 3 : index
    %c0_51 = arith.constant 0 : index
    %c0_52 = arith.constant 0 : index
    %131 = vector.load %arg13[%c3_50, %c0_51, %c0_52] : memref<8x8x32xf32, #tpu.memory_space<vmem>>, vector<1x8x32xf32>
    %132 = vector.shape_cast %131 : vector<1x8x32xf32> to vector<8x32xf32>
    %133 = vector.shape_cast %130 : vector<8x32xf32> to vector<1x8x32xf32>
    tpu.vector_store %arg13[%c3_50, %c0_51, %c0_52], %133 {strides = array<i32>} : memref<8x8x32xf32, #tpu.memory_space<vmem>>, vector<1x8x32xf32>,
    %c4 = arith.constant 4 : index
    %c0_53 = arith.constant 0 : index
    %c0_54 = arith.constant 0 : index
    %134 = vector.load %arg2[%c4, %c0_53, %c0_54] : memref<8x8x1xi32, #tpu.memory_space<vmem>>, vector<1x8x1xi32>
    %135 = vector.shape_cast %134 : vector<1x8x1xi32> to vector<8x1xi32>
    %136 = vector.broadcast %135 : vector<8x1xi32> to vector<8x48xi32>
    %137 = arith.cmpi eq, %0, %136 : vector<8x48xi32>
    %138 = arith.extui %137 : vector<8x48xi1> to vector<8x48xi32>
    %139 = arith.sitofp %138 : vector<8x48xi32> to vector<8x48xf32>
    %cst_55 = arith.constant dense<0.000000e+00> : vector<8x16xf32>
    %140 = tpu.matmul %139, %2, %cst_55 {dimension_numbers = #tpu.dot_dimension_numbers<[1], [0], [0], [1], [0, 0, 1, 1], [], []>} : vector<8x48xf32>, vector<48x16xf32>, vector<8x16xf32> -> vector<8x16xf32>
    %141 = tpu.concatenate %140, %130 in 1 : vector<8x16xf32>, vector<8x32xf32> -> vector<8x48xf32>
    %c0_56 = arith.constant 0 : index
    %c0_57 = arith.constant 0 : index
    %142 = vector.load %arg5[%c0_56, %c0_57] : memref<48x128xf32, #tpu.memory_space<vmem>>, vector<48x128xf32>
    %cst_58 = arith.constant dense<0.000000e+00> : vector<8x128xf32>
    %143 = tpu.matmul %141, %142, %cst_58 {dimension_numbers = #tpu.dot_dimension_numbers<[1], [0], [0], [1], [0, 0, 1, 1], [], []>} : vector<8x48xf32>, vector<48x128xf32>, vector<8x128xf32> -> vector<8x128xf32>
    %c0_59 = arith.constant 0 : index
    %c0_60 = arith.constant 0 : index
    %144 = vector.load %arg6[%c0_59, %c0_60] : memref<1x128xf32, #tpu.memory_space<vmem>>, vector<1x128xf32>
    %145 = vector.broadcast %144 : vector<1x128xf32> to vector<8x128xf32>
    %146 = arith.addf %143, %145 : vector<8x128xf32>
    %147 = vector.extract_strided_slice %146 {offsets = [0, 0], sizes = [8, 96], strides = [1, 1]} : vector<8x128xf32> to vector<8x96xf32>
    %148 = arith.negf %147 : vector<8x96xf32>
    %149 = math.exp %148 : vector<8x96xf32>
    %cst_61 = arith.constant 1.000000e+00 : f32
    %150 = vector.broadcast %cst_61 : f32 to vector<8x96xf32>
    %151 = arith.addf %150, %149 : vector<8x96xf32>
    %152 = arith.divf %150, %151 : vector<8x96xf32>
    %153 = vector.extract_strided_slice %146 {offsets = [0, 96], sizes = [8, 32], strides = [1, 1]} : vector<8x128xf32> to vector<8x32xf32>
    %154 = math.tanh %153 : vector<8x32xf32>
    %155 = vector.extract_strided_slice %152 {offsets = [0, 0], sizes = [8, 32], strides = [1, 1]} : vector<8x96xf32> to vector<8x32xf32>
    %156 = vector.extract_strided_slice %152 {offsets = [0, 32], sizes = [8, 32], strides = [1, 1]} : vector<8x96xf32> to vector<8x32xf32>
    %157 = vector.extract_strided_slice %152 {offsets = [0, 64], sizes = [8, 32], strides = [1, 1]} : vector<8x96xf32> to vector<8x32xf32>
    %158 = arith.mulf %156, %128 : vector<8x32xf32>
    %159 = arith.mulf %155, %154 : vector<8x32xf32>
    %160 = arith.addf %158, %159 : vector<8x32xf32>
    %161 = math.tanh %160 : vector<8x32xf32>
    %162 = arith.mulf %157, %161 : vector<8x32xf32>
    %c4_62 = arith.constant 4 : index
    %c0_63 = arith.constant 0 : index
    %c0_64 = arith.constant 0 : index
    %163 = vector.load %arg13[%c4_62, %c0_63, %c0_64] : memref<8x8x32xf32, #tpu.memory_space<vmem>>, vector<1x8x32xf32>
    %164 = vector.shape_cast %163 : vector<1x8x32xf32> to vector<8x32xf32>
    %165 = vector.shape_cast %162 : vector<8x32xf32> to vector<1x8x32xf32>
    tpu.vector_store %arg13[%c4_62, %c0_63, %c0_64], %165 {strides = array<i32>} : memref<8x8x32xf32, #tpu.memory_space<vmem>>, vector<1x8x32xf32>,
    %c5 = arith.constant 5 : index
    %c0_65 = arith.constant 0 : index
    %c0_66 = arith.constant 0 : index
    %166 = vector.load %arg2[%c5, %c0_65, %c0_66] : memref<8x8x1xi32, #tpu.memory_space<vmem>>, vector<1x8x1xi32>
    %167 = vector.shape_cast %166 : vector<1x8x1xi32> to vector<8x1xi32>
    %168 = vector.broadcast %167 : vector<8x1xi32> to vector<8x48xi32>
    %169 = arith.cmpi eq, %0, %168 : vector<8x48xi32>
    %170 = arith.extui %169 : vector<8x48xi1> to vector<8x48xi32>
    %171 = arith.sitofp %170 : vector<8x48xi32> to vector<8x48xf32>
    %cst_67 = arith.constant dense<0.000000e+00> : vector<8x16xf32>
    %172 = tpu.matmul %171, %2, %cst_67 {dimension_numbers = #tpu.dot_dimension_numbers<[1], [0], [0], [1], [0, 0, 1, 1], [], []>} : vector<8x48xf32>, vector<48x16xf32>, vector<8x16xf32> -> vector<8x16xf32>
    %173 = tpu.concatenate %172, %162 in 1 : vector<8x16xf32>, vector<8x32xf32> -> vector<8x48xf32>
    %c0_68 = arith.constant 0 : index
    %c0_69 = arith.constant 0 : index
    %174 = vector.load %arg5[%c0_68, %c0_69] : memref<48x128xf32, #tpu.memory_space<vmem>>, vector<48x128xf32>
    %cst_70 = arith.constant dense<0.000000e+00> : vector<8x128xf32>
    %175 = tpu.matmul %173, %174, %cst_70 {dimension_numbers = #tpu.dot_dimension_numbers<[1], [0], [0], [1], [0, 0, 1, 1], [], []>} : vector<8x48xf32>, vector<48x128xf32>, vector<8x128xf32> -> vector<8x128xf32>
    %c0_71 = arith.constant 0 : index
    %c0_72 = arith.constant 0 : index
    %176 = vector.load %arg6[%c0_71, %c0_72] : memref<1x128xf32, #tpu.memory_space<vmem>>, vector<1x128xf32>
    %177 = vector.broadcast %176 : vector<1x128xf32> to vector<8x128xf32>
    %178 = arith.addf %175, %177 : vector<8x128xf32>
    %179 = vector.extract_strided_slice %178 {offsets = [0, 0], sizes = [8, 96], strides = [1, 1]} : vector<8x128xf32> to vector<8x96xf32>
    %180 = arith.negf %179 : vector<8x96xf32>
    %181 = math.exp %180 : vector<8x96xf32>
    %cst_73 = arith.constant 1.000000e+00 : f32
    %182 = vector.broadcast %cst_73 : f32 to vector<8x96xf32>
    %183 = arith.addf %182, %181 : vector<8x96xf32>
    %184 = arith.divf %182, %183 : vector<8x96xf32>
    %185 = vector.extract_strided_slice %178 {offsets = [0, 96], sizes = [8, 32], strides = [1, 1]} : vector<8x128xf32> to vector<8x32xf32>
    %186 = math.tanh %185 : vector<8x32xf32>
    %187 = vector.extract_strided_slice %184 {offsets = [0, 0], sizes = [8, 32], strides = [1, 1]} : vector<8x96xf32> to vector<8x32xf32>
    %188 = vector.extract_strided_slice %184 {offsets = [0, 32], sizes = [8, 32], strides = [1, 1]} : vector<8x96xf32> to vector<8x32xf32>
    %189 = vector.extract_strided_slice %184 {offsets = [0, 64], sizes = [8, 32], strides = [1, 1]} : vector<8x96xf32> to vector<8x32xf32>
    %190 = arith.mulf %188, %160 : vector<8x32xf32>
    %191 = arith.mulf %187, %186 : vector<8x32xf32>
    %192 = arith.addf %190, %191 : vector<8x32xf32>
    %193 = math.tanh %192 : vector<8x32xf32>
    %194 = arith.mulf %189, %193 : vector<8x32xf32>
    %c5_74 = arith.constant 5 : index
    %c0_75 = arith.constant 0 : index
    %c0_76 = arith.constant 0 : index
    %195 = vector.load %arg13[%c5_74, %c0_75, %c0_76] : memref<8x8x32xf32, #tpu.memory_space<vmem>>, vector<1x8x32xf32>
    %196 = vector.shape_cast %195 : vector<1x8x32xf32> to vector<8x32xf32>
    %197 = vector.shape_cast %194 : vector<8x32xf32> to vector<1x8x32xf32>
    tpu.vector_store %arg13[%c5_74, %c0_75, %c0_76], %197 {strides = array<i32>} : memref<8x8x32xf32, #tpu.memory_space<vmem>>, vector<1x8x32xf32>,
    %c6 = arith.constant 6 : index
    %c0_77 = arith.constant 0 : index
    %c0_78 = arith.constant 0 : index
    %198 = vector.load %arg2[%c6, %c0_77, %c0_78] : memref<8x8x1xi32, #tpu.memory_space<vmem>>, vector<1x8x1xi32>
    %199 = vector.shape_cast %198 : vector<1x8x1xi32> to vector<8x1xi32>
    %200 = vector.broadcast %199 : vector<8x1xi32> to vector<8x48xi32>
    %201 = arith.cmpi eq, %0, %200 : vector<8x48xi32>
    %202 = arith.extui %201 : vector<8x48xi1> to vector<8x48xi32>
    %203 = arith.sitofp %202 : vector<8x48xi32> to vector<8x48xf32>
    %cst_79 = arith.constant dense<0.000000e+00> : vector<8x16xf32>
    %204 = tpu.matmul %203, %2, %cst_79 {dimension_numbers = #tpu.dot_dimension_numbers<[1], [0], [0], [1], [0, 0, 1, 1], [], []>} : vector<8x48xf32>, vector<48x16xf32>, vector<8x16xf32> -> vector<8x16xf32>
    %205 = tpu.concatenate %204, %194 in 1 : vector<8x16xf32>, vector<8x32xf32> -> vector<8x48xf32>
    %c0_80 = arith.constant 0 : index
    %c0_81 = arith.constant 0 : index
    %206 = vector.load %arg5[%c0_80, %c0_81] : memref<48x128xf32, #tpu.memory_space<vmem>>, vector<48x128xf32>
    %cst_82 = arith.constant dense<0.000000e+00> : vector<8x128xf32>
    %207 = tpu.matmul %205, %206, %cst_82 {dimension_numbers = #tpu.dot_dimension_numbers<[1], [0], [0], [1], [0, 0, 1, 1], [], []>} : vector<8x48xf32>, vector<48x128xf32>, vector<8x128xf32> -> vector<8x128xf32>
    %c0_83 = arith.constant 0 : index
    %c0_84 = arith.constant 0 : index
    %208 = vector.load %arg6[%c0_83, %c0_84] : memref<1x128xf32, #tpu.memory_space<vmem>>, vector<1x128xf32>
    %209 = vector.broadcast %208 : vector<1x128xf32> to vector<8x128xf32>
    %210 = arith.addf %207, %209 : vector<8x128xf32>
    %211 = vector.extract_strided_slice %210 {offsets = [0, 0], sizes = [8, 96], strides = [1, 1]} : vector<8x128xf32> to vector<8x96xf32>
    %212 = arith.negf %211 : vector<8x96xf32>
    %213 = math.exp %212 : vector<8x96xf32>
    %cst_85 = arith.constant 1.000000e+00 : f32
    %214 = vector.broadcast %cst_85 : f32 to vector<8x96xf32>
    %215 = arith.addf %214, %213 : vector<8x96xf32>
    %216 = arith.divf %214, %215 : vector<8x96xf32>
    %217 = vector.extract_strided_slice %210 {offsets = [0, 96], sizes = [8, 32], strides = [1, 1]} : vector<8x128xf32> to vector<8x32xf32>
    %218 = math.tanh %217 : vector<8x32xf32>
    %219 = vector.extract_strided_slice %216 {offsets = [0, 0], sizes = [8, 32], strides = [1, 1]} : vector<8x96xf32> to vector<8x32xf32>
    %220 = vector.extract_strided_slice %216 {offsets = [0, 32], sizes = [8, 32], strides = [1, 1]} : vector<8x96xf32> to vector<8x32xf32>
    %221 = vector.extract_strided_slice %216 {offsets = [0, 64], sizes = [8, 32], strides = [1, 1]} : vector<8x96xf32> to vector<8x32xf32>
    %222 = arith.mulf %220, %192 : vector<8x32xf32>
    %223 = arith.mulf %219, %218 : vector<8x32xf32>
    %224 = arith.addf %222, %223 : vector<8x32xf32>
    %225 = math.tanh %224 : vector<8x32xf32>
    %226 = arith.mulf %221, %225 : vector<8x32xf32>
    %c6_86 = arith.constant 6 : index
    %c0_87 = arith.constant 0 : index
    %c0_88 = arith.constant 0 : index
    %227 = vector.load %arg13[%c6_86, %c0_87, %c0_88] : memref<8x8x32xf32, #tpu.memory_space<vmem>>, vector<1x8x32xf32>
    %228 = vector.shape_cast %227 : vector<1x8x32xf32> to vector<8x32xf32>
    %229 = vector.shape_cast %226 : vector<8x32xf32> to vector<1x8x32xf32>
    tpu.vector_store %arg13[%c6_86, %c0_87, %c0_88], %229 {strides = array<i32>} : memref<8x8x32xf32, #tpu.memory_space<vmem>>, vector<1x8x32xf32>,
    %c7 = arith.constant 7 : index
    %c0_89 = arith.constant 0 : index
    %c0_90 = arith.constant 0 : index
    %230 = vector.load %arg2[%c7, %c0_89, %c0_90] : memref<8x8x1xi32, #tpu.memory_space<vmem>>, vector<1x8x1xi32>
    %231 = vector.shape_cast %230 : vector<1x8x1xi32> to vector<8x1xi32>
    %232 = vector.broadcast %231 : vector<8x1xi32> to vector<8x48xi32>
    %233 = arith.cmpi eq, %0, %232 : vector<8x48xi32>
    %234 = arith.extui %233 : vector<8x48xi1> to vector<8x48xi32>
    %235 = arith.sitofp %234 : vector<8x48xi32> to vector<8x48xf32>
    %cst_91 = arith.constant dense<0.000000e+00> : vector<8x16xf32>
    %236 = tpu.matmul %235, %2, %cst_91 {dimension_numbers = #tpu.dot_dimension_numbers<[1], [0], [0], [1], [0, 0, 1, 1], [], []>} : vector<8x48xf32>, vector<48x16xf32>, vector<8x16xf32> -> vector<8x16xf32>
    %237 = tpu.concatenate %236, %226 in 1 : vector<8x16xf32>, vector<8x32xf32> -> vector<8x48xf32>
    %c0_92 = arith.constant 0 : index
    %c0_93 = arith.constant 0 : index
    %238 = vector.load %arg5[%c0_92, %c0_93] : memref<48x128xf32, #tpu.memory_space<vmem>>, vector<48x128xf32>
    %cst_94 = arith.constant dense<0.000000e+00> : vector<8x128xf32>
    %239 = tpu.matmul %237, %238, %cst_94 {dimension_numbers = #tpu.dot_dimension_numbers<[1], [0], [0], [1], [0, 0, 1, 1], [], []>} : vector<8x48xf32>, vector<48x128xf32>, vector<8x128xf32> -> vector<8x128xf32>
    %c0_95 = arith.constant 0 : index
    %c0_96 = arith.constant 0 : index
    %240 = vector.load %arg6[%c0_95, %c0_96] : memref<1x128xf32, #tpu.memory_space<vmem>>, vector<1x128xf32>
    %241 = vector.broadcast %240 : vector<1x128xf32> to vector<8x128xf32>
    %242 = arith.addf %239, %241 : vector<8x128xf32>
    %243 = vector.extract_strided_slice %242 {offsets = [0, 0], sizes = [8, 96], strides = [1, 1]} : vector<8x128xf32> to vector<8x96xf32>
    %244 = arith.negf %243 : vector<8x96xf32>
    %245 = math.exp %244 : vector<8x96xf32>
    %cst_97 = arith.constant 1.000000e+00 : f32
    %246 = vector.broadcast %cst_97 : f32 to vector<8x96xf32>
    %247 = arith.addf %246, %245 : vector<8x96xf32>
    %248 = arith.divf %246, %247 : vector<8x96xf32>
    %249 = vector.extract_strided_slice %242 {offsets = [0, 96], sizes = [8, 32], strides = [1, 1]} : vector<8x128xf32> to vector<8x32xf32>
    %250 = math.tanh %249 : vector<8x32xf32>
    %251 = vector.extract_strided_slice %248 {offsets = [0, 0], sizes = [8, 32], strides = [1, 1]} : vector<8x96xf32> to vector<8x32xf32>
    %252 = vector.extract_strided_slice %248 {offsets = [0, 32], sizes = [8, 32], strides = [1, 1]} : vector<8x96xf32> to vector<8x32xf32>
    %253 = vector.extract_strided_slice %248 {offsets = [0, 64], sizes = [8, 32], strides = [1, 1]} : vector<8x96xf32> to vector<8x32xf32>
    %254 = arith.mulf %252, %224 : vector<8x32xf32>
    %255 = arith.mulf %251, %250 : vector<8x32xf32>
    %256 = arith.addf %254, %255 : vector<8x32xf32>
    %257 = math.tanh %256 : vector<8x32xf32>
    %258 = arith.mulf %253, %257 : vector<8x32xf32>
    %c7_98 = arith.constant 7 : index
    %c0_99 = arith.constant 0 : index
    %c0_100 = arith.constant 0 : index
    %259 = vector.load %arg13[%c7_98, %c0_99, %c0_100] : memref<8x8x32xf32, #tpu.memory_space<vmem>>, vector<1x8x32xf32>
    %260 = vector.shape_cast %259 : vector<1x8x32xf32> to vector<8x32xf32>
    %261 = vector.shape_cast %258 : vector<8x32xf32> to vector<1x8x32xf32>
    tpu.vector_store %arg13[%c7_98, %c0_99, %c0_100], %261 {strides = array<i32>} : memref<8x8x32xf32, #tpu.memory_space<vmem>>, vector<1x8x32xf32>,
    %c0_101 = arith.constant 0 : index
    %c0_102 = arith.constant 0 : index
    %c0_103 = arith.constant 0 : index
    %262 = vector.load %arg13[%c0_101, %c0_102, %c0_103] : memref<8x8x32xf32, #tpu.memory_space<vmem>>, vector<8x8x32xf32>
    %cst_104 = arith.constant 0.000000e+00 : f32
    %263 = vector.broadcast %cst_104 : f32 to vector<8x64xf32>
    %c0_105 = arith.constant 0 : index
    %c0_106 = arith.constant 0 : index
    %c0_107 = arith.constant 0 : index
    %264 = vector.load %arg12[%c0_105, %c0_106, %c0_107] : memref<8x8x64xf32, #tpu.memory_space<vmem>>, vector<1x8x64xf32>
    %265 = vector.shape_cast %264 : vector<1x8x64xf32> to vector<8x64xf32>
    %266 = vector.shape_cast %263 : vector<8x64xf32> to vector<1x8x64xf32>
    tpu.vector_store %arg12[%c0_105, %c0_106, %c0_107], %266 {strides = array<i32>} : memref<8x8x64xf32, #tpu.memory_space<vmem>>, vector<1x8x64xf32>,
    %c0_108 = arith.constant 0 : index
    %c0_109 = arith.constant 0 : index
    %c0_110 = arith.constant 0 : index
    %267 = vector.load %arg3[%c0_108, %c0_109, %c0_110] : memref<8x8x1xi32, #tpu.memory_space<vmem>>, vector<1x8x1xi32>
    %268 = vector.shape_cast %267 : vector<1x8x1xi32> to vector<8x1xi32>
    %269 = vector.broadcast %268 : vector<8x1xi32> to vector<8x64xi32>
    %270 = arith.cmpi eq, %1, %269 : vector<8x64xi32>
    %271 = arith.extui %270 : vector<8x64xi1> to vector<8x64xi32>
    %272 = arith.sitofp %271 : vector<8x64xi32> to vector<8x64xf32>
    %cst_111 = arith.constant dense<0.000000e+00> : vector<8x16xf32>
    %273 = tpu.matmul %272, %3, %cst_111 {dimension_numbers = #tpu.dot_dimension_numbers<[1], [0], [0], [1], [0, 0, 1, 1], [], []>} : vector<8x64xf32>, vector<64x16xf32>, vector<8x16xf32> -> vector<8x16xf32>
    %274 = vector.shape_cast %258 : vector<8x32xf32> to vector<1x8x32xf32>
    %275 = vector.broadcast %274 : vector<1x8x32xf32> to vector<8x8x32xf32>
    %276 = arith.mulf %262, %275 : vector<8x8x32xf32>
    %cst_112 = arith.constant dense<0.000000e+00> : vector<8x8xf32>
    %277 = vector.multi_reduction <add>, %276, %cst_112 [2] : vector<8x8x32xf32> to vector<8x8xf32>
    %278 = vector.shape_cast %277 : vector<8x8xf32> to vector<8x8x1xf32>
    %cst_113 = arith.constant dense<0xFF800000> : vector<8x1xf32>
    %279 = vector.multi_reduction <maximumf>, %278, %cst_113 [0] : vector<8x8x1xf32> to vector<8x1xf32>
    %280 = vector.shape_cast %279 : vector<8x1xf32> to vector<1x8x1xf32>
    %281 = vector.broadcast %280 : vector<1x8x1xf32> to vector<8x8x1xf32>
    %282 = arith.subf %278, %281 : vector<8x8x1xf32>
    %283 = math.exp %282 : vector<8x8x1xf32>
    %cst_114 = arith.constant dense<0.000000e+00> : vector<8x1xf32>
    %284 = vector.multi_reduction <add>, %283, %cst_114 [0] : vector<8x8x1xf32> to vector<8x1xf32>
    %285 = vector.shape_cast %284 : vector<8x1xf32> to vector<1x8x1xf32>
    %286 = tpu.reciprocal %285 {approx = true} : vector<1x8x1xf32> -> vector<1x8x1xf32>
    %287 = vector.broadcast %286 : vector<1x8x1xf32> to vector<8x8x1xf32>
    %288 = arith.mulf %283, %287 : vector<8x8x1xf32>
    %289 = vector.broadcast %288 : vector<8x8x1xf32> to vector<8x8x32xf32>
    %290 = arith.mulf %289, %262 : vector<8x8x32xf32>
    %cst_115 = arith.constant dense<0.000000e+00> : vector<8x32xf32>
    %291 = vector.multi_reduction <add>, %290, %cst_115 [0] : vector<8x8x32xf32> to vector<8x32xf32>
    %292 = tpu.concatenate %273, %291, %258 in 1 : vector<8x16xf32>, vector<8x32xf32>, vector<8x32xf32> -> vector<8x80xf32>
    %c0_116 = arith.constant 0 : index
    %c0_117 = arith.constant 0 : index
    %293 = vector.load %arg8[%c0_116, %c0_117] : memref<80x128xf32, #tpu.memory_space<vmem>>, vector<80x128xf32>
    %cst_118 = arith.constant dense<0.000000e+00> : vector<8x128xf32>
    %294 = tpu.matmul %292, %293, %cst_118 {dimension_numbers = #tpu.dot_dimension_numbers<[1], [0], [0], [1], [0, 0, 1, 1], [], []>} : vector<8x80xf32>, vector<80x128xf32>, vector<8x128xf32> -> vector<8x128xf32>
    %c0_119 = arith.constant 0 : index
    %c0_120 = arith.constant 0 : index
    %295 = vector.load %arg9[%c0_119, %c0_120] : memref<1x128xf32, #tpu.memory_space<vmem>>, vector<1x128xf32>
    %296 = vector.broadcast %295 : vector<1x128xf32> to vector<8x128xf32>
    %297 = arith.addf %294, %296 : vector<8x128xf32>
    %298 = vector.extract_strided_slice %297 {offsets = [0, 0], sizes = [8, 96], strides = [1, 1]} : vector<8x128xf32> to vector<8x96xf32>
    %299 = arith.negf %298 : vector<8x96xf32>
    %300 = math.exp %299 : vector<8x96xf32>
    %cst_121 = arith.constant 1.000000e+00 : f32
    %301 = vector.broadcast %cst_121 : f32 to vector<8x96xf32>
    %302 = arith.addf %301, %300 : vector<8x96xf32>
    %303 = arith.divf %301, %302 : vector<8x96xf32>
    %304 = vector.extract_strided_slice %297 {offsets = [0, 96], sizes = [8, 32], strides = [1, 1]} : vector<8x128xf32> to vector<8x32xf32>
    %305 = math.tanh %304 : vector<8x32xf32>
    %306 = vector.extract_strided_slice %303 {offsets = [0, 0], sizes = [8, 32], strides = [1, 1]} : vector<8x96xf32> to vector<8x32xf32>
    %307 = vector.extract_strided_slice %303 {offsets = [0, 32], sizes = [8, 32], strides = [1, 1]} : vector<8x96xf32> to vector<8x32xf32>
    %308 = vector.extract_strided_slice %303 {offsets = [0, 64], sizes = [8, 32], strides = [1, 1]} : vector<8x96xf32> to vector<8x32xf32>
    %309 = arith.mulf %307, %256 : vector<8x32xf32>
    %310 = arith.mulf %306, %305 : vector<8x32xf32>
    %311 = arith.addf %309, %310 : vector<8x32xf32>
    %312 = math.tanh %311 : vector<8x32xf32>
    %313 = arith.mulf %308, %312 : vector<8x32xf32>
    %314 = tpu.concatenate %313, %291 in 1 : vector<8x32xf32>, vector<8x32xf32> -> vector<8x64xf32>
    %c0_122 = arith.constant 0 : index
    %c0_123 = arith.constant 0 : index
    %315 = vector.load %arg10[%c0_122, %c0_123] : memref<64x64xf32, #tpu.memory_space<vmem>>, vector<64x64xf32>
    %cst_124 = arith.constant dense<0.000000e+00> : vector<8x64xf32>
    %316 = tpu.matmul %314, %315, %cst_124 {dimension_numbers = #tpu.dot_dimension_numbers<[1], [0], [0], [1], [0, 0, 1, 1], [], []>} : vector<8x64xf32>, vector<64x64xf32>, vector<8x64xf32> -> vector<8x64xf32>
    %c0_125 = arith.constant 0 : index
    %c0_126 = arith.constant 0 : index
    %317 = vector.load %arg11[%c0_125, %c0_126] : memref<1x64xf32, #tpu.memory_space<vmem>>, vector<1x64xf32>
    %318 = vector.broadcast %317 : vector<1x64xf32> to vector<8x64xf32>
    %319 = arith.addf %316, %318 : vector<8x64xf32>
    %c1_127 = arith.constant 1 : index
    %c0_128 = arith.constant 0 : index
    %c0_129 = arith.constant 0 : index
    %320 = vector.load %arg12[%c1_127, %c0_128, %c0_129] : memref<8x8x64xf32, #tpu.memory_space<vmem>>, vector<1x8x64xf32>
    %321 = vector.shape_cast %320 : vector<1x8x64xf32> to vector<8x64xf32>
    %322 = vector.shape_cast %319 : vector<8x64xf32> to vector<1x8x64xf32>
    tpu.vector_store %arg12[%c1_127, %c0_128, %c0_129], %322 {strides = array<i32>} : memref<8x8x64xf32, #tpu.memory_space<vmem>>, vector<1x8x64xf32>,
    %cst_130 = arith.constant dense<0xFF800000> : vector<8xf32>
    %323 = vector.multi_reduction <maximumf>, %319, %cst_130 [1] : vector<8x64xf32> to vector<8xf32>
    %324 = vector.shape_cast %323 : vector<8xf32> to vector<8x1xf32>
    %325 = vector.broadcast %324 : vector<8x1xf32> to vector<8x64xf32>
    %326 = arith.cmpf oge, %319, %325 : vector<8x64xf32>
    %c64_i32 = arith.constant 64 : i32
    %327 = vector.broadcast %c64_i32 : i32 to vector<8x64xi32>
    %328 = arith.select %326, %1, %327 : vector<8x64xi1>, vector<8x64xi32>
    %cst_131 = arith.constant dense<2147483647> : vector<8xi32>
    %329 = vector.multi_reduction <minsi>, %328, %cst_131 [1] : vector<8x64xi32> to vector<8xi32>
    %330 = vector.shape_cast %329 : vector<8xi32> to vector<8x1xi32>
    %331 = vector.broadcast %330 : vector<8x1xi32> to vector<8x64xi32>
    %332 = arith.cmpi eq, %1, %331 : vector<8x64xi32>
    %333 = arith.extui %332 : vector<8x64xi1> to vector<8x64xi32>
    %334 = arith.sitofp %333 : vector<8x64xi32> to vector<8x64xf32>
    %c1_132 = arith.constant 1 : index
    %c0_133 = arith.constant 0 : index
    %c0_134 = arith.constant 0 : index
    %335 = vector.load %arg3[%c1_132, %c0_133, %c0_134] : memref<8x8x1xi32, #tpu.memory_space<vmem>>, vector<1x8x1xi32>
    %336 = vector.shape_cast %335 : vector<1x8x1xi32> to vector<8x1xi32>
    %337 = vector.broadcast %336 : vector<8x1xi32> to vector<8x64xi32>
    %338 = arith.cmpi eq, %1, %337 : vector<8x64xi32>
    %339 = arith.extui %338 : vector<8x64xi1> to vector<8x64xi32>
    %340 = arith.sitofp %339 : vector<8x64xi32> to vector<8x64xf32>
    %c0_135 = arith.constant 0 : index
    %341 = memref.load %arg1[%c0_135] : memref<7xi32, #tpu.memory_space<smem>>
    %c0_i32 = arith.constant 0 : i32
    %342 = arith.cmpi ne, %341, %c0_i32 : i32
    %343 = arith.select %342, %340, %334 : vector<8x64xf32>
    %cst_136 = arith.constant dense<0.000000e+00> : vector<8x16xf32>
    %344 = tpu.matmul %343, %3, %cst_136 {dimension_numbers = #tpu.dot_dimension_numbers<[1], [0], [0], [1], [0, 0, 1, 1], [], []>} : vector<8x64xf32>, vector<64x16xf32>, vector<8x16xf32> -> vector<8x16xf32>
    %345 = vector.shape_cast %313 : vector<8x32xf32> to vector<1x8x32xf32>
    %346 = vector.broadcast %345 : vector<1x8x32xf32> to vector<8x8x32xf32>
    %347 = arith.mulf %262, %346 : vector<8x8x32xf32>
    %cst_137 = arith.constant dense<0.000000e+00> : vector<8x8xf32>
    %348 = vector.multi_reduction <add>, %347, %cst_137 [2] : vector<8x8x32xf32> to vector<8x8xf32>
    %349 = vector.shape_cast %348 : vector<8x8xf32> to vector<8x8x1xf32>
    %cst_138 = arith.constant dense<0xFF800000> : vector<8x1xf32>
    %350 = vector.multi_reduction <maximumf>, %349, %cst_138 [0] : vector<8x8x1xf32> to vector<8x1xf32>
    %351 = vector.shape_cast %350 : vector<8x1xf32> to vector<1x8x1xf32>
    %352 = vector.broadcast %351 : vector<1x8x1xf32> to vector<8x8x1xf32>
    %353 = arith.subf %349, %352 : vector<8x8x1xf32>
    %354 = math.exp %353 : vector<8x8x1xf32>
    %cst_139 = arith.constant dense<0.000000e+00> : vector<8x1xf32>
    %355 = vector.multi_reduction <add>, %354, %cst_139 [0] : vector<8x8x1xf32> to vector<8x1xf32>
    %356 = vector.shape_cast %355 : vector<8x1xf32> to vector<1x8x1xf32>
    %357 = tpu.reciprocal %356 {approx = true} : vector<1x8x1xf32> -> vector<1x8x1xf32>
    %358 = vector.broadcast %357 : vector<1x8x1xf32> to vector<8x8x1xf32>
    %359 = arith.mulf %354, %358 : vector<8x8x1xf32>
    %360 = vector.broadcast %359 : vector<8x8x1xf32> to vector<8x8x32xf32>
    %361 = arith.mulf %360, %262 : vector<8x8x32xf32>
    %cst_140 = arith.constant dense<0.000000e+00> : vector<8x32xf32>
    %362 = vector.multi_reduction <add>, %361, %cst_140 [0] : vector<8x8x32xf32> to vector<8x32xf32>
    %363 = tpu.concatenate %344, %362, %313 in 1 : vector<8x16xf32>, vector<8x32xf32>, vector<8x32xf32> -> vector<8x80xf32>
    %c0_141 = arith.constant 0 : index
    %c0_142 = arith.constant 0 : index
    %364 = vector.load %arg8[%c0_141, %c0_142] : memref<80x128xf32, #tpu.memory_space<vmem>>, vector<80x128xf32>
    %cst_143 = arith.constant dense<0.000000e+00> : vector<8x128xf32>
    %365 = tpu.matmul %363, %364, %cst_143 {dimension_numbers = #tpu.dot_dimension_numbers<[1], [0], [0], [1], [0, 0, 1, 1], [], []>} : vector<8x80xf32>, vector<80x128xf32>, vector<8x128xf32> -> vector<8x128xf32>
    %c0_144 = arith.constant 0 : index
    %c0_145 = arith.constant 0 : index
    %366 = vector.load %arg9[%c0_144, %c0_145] : memref<1x128xf32, #tpu.memory_space<vmem>>, vector<1x128xf32>
    %367 = vector.broadcast %366 : vector<1x128xf32> to vector<8x128xf32>
    %368 = arith.addf %365, %367 : vector<8x128xf32>
    %369 = vector.extract_strided_slice %368 {offsets = [0, 0], sizes = [8, 96], strides = [1, 1]} : vector<8x128xf32> to vector<8x96xf32>
    %370 = arith.negf %369 : vector<8x96xf32>
    %371 = math.exp %370 : vector<8x96xf32>
    %cst_146 = arith.constant 1.000000e+00 : f32
    %372 = vector.broadcast %cst_146 : f32 to vector<8x96xf32>
    %373 = arith.addf %372, %371 : vector<8x96xf32>
    %374 = arith.divf %372, %373 : vector<8x96xf32>
    %375 = vector.extract_strided_slice %368 {offsets = [0, 96], sizes = [8, 32], strides = [1, 1]} : vector<8x128xf32> to vector<8x32xf32>
    %376 = math.tanh %375 : vector<8x32xf32>
    %377 = vector.extract_strided_slice %374 {offsets = [0, 0], sizes = [8, 32], strides = [1, 1]} : vector<8x96xf32> to vector<8x32xf32>
    %378 = vector.extract_strided_slice %374 {offsets = [0, 32], sizes = [8, 32], strides = [1, 1]} : vector<8x96xf32> to vector<8x32xf32>
    %379 = vector.extract_strided_slice %374 {offsets = [0, 64], sizes = [8, 32], strides = [1, 1]} : vector<8x96xf32> to vector<8x32xf32>
    %380 = arith.mulf %378, %311 : vector<8x32xf32>
    %381 = arith.mulf %377, %376 : vector<8x32xf32>
    %382 = arith.addf %380, %381 : vector<8x32xf32>
    %383 = math.tanh %382 : vector<8x32xf32>
    %384 = arith.mulf %379, %383 : vector<8x32xf32>
    %385 = tpu.concatenate %384, %362 in 1 : vector<8x32xf32>, vector<8x32xf32> -> vector<8x64xf32>
    %c0_147 = arith.constant 0 : index
    %c0_148 = arith.constant 0 : index
    %386 = vector.load %arg10[%c0_147, %c0_148] : memref<64x64xf32, #tpu.memory_space<vmem>>, vector<64x64xf32>
    %cst_149 = arith.constant dense<0.000000e+00> : vector<8x64xf32>
    %387 = tpu.matmul %385, %386, %cst_149 {dimension_numbers = #tpu.dot_dimension_numbers<[1], [0], [0], [1], [0, 0, 1, 1], [], []>} : vector<8x64xf32>, vector<64x64xf32>, vector<8x64xf32> -> vector<8x64xf32>
    %c0_150 = arith.constant 0 : index
    %c0_151 = arith.constant 0 : index
    %388 = vector.load %arg11[%c0_150, %c0_151] : memref<1x64xf32, #tpu.memory_space<vmem>>, vector<1x64xf32>
    %389 = vector.broadcast %388 : vector<1x64xf32> to vector<8x64xf32>
    %390 = arith.addf %387, %389 : vector<8x64xf32>
    %c2_152 = arith.constant 2 : index
    %c0_153 = arith.constant 0 : index
    %c0_154 = arith.constant 0 : index
    %391 = vector.load %arg12[%c2_152, %c0_153, %c0_154] : memref<8x8x64xf32, #tpu.memory_space<vmem>>, vector<1x8x64xf32>
    %392 = vector.shape_cast %391 : vector<1x8x64xf32> to vector<8x64xf32>
    %393 = vector.shape_cast %390 : vector<8x64xf32> to vector<1x8x64xf32>
    tpu.vector_store %arg12[%c2_152, %c0_153, %c0_154], %393 {strides = array<i32>} : memref<8x8x64xf32, #tpu.memory_space<vmem>>, vector<1x8x64xf32>,
    %cst_155 = arith.constant dense<0xFF800000> : vector<8xf32>
    %394 = vector.multi_reduction <maximumf>, %390, %cst_155 [1] : vector<8x64xf32> to vector<8xf32>
    %395 = vector.shape_cast %394 : vector<8xf32> to vector<8x1xf32>
    %396 = vector.broadcast %395 : vector<8x1xf32> to vector<8x64xf32>
    %397 = arith.cmpf oge, %390, %396 : vector<8x64xf32>
    %c64_i32_156 = arith.constant 64 : i32
    %398 = vector.broadcast %c64_i32_156 : i32 to vector<8x64xi32>
    %399 = arith.select %397, %1, %398 : vector<8x64xi1>, vector<8x64xi32>
    %cst_157 = arith.constant dense<2147483647> : vector<8xi32>
    %400 = vector.multi_reduction <minsi>, %399, %cst_157 [1] : vector<8x64xi32> to vector<8xi32>
    %401 = vector.shape_cast %400 : vector<8xi32> to vector<8x1xi32>
    %402 = vector.broadcast %401 : vector<8x1xi32> to vector<8x64xi32>
    %403 = arith.cmpi eq, %1, %402 : vector<8x64xi32>
    %404 = arith.extui %403 : vector<8x64xi1> to vector<8x64xi32>
    %405 = arith.sitofp %404 : vector<8x64xi32> to vector<8x64xf32>
    %c2_158 = arith.constant 2 : index
    %c0_159 = arith.constant 0 : index
    %c0_160 = arith.constant 0 : index
    %406 = vector.load %arg3[%c2_158, %c0_159, %c0_160] : memref<8x8x1xi32, #tpu.memory_space<vmem>>, vector<1x8x1xi32>
    %407 = vector.shape_cast %406 : vector<1x8x1xi32> to vector<8x1xi32>
    %408 = vector.broadcast %407 : vector<8x1xi32> to vector<8x64xi32>
    %409 = arith.cmpi eq, %1, %408 : vector<8x64xi32>
    %410 = arith.extui %409 : vector<8x64xi1> to vector<8x64xi32>
    %411 = arith.sitofp %410 : vector<8x64xi32> to vector<8x64xf32>
    %c1_161 = arith.constant 1 : index
    %412 = memref.load %arg1[%c1_161] : memref<7xi32, #tpu.memory_space<smem>>
    %c0_i32_162 = arith.constant 0 : i32
    %413 = arith.cmpi ne, %412, %c0_i32_162 : i32
    %414 = arith.select %413, %411, %405 : vector<8x64xf32>
    %cst_163 = arith.constant dense<0.000000e+00> : vector<8x16xf32>
    %415 = tpu.matmul %414, %3, %cst_163 {dimension_numbers = #tpu.dot_dimension_numbers<[1], [0], [0], [1], [0, 0, 1, 1], [], []>} : vector<8x64xf32>, vector<64x16xf32>, vector<8x16xf32> -> vector<8x16xf32>
    %416 = vector.shape_cast %384 : vector<8x32xf32> to vector<1x8x32xf32>
    %417 = vector.broadcast %416 : vector<1x8x32xf32> to vector<8x8x32xf32>
    %418 = arith.mulf %262, %417 : vector<8x8x32xf32>
    %cst_164 = arith.constant dense<0.000000e+00> : vector<8x8xf32>
    %419 = vector.multi_reduction <add>, %418, %cst_164 [2] : vector<8x8x32xf32> to vector<8x8xf32>
    %420 = vector.shape_cast %419 : vector<8x8xf32> to vector<8x8x1xf32>
    %cst_165 = arith.constant dense<0xFF800000> : vector<8x1xf32>
    %421 = vector.multi_reduction <maximumf>, %420, %cst_165 [0] : vector<8x8x1xf32> to vector<8x1xf32>
    %422 = vector.shape_cast %421 : vector<8x1xf32> to vector<1x8x1xf32>
    %423 = vector.broadcast %422 : vector<1x8x1xf32> to vector<8x8x1xf32>
    %424 = arith.subf %420, %423 : vector<8x8x1xf32>
    %425 = math.exp %424 : vector<8x8x1xf32>
    %cst_166 = arith.constant dense<0.000000e+00> : vector<8x1xf32>
    %426 = vector.multi_reduction <add>, %425, %cst_166 [0] : vector<8x8x1xf32> to vector<8x1xf32>
    %427 = vector.shape_cast %426 : vector<8x1xf32> to vector<1x8x1xf32>
    %428 = tpu.reciprocal %427 {approx = true} : vector<1x8x1xf32> -> vector<1x8x1xf32>
    %429 = vector.broadcast %428 : vector<1x8x1xf32> to vector<8x8x1xf32>
    %430 = arith.mulf %425, %429 : vector<8x8x1xf32>
    %431 = vector.broadcast %430 : vector<8x8x1xf32> to vector<8x8x32xf32>
    %432 = arith.mulf %431, %262 : vector<8x8x32xf32>
    %cst_167 = arith.constant dense<0.000000e+00> : vector<8x32xf32>
    %433 = vector.multi_reduction <add>, %432, %cst_167 [0] : vector<8x8x32xf32> to vector<8x32xf32>
    %434 = tpu.concatenate %415, %433, %384 in 1 : vector<8x16xf32>, vector<8x32xf32>, vector<8x32xf32> -> vector<8x80xf32>
    %c0_168 = arith.constant 0 : index
    %c0_169 = arith.constant 0 : index
    %435 = vector.load %arg8[%c0_168, %c0_169] : memref<80x128xf32, #tpu.memory_space<vmem>>, vector<80x128xf32>
    %cst_170 = arith.constant dense<0.000000e+00> : vector<8x128xf32>
    %436 = tpu.matmul %434, %435, %cst_170 {dimension_numbers = #tpu.dot_dimension_numbers<[1], [0], [0], [1], [0, 0, 1, 1], [], []>} : vector<8x80xf32>, vector<80x128xf32>, vector<8x128xf32> -> vector<8x128xf32>
    %c0_171 = arith.constant 0 : index
    %c0_172 = arith.constant 0 : index
    %437 = vector.load %arg9[%c0_171, %c0_172] : memref<1x128xf32, #tpu.memory_space<vmem>>, vector<1x128xf32>
    %438 = vector.broadcast %437 : vector<1x128xf32> to vector<8x128xf32>
    %439 = arith.addf %436, %438 : vector<8x128xf32>
    %440 = vector.extract_strided_slice %439 {offsets = [0, 0], sizes = [8, 96], strides = [1, 1]} : vector<8x128xf32> to vector<8x96xf32>
    %441 = arith.negf %440 : vector<8x96xf32>
    %442 = math.exp %441 : vector<8x96xf32>
    %cst_173 = arith.constant 1.000000e+00 : f32
    %443 = vector.broadcast %cst_173 : f32 to vector<8x96xf32>
    %444 = arith.addf %443, %442 : vector<8x96xf32>
    %445 = arith.divf %443, %444 : vector<8x96xf32>
    %446 = vector.extract_strided_slice %439 {offsets = [0, 96], sizes = [8, 32], strides = [1, 1]} : vector<8x128xf32> to vector<8x32xf32>
    %447 = math.tanh %446 : vector<8x32xf32>
    %448 = vector.extract_strided_slice %445 {offsets = [0, 0], sizes = [8, 32], strides = [1, 1]} : vector<8x96xf32> to vector<8x32xf32>
    %449 = vector.extract_strided_slice %445 {offsets = [0, 32], sizes = [8, 32], strides = [1, 1]} : vector<8x96xf32> to vector<8x32xf32>
    %450 = vector.extract_strided_slice %445 {offsets = [0, 64], sizes = [8, 32], strides = [1, 1]} : vector<8x96xf32> to vector<8x32xf32>
    %451 = arith.mulf %449, %382 : vector<8x32xf32>
    %452 = arith.mulf %448, %447 : vector<8x32xf32>
    %453 = arith.addf %451, %452 : vector<8x32xf32>
    %454 = math.tanh %453 : vector<8x32xf32>
    %455 = arith.mulf %450, %454 : vector<8x32xf32>
    %456 = tpu.concatenate %455, %433 in 1 : vector<8x32xf32>, vector<8x32xf32> -> vector<8x64xf32>
    %c0_174 = arith.constant 0 : index
    %c0_175 = arith.constant 0 : index
    %457 = vector.load %arg10[%c0_174, %c0_175] : memref<64x64xf32, #tpu.memory_space<vmem>>, vector<64x64xf32>
    %cst_176 = arith.constant dense<0.000000e+00> : vector<8x64xf32>
    %458 = tpu.matmul %456, %457, %cst_176 {dimension_numbers = #tpu.dot_dimension_numbers<[1], [0], [0], [1], [0, 0, 1, 1], [], []>} : vector<8x64xf32>, vector<64x64xf32>, vector<8x64xf32> -> vector<8x64xf32>
    %c0_177 = arith.constant 0 : index
    %c0_178 = arith.constant 0 : index
    %459 = vector.load %arg11[%c0_177, %c0_178] : memref<1x64xf32, #tpu.memory_space<vmem>>, vector<1x64xf32>
    %460 = vector.broadcast %459 : vector<1x64xf32> to vector<8x64xf32>
    %461 = arith.addf %458, %460 : vector<8x64xf32>
    %c3_179 = arith.constant 3 : index
    %c0_180 = arith.constant 0 : index
    %c0_181 = arith.constant 0 : index
    %462 = vector.load %arg12[%c3_179, %c0_180, %c0_181] : memref<8x8x64xf32, #tpu.memory_space<vmem>>, vector<1x8x64xf32>
    %463 = vector.shape_cast %462 : vector<1x8x64xf32> to vector<8x64xf32>
    %464 = vector.shape_cast %461 : vector<8x64xf32> to vector<1x8x64xf32>
    tpu.vector_store %arg12[%c3_179, %c0_180, %c0_181], %464 {strides = array<i32>} : memref<8x8x64xf32, #tpu.memory_space<vmem>>, vector<1x8x64xf32>,
    %cst_182 = arith.constant dense<0xFF800000> : vector<8xf32>
    %465 = vector.multi_reduction <maximumf>, %461, %cst_182 [1] : vector<8x64xf32> to vector<8xf32>
    %466 = vector.shape_cast %465 : vector<8xf32> to vector<8x1xf32>
    %467 = vector.broadcast %466 : vector<8x1xf32> to vector<8x64xf32>
    %468 = arith.cmpf oge, %461, %467 : vector<8x64xf32>
    %c64_i32_183 = arith.constant 64 : i32
    %469 = vector.broadcast %c64_i32_183 : i32 to vector<8x64xi32>
    %470 = arith.select %468, %1, %469 : vector<8x64xi1>, vector<8x64xi32>
    %cst_184 = arith.constant dense<2147483647> : vector<8xi32>
    %471 = vector.multi_reduction <minsi>, %470, %cst_184 [1] : vector<8x64xi32> to vector<8xi32>
    %472 = vector.shape_cast %471 : vector<8xi32> to vector<8x1xi32>
    %473 = vector.broadcast %472 : vector<8x1xi32> to vector<8x64xi32>
    %474 = arith.cmpi eq, %1, %473 : vector<8x64xi32>
    %475 = arith.extui %474 : vector<8x64xi1> to vector<8x64xi32>
    %476 = arith.sitofp %475 : vector<8x64xi32> to vector<8x64xf32>
    %c3_185 = arith.constant 3 : index
    %c0_186 = arith.constant 0 : index
    %c0_187 = arith.constant 0 : index
    %477 = vector.load %arg3[%c3_185, %c0_186, %c0_187] : memref<8x8x1xi32, #tpu.memory_space<vmem>>, vector<1x8x1xi32>
    %478 = vector.shape_cast %477 : vector<1x8x1xi32> to vector<8x1xi32>
    %479 = vector.broadcast %478 : vector<8x1xi32> to vector<8x64xi32>
    %480 = arith.cmpi eq, %1, %479 : vector<8x64xi32>
    %481 = arith.extui %480 : vector<8x64xi1> to vector<8x64xi32>
    %482 = arith.sitofp %481 : vector<8x64xi32> to vector<8x64xf32>
    %c2_188 = arith.constant 2 : index
    %483 = memref.load %arg1[%c2_188] : memref<7xi32, #tpu.memory_space<smem>>
    %c0_i32_189 = arith.constant 0 : i32
    %484 = arith.cmpi ne, %483, %c0_i32_189 : i32
    %485 = arith.select %484, %482, %476 : vector<8x64xf32>
    %cst_190 = arith.constant dense<0.000000e+00> : vector<8x16xf32>
    %486 = tpu.matmul %485, %3, %cst_190 {dimension_numbers = #tpu.dot_dimension_numbers<[1], [0], [0], [1], [0, 0, 1, 1], [], []>} : vector<8x64xf32>, vector<64x16xf32>, vector<8x16xf32> -> vector<8x16xf32>
    %487 = vector.shape_cast %455 : vector<8x32xf32> to vector<1x8x32xf32>
    %488 = vector.broadcast %487 : vector<1x8x32xf32> to vector<8x8x32xf32>
    %489 = arith.mulf %262, %488 : vector<8x8x32xf32>
    %cst_191 = arith.constant dense<0.000000e+00> : vector<8x8xf32>
    %490 = vector.multi_reduction <add>, %489, %cst_191 [2] : vector<8x8x32xf32> to vector<8x8xf32>
    %491 = vector.shape_cast %490 : vector<8x8xf32> to vector<8x8x1xf32>
    %cst_192 = arith.constant dense<0xFF800000> : vector<8x1xf32>
    %492 = vector.multi_reduction <maximumf>, %491, %cst_192 [0] : vector<8x8x1xf32> to vector<8x1xf32>
    %493 = vector.shape_cast %492 : vector<8x1xf32> to vector<1x8x1xf32>
    %494 = vector.broadcast %493 : vector<1x8x1xf32> to vector<8x8x1xf32>
    %495 = arith.subf %491, %494 : vector<8x8x1xf32>
    %496 = math.exp %495 : vector<8x8x1xf32>
    %cst_193 = arith.constant dense<0.000000e+00> : vector<8x1xf32>
    %497 = vector.multi_reduction <add>, %496, %cst_193 [0] : vector<8x8x1xf32> to vector<8x1xf32>
    %498 = vector.shape_cast %497 : vector<8x1xf32> to vector<1x8x1xf32>
    %499 = tpu.reciprocal %498 {approx = true} : vector<1x8x1xf32> -> vector<1x8x1xf32>
    %500 = vector.broadcast %499 : vector<1x8x1xf32> to vector<8x8x1xf32>
    %501 = arith.mulf %496, %500 : vector<8x8x1xf32>
    %502 = vector.broadcast %501 : vector<8x8x1xf32> to vector<8x8x32xf32>
    %503 = arith.mulf %502, %262 : vector<8x8x32xf32>
    %cst_194 = arith.constant dense<0.000000e+00> : vector<8x32xf32>
    %504 = vector.multi_reduction <add>, %503, %cst_194 [0] : vector<8x8x32xf32> to vector<8x32xf32>
    %505 = tpu.concatenate %486, %504, %455 in 1 : vector<8x16xf32>, vector<8x32xf32>, vector<8x32xf32> -> vector<8x80xf32>
    %c0_195 = arith.constant 0 : index
    %c0_196 = arith.constant 0 : index
    %506 = vector.load %arg8[%c0_195, %c0_196] : memref<80x128xf32, #tpu.memory_space<vmem>>, vector<80x128xf32>
    %cst_197 = arith.constant dense<0.000000e+00> : vector<8x128xf32>
    %507 = tpu.matmul %505, %506, %cst_197 {dimension_numbers = #tpu.dot_dimension_numbers<[1], [0], [0], [1], [0, 0, 1, 1], [], []>} : vector<8x80xf32>, vector<80x128xf32>, vector<8x128xf32> -> vector<8x128xf32>
    %c0_198 = arith.constant 0 : index
    %c0_199 = arith.constant 0 : index
    %508 = vector.load %arg9[%c0_198, %c0_199] : memref<1x128xf32, #tpu.memory_space<vmem>>, vector<1x128xf32>
    %509 = vector.broadcast %508 : vector<1x128xf32> to vector<8x128xf32>
    %510 = arith.addf %507, %509 : vector<8x128xf32>
    %511 = vector.extract_strided_slice %510 {offsets = [0, 0], sizes = [8, 96], strides = [1, 1]} : vector<8x128xf32> to vector<8x96xf32>
    %512 = arith.negf %511 : vector<8x96xf32>
    %513 = math.exp %512 : vector<8x96xf32>
    %cst_200 = arith.constant 1.000000e+00 : f32
    %514 = vector.broadcast %cst_200 : f32 to vector<8x96xf32>
    %515 = arith.addf %514, %513 : vector<8x96xf32>
    %516 = arith.divf %514, %515 : vector<8x96xf32>
    %517 = vector.extract_strided_slice %510 {offsets = [0, 96], sizes = [8, 32], strides = [1, 1]} : vector<8x128xf32> to vector<8x32xf32>
    %518 = math.tanh %517 : vector<8x32xf32>
    %519 = vector.extract_strided_slice %516 {offsets = [0, 0], sizes = [8, 32], strides = [1, 1]} : vector<8x96xf32> to vector<8x32xf32>
    %520 = vector.extract_strided_slice %516 {offsets = [0, 32], sizes = [8, 32], strides = [1, 1]} : vector<8x96xf32> to vector<8x32xf32>
    %521 = vector.extract_strided_slice %516 {offsets = [0, 64], sizes = [8, 32], strides = [1, 1]} : vector<8x96xf32> to vector<8x32xf32>
    %522 = arith.mulf %520, %453 : vector<8x32xf32>
    %523 = arith.mulf %519, %518 : vector<8x32xf32>
    %524 = arith.addf %522, %523 : vector<8x32xf32>
    %525 = math.tanh %524 : vector<8x32xf32>
    %526 = arith.mulf %521, %525 : vector<8x32xf32>
    %527 = tpu.concatenate %526, %504 in 1 : vector<8x32xf32>, vector<8x32xf32> -> vector<8x64xf32>
    %c0_201 = arith.constant 0 : index
    %c0_202 = arith.constant 0 : index
    %528 = vector.load %arg10[%c0_201, %c0_202] : memref<64x64xf32, #tpu.memory_space<vmem>>, vector<64x64xf32>
    %cst_203 = arith.constant dense<0.000000e+00> : vector<8x64xf32>
    %529 = tpu.matmul %527, %528, %cst_203 {dimension_numbers = #tpu.dot_dimension_numbers<[1], [0], [0], [1], [0, 0, 1, 1], [], []>} : vector<8x64xf32>, vector<64x64xf32>, vector<8x64xf32> -> vector<8x64xf32>
    %c0_204 = arith.constant 0 : index
    %c0_205 = arith.constant 0 : index
    %530 = vector.load %arg11[%c0_204, %c0_205] : memref<1x64xf32, #tpu.memory_space<vmem>>, vector<1x64xf32>
    %531 = vector.broadcast %530 : vector<1x64xf32> to vector<8x64xf32>
    %532 = arith.addf %529, %531 : vector<8x64xf32>
    %c4_206 = arith.constant 4 : index
    %c0_207 = arith.constant 0 : index
    %c0_208 = arith.constant 0 : index
    %533 = vector.load %arg12[%c4_206, %c0_207, %c0_208] : memref<8x8x64xf32, #tpu.memory_space<vmem>>, vector<1x8x64xf32>
    %534 = vector.shape_cast %533 : vector<1x8x64xf32> to vector<8x64xf32>
    %535 = vector.shape_cast %532 : vector<8x64xf32> to vector<1x8x64xf32>
    tpu.vector_store %arg12[%c4_206, %c0_207, %c0_208], %535 {strides = array<i32>} : memref<8x8x64xf32, #tpu.memory_space<vmem>>, vector<1x8x64xf32>,
    %cst_209 = arith.constant dense<0xFF800000> : vector<8xf32>
    %536 = vector.multi_reduction <maximumf>, %532, %cst_209 [1] : vector<8x64xf32> to vector<8xf32>
    %537 = vector.shape_cast %536 : vector<8xf32> to vector<8x1xf32>
    %538 = vector.broadcast %537 : vector<8x1xf32> to vector<8x64xf32>
    %539 = arith.cmpf oge, %532, %538 : vector<8x64xf32>
    %c64_i32_210 = arith.constant 64 : i32
    %540 = vector.broadcast %c64_i32_210 : i32 to vector<8x64xi32>
    %541 = arith.select %539, %1, %540 : vector<8x64xi1>, vector<8x64xi32>
    %cst_211 = arith.constant dense<2147483647> : vector<8xi32>
    %542 = vector.multi_reduction <minsi>, %541, %cst_211 [1] : vector<8x64xi32> to vector<8xi32>
    %543 = vector.shape_cast %542 : vector<8xi32> to vector<8x1xi32>
    %544 = vector.broadcast %543 : vector<8x1xi32> to vector<8x64xi32>
    %545 = arith.cmpi eq, %1, %544 : vector<8x64xi32>
    %546 = arith.extui %545 : vector<8x64xi1> to vector<8x64xi32>
    %547 = arith.sitofp %546 : vector<8x64xi32> to vector<8x64xf32>
    %c4_212 = arith.constant 4 : index
    %c0_213 = arith.constant 0 : index
    %c0_214 = arith.constant 0 : index
    %548 = vector.load %arg3[%c4_212, %c0_213, %c0_214] : memref<8x8x1xi32, #tpu.memory_space<vmem>>, vector<1x8x1xi32>
    %549 = vector.shape_cast %548 : vector<1x8x1xi32> to vector<8x1xi32>
    %550 = vector.broadcast %549 : vector<8x1xi32> to vector<8x64xi32>
    %551 = arith.cmpi eq, %1, %550 : vector<8x64xi32>
    %552 = arith.extui %551 : vector<8x64xi1> to vector<8x64xi32>
    %553 = arith.sitofp %552 : vector<8x64xi32> to vector<8x64xf32>
    %c3_215 = arith.constant 3 : index
    %554 = memref.load %arg1[%c3_215] : memref<7xi32, #tpu.memory_space<smem>>
    %c0_i32_216 = arith.constant 0 : i32
    %555 = arith.cmpi ne, %554, %c0_i32_216 : i32
    %556 = arith.select %555, %553, %547 : vector<8x64xf32>
    %cst_217 = arith.constant dense<0.000000e+00> : vector<8x16xf32>
    %557 = tpu.matmul %556, %3, %cst_217 {dimension_numbers = #tpu.dot_dimension_numbers<[1], [0], [0], [1], [0, 0, 1, 1], [], []>} : vector<8x64xf32>, vector<64x16xf32>, vector<8x16xf32> -> vector<8x16xf32>
    %558 = vector.shape_cast %526 : vector<8x32xf32> to vector<1x8x32xf32>
    %559 = vector.broadcast %558 : vector<1x8x32xf32> to vector<8x8x32xf32>
    %560 = arith.mulf %262, %559 : vector<8x8x32xf32>
    %cst_218 = arith.constant dense<0.000000e+00> : vector<8x8xf32>
    %561 = vector.multi_reduction <add>, %560, %cst_218 [2] : vector<8x8x32xf32> to vector<8x8xf32>
    %562 = vector.shape_cast %561 : vector<8x8xf32> to vector<8x8x1xf32>
    %cst_219 = arith.constant dense<0xFF800000> : vector<8x1xf32>
    %563 = vector.multi_reduction <maximumf>, %562, %cst_219 [0] : vector<8x8x1xf32> to vector<8x1xf32>
    %564 = vector.shape_cast %563 : vector<8x1xf32> to vector<1x8x1xf32>
    %565 = vector.broadcast %564 : vector<1x8x1xf32> to vector<8x8x1xf32>
    %566 = arith.subf %562, %565 : vector<8x8x1xf32>
    %567 = math.exp %566 : vector<8x8x1xf32>
    %cst_220 = arith.constant dense<0.000000e+00> : vector<8x1xf32>
    %568 = vector.multi_reduction <add>, %567, %cst_220 [0] : vector<8x8x1xf32> to vector<8x1xf32>
    %569 = vector.shape_cast %568 : vector<8x1xf32> to vector<1x8x1xf32>
    %570 = tpu.reciprocal %569 {approx = true} : vector<1x8x1xf32> -> vector<1x8x1xf32>
    %571 = vector.broadcast %570 : vector<1x8x1xf32> to vector<8x8x1xf32>
    %572 = arith.mulf %567, %571 : vector<8x8x1xf32>
    %573 = vector.broadcast %572 : vector<8x8x1xf32> to vector<8x8x32xf32>
    %574 = arith.mulf %573, %262 : vector<8x8x32xf32>
    %cst_221 = arith.constant dense<0.000000e+00> : vector<8x32xf32>
    %575 = vector.multi_reduction <add>, %574, %cst_221 [0] : vector<8x8x32xf32> to vector<8x32xf32>
    %576 = tpu.concatenate %557, %575, %526 in 1 : vector<8x16xf32>, vector<8x32xf32>, vector<8x32xf32> -> vector<8x80xf32>
    %c0_222 = arith.constant 0 : index
    %c0_223 = arith.constant 0 : index
    %577 = vector.load %arg8[%c0_222, %c0_223] : memref<80x128xf32, #tpu.memory_space<vmem>>, vector<80x128xf32>
    %cst_224 = arith.constant dense<0.000000e+00> : vector<8x128xf32>
    %578 = tpu.matmul %576, %577, %cst_224 {dimension_numbers = #tpu.dot_dimension_numbers<[1], [0], [0], [1], [0, 0, 1, 1], [], []>} : vector<8x80xf32>, vector<80x128xf32>, vector<8x128xf32> -> vector<8x128xf32>
    %c0_225 = arith.constant 0 : index
    %c0_226 = arith.constant 0 : index
    %579 = vector.load %arg9[%c0_225, %c0_226] : memref<1x128xf32, #tpu.memory_space<vmem>>, vector<1x128xf32>
    %580 = vector.broadcast %579 : vector<1x128xf32> to vector<8x128xf32>
    %581 = arith.addf %578, %580 : vector<8x128xf32>
    %582 = vector.extract_strided_slice %581 {offsets = [0, 0], sizes = [8, 96], strides = [1, 1]} : vector<8x128xf32> to vector<8x96xf32>
    %583 = arith.negf %582 : vector<8x96xf32>
    %584 = math.exp %583 : vector<8x96xf32>
    %cst_227 = arith.constant 1.000000e+00 : f32
    %585 = vector.broadcast %cst_227 : f32 to vector<8x96xf32>
    %586 = arith.addf %585, %584 : vector<8x96xf32>
    %587 = arith.divf %585, %586 : vector<8x96xf32>
    %588 = vector.extract_strided_slice %581 {offsets = [0, 96], sizes = [8, 32], strides = [1, 1]} : vector<8x128xf32> to vector<8x32xf32>
    %589 = math.tanh %588 : vector<8x32xf32>
    %590 = vector.extract_strided_slice %587 {offsets = [0, 0], sizes = [8, 32], strides = [1, 1]} : vector<8x96xf32> to vector<8x32xf32>
    %591 = vector.extract_strided_slice %587 {offsets = [0, 32], sizes = [8, 32], strides = [1, 1]} : vector<8x96xf32> to vector<8x32xf32>
    %592 = vector.extract_strided_slice %587 {offsets = [0, 64], sizes = [8, 32], strides = [1, 1]} : vector<8x96xf32> to vector<8x32xf32>
    %593 = arith.mulf %591, %524 : vector<8x32xf32>
    %594 = arith.mulf %590, %589 : vector<8x32xf32>
    %595 = arith.addf %593, %594 : vector<8x32xf32>
    %596 = math.tanh %595 : vector<8x32xf32>
    %597 = arith.mulf %592, %596 : vector<8x32xf32>
    %598 = tpu.concatenate %597, %575 in 1 : vector<8x32xf32>, vector<8x32xf32> -> vector<8x64xf32>
    %c0_228 = arith.constant 0 : index
    %c0_229 = arith.constant 0 : index
    %599 = vector.load %arg10[%c0_228, %c0_229] : memref<64x64xf32, #tpu.memory_space<vmem>>, vector<64x64xf32>
    %cst_230 = arith.constant dense<0.000000e+00> : vector<8x64xf32>
    %600 = tpu.matmul %598, %599, %cst_230 {dimension_numbers = #tpu.dot_dimension_numbers<[1], [0], [0], [1], [0, 0, 1, 1], [], []>} : vector<8x64xf32>, vector<64x64xf32>, vector<8x64xf32> -> vector<8x64xf32>
    %c0_231 = arith.constant 0 : index
    %c0_232 = arith.constant 0 : index
    %601 = vector.load %arg11[%c0_231, %c0_232] : memref<1x64xf32, #tpu.memory_space<vmem>>, vector<1x64xf32>
    %602 = vector.broadcast %601 : vector<1x64xf32> to vector<8x64xf32>
    %603 = arith.addf %600, %602 : vector<8x64xf32>
    %c5_233 = arith.constant 5 : index
    %c0_234 = arith.constant 0 : index
    %c0_235 = arith.constant 0 : index
    %604 = vector.load %arg12[%c5_233, %c0_234, %c0_235] : memref<8x8x64xf32, #tpu.memory_space<vmem>>, vector<1x8x64xf32>
    %605 = vector.shape_cast %604 : vector<1x8x64xf32> to vector<8x64xf32>
    %606 = vector.shape_cast %603 : vector<8x64xf32> to vector<1x8x64xf32>
    tpu.vector_store %arg12[%c5_233, %c0_234, %c0_235], %606 {strides = array<i32>} : memref<8x8x64xf32, #tpu.memory_space<vmem>>, vector<1x8x64xf32>,
    %cst_236 = arith.constant dense<0xFF800000> : vector<8xf32>
    %607 = vector.multi_reduction <maximumf>, %603, %cst_236 [1] : vector<8x64xf32> to vector<8xf32>
    %608 = vector.shape_cast %607 : vector<8xf32> to vector<8x1xf32>
    %609 = vector.broadcast %608 : vector<8x1xf32> to vector<8x64xf32>
    %610 = arith.cmpf oge, %603, %609 : vector<8x64xf32>
    %c64_i32_237 = arith.constant 64 : i32
    %611 = vector.broadcast %c64_i32_237 : i32 to vector<8x64xi32>
    %612 = arith.select %610, %1, %611 : vector<8x64xi1>, vector<8x64xi32>
    %cst_238 = arith.constant dense<2147483647> : vector<8xi32>
    %613 = vector.multi_reduction <minsi>, %612, %cst_238 [1] : vector<8x64xi32> to vector<8xi32>
    %614 = vector.shape_cast %613 : vector<8xi32> to vector<8x1xi32>
    %615 = vector.broadcast %614 : vector<8x1xi32> to vector<8x64xi32>
    %616 = arith.cmpi eq, %1, %615 : vector<8x64xi32>
    %617 = arith.extui %616 : vector<8x64xi1> to vector<8x64xi32>
    %618 = arith.sitofp %617 : vector<8x64xi32> to vector<8x64xf32>
    %c5_239 = arith.constant 5 : index
    %c0_240 = arith.constant 0 : index
    %c0_241 = arith.constant 0 : index
    %619 = vector.load %arg3[%c5_239, %c0_240, %c0_241] : memref<8x8x1xi32, #tpu.memory_space<vmem>>, vector<1x8x1xi32>
    %620 = vector.shape_cast %619 : vector<1x8x1xi32> to vector<8x1xi32>
    %621 = vector.broadcast %620 : vector<8x1xi32> to vector<8x64xi32>
    %622 = arith.cmpi eq, %1, %621 : vector<8x64xi32>
    %623 = arith.extui %622 : vector<8x64xi1> to vector<8x64xi32>
    %624 = arith.sitofp %623 : vector<8x64xi32> to vector<8x64xf32>
    %c4_242 = arith.constant 4 : index
    %625 = memref.load %arg1[%c4_242] : memref<7xi32, #tpu.memory_space<smem>>
    %c0_i32_243 = arith.constant 0 : i32
    %626 = arith.cmpi ne, %625, %c0_i32_243 : i32
    %627 = arith.select %626, %624, %618 : vector<8x64xf32>
    %cst_244 = arith.constant dense<0.000000e+00> : vector<8x16xf32>
    %628 = tpu.matmul %627, %3, %cst_244 {dimension_numbers = #tpu.dot_dimension_numbers<[1], [0], [0], [1], [0, 0, 1, 1], [], []>} : vector<8x64xf32>, vector<64x16xf32>, vector<8x16xf32> -> vector<8x16xf32>
    %629 = vector.shape_cast %597 : vector<8x32xf32> to vector<1x8x32xf32>
    %630 = vector.broadcast %629 : vector<1x8x32xf32> to vector<8x8x32xf32>
    %631 = arith.mulf %262, %630 : vector<8x8x32xf32>
    %cst_245 = arith.constant dense<0.000000e+00> : vector<8x8xf32>
    %632 = vector.multi_reduction <add>, %631, %cst_245 [2] : vector<8x8x32xf32> to vector<8x8xf32>
    %633 = vector.shape_cast %632 : vector<8x8xf32> to vector<8x8x1xf32>
    %cst_246 = arith.constant dense<0xFF800000> : vector<8x1xf32>
    %634 = vector.multi_reduction <maximumf>, %633, %cst_246 [0] : vector<8x8x1xf32> to vector<8x1xf32>
    %635 = vector.shape_cast %634 : vector<8x1xf32> to vector<1x8x1xf32>
    %636 = vector.broadcast %635 : vector<1x8x1xf32> to vector<8x8x1xf32>
    %637 = arith.subf %633, %636 : vector<8x8x1xf32>
    %638 = math.exp %637 : vector<8x8x1xf32>
    %cst_247 = arith.constant dense<0.000000e+00> : vector<8x1xf32>
    %639 = vector.multi_reduction <add>, %638, %cst_247 [0] : vector<8x8x1xf32> to vector<8x1xf32>
    %640 = vector.shape_cast %639 : vector<8x1xf32> to vector<1x8x1xf32>
    %641 = tpu.reciprocal %640 {approx = true} : vector<1x8x1xf32> -> vector<1x8x1xf32>
    %642 = vector.broadcast %641 : vector<1x8x1xf32> to vector<8x8x1xf32>
    %643 = arith.mulf %638, %642 : vector<8x8x1xf32>
    %644 = vector.broadcast %643 : vector<8x8x1xf32> to vector<8x8x32xf32>
    %645 = arith.mulf %644, %262 : vector<8x8x32xf32>
    %cst_248 = arith.constant dense<0.000000e+00> : vector<8x32xf32>
    %646 = vector.multi_reduction <add>, %645, %cst_248 [0] : vector<8x8x32xf32> to vector<8x32xf32>
    %647 = tpu.concatenate %628, %646, %597 in 1 : vector<8x16xf32>, vector<8x32xf32>, vector<8x32xf32> -> vector<8x80xf32>
    %c0_249 = arith.constant 0 : index
    %c0_250 = arith.constant 0 : index
    %648 = vector.load %arg8[%c0_249, %c0_250] : memref<80x128xf32, #tpu.memory_space<vmem>>, vector<80x128xf32>
    %cst_251 = arith.constant dense<0.000000e+00> : vector<8x128xf32>
    %649 = tpu.matmul %647, %648, %cst_251 {dimension_numbers = #tpu.dot_dimension_numbers<[1], [0], [0], [1], [0, 0, 1, 1], [], []>} : vector<8x80xf32>, vector<80x128xf32>, vector<8x128xf32> -> vector<8x128xf32>
    %c0_252 = arith.constant 0 : index
    %c0_253 = arith.constant 0 : index
    %650 = vector.load %arg9[%c0_252, %c0_253] : memref<1x128xf32, #tpu.memory_space<vmem>>, vector<1x128xf32>
    %651 = vector.broadcast %650 : vector<1x128xf32> to vector<8x128xf32>
    %652 = arith.addf %649, %651 : vector<8x128xf32>
    %653 = vector.extract_strided_slice %652 {offsets = [0, 0], sizes = [8, 96], strides = [1, 1]} : vector<8x128xf32> to vector<8x96xf32>
    %654 = arith.negf %653 : vector<8x96xf32>
    %655 = math.exp %654 : vector<8x96xf32>
    %cst_254 = arith.constant 1.000000e+00 : f32
    %656 = vector.broadcast %cst_254 : f32 to vector<8x96xf32>
    %657 = arith.addf %656, %655 : vector<8x96xf32>
    %658 = arith.divf %656, %657 : vector<8x96xf32>
    %659 = vector.extract_strided_slice %652 {offsets = [0, 96], sizes = [8, 32], strides = [1, 1]} : vector<8x128xf32> to vector<8x32xf32>
    %660 = math.tanh %659 : vector<8x32xf32>
    %661 = vector.extract_strided_slice %658 {offsets = [0, 0], sizes = [8, 32], strides = [1, 1]} : vector<8x96xf32> to vector<8x32xf32>
    %662 = vector.extract_strided_slice %658 {offsets = [0, 32], sizes = [8, 32], strides = [1, 1]} : vector<8x96xf32> to vector<8x32xf32>
    %663 = vector.extract_strided_slice %658 {offsets = [0, 64], sizes = [8, 32], strides = [1, 1]} : vector<8x96xf32> to vector<8x32xf32>
    %664 = arith.mulf %662, %595 : vector<8x32xf32>
    %665 = arith.mulf %661, %660 : vector<8x32xf32>
    %666 = arith.addf %664, %665 : vector<8x32xf32>
    %667 = math.tanh %666 : vector<8x32xf32>
    %668 = arith.mulf %663, %667 : vector<8x32xf32>
    %669 = tpu.concatenate %668, %646 in 1 : vector<8x32xf32>, vector<8x32xf32> -> vector<8x64xf32>
    %c0_255 = arith.constant 0 : index
    %c0_256 = arith.constant 0 : index
    %670 = vector.load %arg10[%c0_255, %c0_256] : memref<64x64xf32, #tpu.memory_space<vmem>>, vector<64x64xf32>
    %cst_257 = arith.constant dense<0.000000e+00> : vector<8x64xf32>
    %671 = tpu.matmul %669, %670, %cst_257 {dimension_numbers = #tpu.dot_dimension_numbers<[1], [0], [0], [1], [0, 0, 1, 1], [], []>} : vector<8x64xf32>, vector<64x64xf32>, vector<8x64xf32> -> vector<8x64xf32>
    %c0_258 = arith.constant 0 : index
    %c0_259 = arith.constant 0 : index
    %672 = vector.load %arg11[%c0_258, %c0_259] : memref<1x64xf32, #tpu.memory_space<vmem>>, vector<1x64xf32>
    %673 = vector.broadcast %672 : vector<1x64xf32> to vector<8x64xf32>
    %674 = arith.addf %671, %673 : vector<8x64xf32>
    %c6_260 = arith.constant 6 : index
    %c0_261 = arith.constant 0 : index
    %c0_262 = arith.constant 0 : index
    %675 = vector.load %arg12[%c6_260, %c0_261, %c0_262] : memref<8x8x64xf32, #tpu.memory_space<vmem>>, vector<1x8x64xf32>
    %676 = vector.shape_cast %675 : vector<1x8x64xf32> to vector<8x64xf32>
    %677 = vector.shape_cast %674 : vector<8x64xf32> to vector<1x8x64xf32>
    tpu.vector_store %arg12[%c6_260, %c0_261, %c0_262], %677 {strides = array<i32>} : memref<8x8x64xf32, #tpu.memory_space<vmem>>, vector<1x8x64xf32>,
    %cst_263 = arith.constant dense<0xFF800000> : vector<8xf32>
    %678 = vector.multi_reduction <maximumf>, %674, %cst_263 [1] : vector<8x64xf32> to vector<8xf32>
    %679 = vector.shape_cast %678 : vector<8xf32> to vector<8x1xf32>
    %680 = vector.broadcast %679 : vector<8x1xf32> to vector<8x64xf32>
    %681 = arith.cmpf oge, %674, %680 : vector<8x64xf32>
    %c64_i32_264 = arith.constant 64 : i32
    %682 = vector.broadcast %c64_i32_264 : i32 to vector<8x64xi32>
    %683 = arith.select %681, %1, %682 : vector<8x64xi1>, vector<8x64xi32>
    %cst_265 = arith.constant dense<2147483647> : vector<8xi32>
    %684 = vector.multi_reduction <minsi>, %683, %cst_265 [1] : vector<8x64xi32> to vector<8xi32>
    %685 = vector.shape_cast %684 : vector<8xi32> to vector<8x1xi32>
    %686 = vector.broadcast %685 : vector<8x1xi32> to vector<8x64xi32>
    %687 = arith.cmpi eq, %1, %686 : vector<8x64xi32>
    %688 = arith.extui %687 : vector<8x64xi1> to vector<8x64xi32>
    %689 = arith.sitofp %688 : vector<8x64xi32> to vector<8x64xf32>
    %c6_266 = arith.constant 6 : index
    %c0_267 = arith.constant 0 : index
    %c0_268 = arith.constant 0 : index
    %690 = vector.load %arg3[%c6_266, %c0_267, %c0_268] : memref<8x8x1xi32, #tpu.memory_space<vmem>>, vector<1x8x1xi32>
    %691 = vector.shape_cast %690 : vector<1x8x1xi32> to vector<8x1xi32>
    %692 = vector.broadcast %691 : vector<8x1xi32> to vector<8x64xi32>
    %693 = arith.cmpi eq, %1, %692 : vector<8x64xi32>
    %694 = arith.extui %693 : vector<8x64xi1> to vector<8x64xi32>
    %695 = arith.sitofp %694 : vector<8x64xi32> to vector<8x64xf32>
    %c5_269 = arith.constant 5 : index
    %696 = memref.load %arg1[%c5_269] : memref<7xi32, #tpu.memory_space<smem>>
    %c0_i32_270 = arith.constant 0 : i32
    %697 = arith.cmpi ne, %696, %c0_i32_270 : i32
    %698 = arith.select %697, %695, %689 : vector<8x64xf32>
    %cst_271 = arith.constant dense<0.000000e+00> : vector<8x16xf32>
    %699 = tpu.matmul %698, %3, %cst_271 {dimension_numbers = #tpu.dot_dimension_numbers<[1], [0], [0], [1], [0, 0, 1, 1], [], []>} : vector<8x64xf32>, vector<64x16xf32>, vector<8x16xf32> -> vector<8x16xf32>
    %700 = vector.shape_cast %668 : vector<8x32xf32> to vector<1x8x32xf32>
    %701 = vector.broadcast %700 : vector<1x8x32xf32> to vector<8x8x32xf32>
    %702 = arith.mulf %262, %701 : vector<8x8x32xf32>
    %cst_272 = arith.constant dense<0.000000e+00> : vector<8x8xf32>
    %703 = vector.multi_reduction <add>, %702, %cst_272 [2] : vector<8x8x32xf32> to vector<8x8xf32>
    %704 = vector.shape_cast %703 : vector<8x8xf32> to vector<8x8x1xf32>
    %cst_273 = arith.constant dense<0xFF800000> : vector<8x1xf32>
    %705 = vector.multi_reduction <maximumf>, %704, %cst_273 [0] : vector<8x8x1xf32> to vector<8x1xf32>
    %706 = vector.shape_cast %705 : vector<8x1xf32> to vector<1x8x1xf32>
    %707 = vector.broadcast %706 : vector<1x8x1xf32> to vector<8x8x1xf32>
    %708 = arith.subf %704, %707 : vector<8x8x1xf32>
    %709 = math.exp %708 : vector<8x8x1xf32>
    %cst_274 = arith.constant dense<0.000000e+00> : vector<8x1xf32>
    %710 = vector.multi_reduction <add>, %709, %cst_274 [0] : vector<8x8x1xf32> to vector<8x1xf32>
    %711 = vector.shape_cast %710 : vector<8x1xf32> to vector<1x8x1xf32>
    %712 = tpu.reciprocal %711 {approx = true} : vector<1x8x1xf32> -> vector<1x8x1xf32>
    %713 = vector.broadcast %712 : vector<1x8x1xf32> to vector<8x8x1xf32>
    %714 = arith.mulf %709, %713 : vector<8x8x1xf32>
    %715 = vector.broadcast %714 : vector<8x8x1xf32> to vector<8x8x32xf32>
    %716 = arith.mulf %715, %262 : vector<8x8x32xf32>
    %cst_275 = arith.constant dense<0.000000e+00> : vector<8x32xf32>
    %717 = vector.multi_reduction <add>, %716, %cst_275 [0] : vector<8x8x32xf32> to vector<8x32xf32>
    %718 = tpu.concatenate %699, %717, %668 in 1 : vector<8x16xf32>, vector<8x32xf32>, vector<8x32xf32> -> vector<8x80xf32>
    %c0_276 = arith.constant 0 : index
    %c0_277 = arith.constant 0 : index
    %719 = vector.load %arg8[%c0_276, %c0_277] : memref<80x128xf32, #tpu.memory_space<vmem>>, vector<80x128xf32>
    %cst_278 = arith.constant dense<0.000000e+00> : vector<8x128xf32>
    %720 = tpu.matmul %718, %719, %cst_278 {dimension_numbers = #tpu.dot_dimension_numbers<[1], [0], [0], [1], [0, 0, 1, 1], [], []>} : vector<8x80xf32>, vector<80x128xf32>, vector<8x128xf32> -> vector<8x128xf32>
    %c0_279 = arith.constant 0 : index
    %c0_280 = arith.constant 0 : index
    %721 = vector.load %arg9[%c0_279, %c0_280] : memref<1x128xf32, #tpu.memory_space<vmem>>, vector<1x128xf32>
    %722 = vector.broadcast %721 : vector<1x128xf32> to vector<8x128xf32>
    %723 = arith.addf %720, %722 : vector<8x128xf32>
    %724 = vector.extract_strided_slice %723 {offsets = [0, 0], sizes = [8, 96], strides = [1, 1]} : vector<8x128xf32> to vector<8x96xf32>
    %725 = arith.negf %724 : vector<8x96xf32>
    %726 = math.exp %725 : vector<8x96xf32>
    %cst_281 = arith.constant 1.000000e+00 : f32
    %727 = vector.broadcast %cst_281 : f32 to vector<8x96xf32>
    %728 = arith.addf %727, %726 : vector<8x96xf32>
    %729 = arith.divf %727, %728 : vector<8x96xf32>
    %730 = vector.extract_strided_slice %723 {offsets = [0, 96], sizes = [8, 32], strides = [1, 1]} : vector<8x128xf32> to vector<8x32xf32>
    %731 = math.tanh %730 : vector<8x32xf32>
    %732 = vector.extract_strided_slice %729 {offsets = [0, 0], sizes = [8, 32], strides = [1, 1]} : vector<8x96xf32> to vector<8x32xf32>
    %733 = vector.extract_strided_slice %729 {offsets = [0, 32], sizes = [8, 32], strides = [1, 1]} : vector<8x96xf32> to vector<8x32xf32>
    %734 = vector.extract_strided_slice %729 {offsets = [0, 64], sizes = [8, 32], strides = [1, 1]} : vector<8x96xf32> to vector<8x32xf32>
    %735 = arith.mulf %733, %666 : vector<8x32xf32>
    %736 = arith.mulf %732, %731 : vector<8x32xf32>
    %737 = arith.addf %735, %736 : vector<8x32xf32>
    %738 = math.tanh %737 : vector<8x32xf32>
    %739 = arith.mulf %734, %738 : vector<8x32xf32>
    %740 = tpu.concatenate %739, %717 in 1 : vector<8x32xf32>, vector<8x32xf32> -> vector<8x64xf32>
    %c0_282 = arith.constant 0 : index
    %c0_283 = arith.constant 0 : index
    %741 = vector.load %arg10[%c0_282, %c0_283] : memref<64x64xf32, #tpu.memory_space<vmem>>, vector<64x64xf32>
    %cst_284 = arith.constant dense<0.000000e+00> : vector<8x64xf32>
    %742 = tpu.matmul %740, %741, %cst_284 {dimension_numbers = #tpu.dot_dimension_numbers<[1], [0], [0], [1], [0, 0, 1, 1], [], []>} : vector<8x64xf32>, vector<64x64xf32>, vector<8x64xf32> -> vector<8x64xf32>
    %c0_285 = arith.constant 0 : index
    %c0_286 = arith.constant 0 : index
    %743 = vector.load %arg11[%c0_285, %c0_286] : memref<1x64xf32, #tpu.memory_space<vmem>>, vector<1x64xf32>
    %744 = vector.broadcast %743 : vector<1x64xf32> to vector<8x64xf32>
    %745 = arith.addf %742, %744 : vector<8x64xf32>
    %c7_287 = arith.constant 7 : index
    %c0_288 = arith.constant 0 : index
    %c0_289 = arith.constant 0 : index
    %746 = vector.load %arg12[%c7_287, %c0_288, %c0_289] : memref<8x8x64xf32, #tpu.memory_space<vmem>>, vector<1x8x64xf32>
    %747 = vector.shape_cast %746 : vector<1x8x64xf32> to vector<8x64xf32>
    %748 = vector.shape_cast %745 : vector<8x64xf32> to vector<1x8x64xf32>
    tpu.vector_store %arg12[%c7_287, %c0_288, %c0_289], %748 {strides = array<i32>} : memref<8x8x64xf32, #tpu.memory_space<vmem>>, vector<1x8x64xf32>,
    return
  }
  func.func @transform_0(%arg0: i32, %arg1: memref<7xi32, #tpu.memory_space<smem>>) -> (i32, i32, i32) {
    %c0_i32 = arith.constant 0 : i32
    %c0_i32_0 = arith.constant 0 : i32
    %c0_i32_1 = arith.constant 0 : i32
    %c0_i32_2 = arith.constant 0 : i32
    return %c0_i32, %c0_i32_0, %c0_i32_1 : i32, i32, i32
  }
  func.func @transform_1(%arg0: i32, %arg1: memref<7xi32, #tpu.memory_space<smem>>) -> (i32, i32, i32) {
    %c0_i32 = arith.constant 0 : i32
    %c0_i32_0 = arith.constant 0 : i32
    %c0_i32_1 = arith.constant 0 : i32
    %c0_i32_2 = arith.constant 0 : i32
    return %c0_i32, %c0_i32_0, %c0_i32_1 : i32, i32, i32
  }
  func.func @transform_2(%arg0: i32, %arg1: memref<7xi32, #tpu.memory_space<smem>>) -> (i32, i32) {
    %c0_i32 = arith.constant 0 : i32
    %c0_i32_0 = arith.constant 0 : i32
    %c0_i32_1 = arith.constant 0 : i32
    return %c0_i32, %c0_i32_0 : i32, i32
  }
  func.func @transform_3(%arg0: i32, %arg1: memref<7xi32, #tpu.memory_space<smem>>) -> (i32, i32) {
    %c0_i32 = arith.constant 0 : i32
    %c0_i32_0 = arith.constant 0 : i32
    %c0_i32_1 = arith.constant 0 : i32
    return %c0_i32, %c0_i32_0 : i32, i32
  }
  func.func @transform_4(%arg0: i32, %arg1: memref<7xi32, #tpu.memory_space<smem>>) -> (i32, i32) {
    %c0_i32 = arith.constant 0 : i32
    %c0_i32_0 = arith.constant 0 : i32
    %c0_i32_1 = arith.constant 0 : i32
    return %c0_i32, %c0_i32_0 : i32, i32
  }
  func.func @transform_5(%arg0: i32, %arg1: memref<7xi32, #tpu.memory_space<smem>>) -> (i32, i32) {
    %c0_i32 = arith.constant 0 : i32
    %c0_i32_0 = arith.constant 0 : i32
    %c0_i32_1 = arith.constant 0 : i32
    return %c0_i32, %c0_i32_0 : i32, i32
  }
  func.func @transform_6(%arg0: i32, %arg1: memref<7xi32, #tpu.memory_space<smem>>) -> (i32, i32) {
    %c0_i32 = arith.constant 0 : i32
    %c0_i32_0 = arith.constant 0 : i32
    %c0_i32_1 = arith.constant 0 : i32
    return %c0_i32, %c0_i32_0 : i32, i32
  }
  func.func @transform_7(%arg0: i32, %arg1: memref<7xi32, #tpu.memory_space<smem>>) -> (i32, i32) {
    %c0_i32 = arith.constant 0 : i32
    %c0_i32_0 = arith.constant 0 : i32
    %c0_i32_1 = arith.constant 0 : i32
    return %c0_i32, %c0_i32_0 : i32, i32
  }
  func.func @transform_8(%arg0: i32, %arg1: memref<7xi32, #tpu.memory_space<smem>>) -> (i32, i32) {
    %c0_i32 = arith.constant 0 : i32
    %c0_i32_0 = arith.constant 0 : i32
    %c0_i32_1 = arith.constant 0 : i32
    return %c0_i32, %c0_i32_0 : i32, i32
  }
  func.func @transform_9(%arg0: i32, %arg1: memref<7xi32, #tpu.memory_space<smem>>) -> (i32, i32) {
    %c0_i32 = arith.constant 0 : i32
    %c0_i32_0 = arith.constant 0 : i32
    %c0_i32_1 = arith.constant 0 : i32
    return %c0_i32, %c0_i32_0 : i32, i32
  }
  func.func @transform_10(%arg0: i32, %arg1: memref<7xi32, #tpu.memory_space<smem>>) -> (i32, i32, i32) {
    %c0_i32 = arith.constant 0 : i32
    %c0_i32_0 = arith.constant 0 : i32
    %c0_i32_1 = arith.constant 0 : i32
    %c0_i32_2 = arith.constant 0 : i32
    return %c0_i32, %c0_i32_0, %c0_i32_1 : i32, i32, i32
  }
}

</mosaic_0001>

<llo_original>
// kernel: seq2seq_forward.1
$region0: #{seq2seq_forward.1}
  #allocation0 [shape = 'u32[]', space=smem, size = 0x4, offset = 0x4, fixed_abs, tag = 'smem constant byte address 0x4 - core index']
  #allocation1 [shape = 'u32[144,128]{1,0:T(1,128)}', space=vmem, size = 0x12000, scoped, tag = 'internal scratch']
  #allocation2 [shape = 'f32[8,8,32]{2,1,0:T(8,128)}', space=vmem, size = 0x8000, scoped, tag = 'scratch operand']
  #allocation3 [shape = 's32[1]{0}', space=sflag, size = 0x4, scoped, tag = 'scoped memory for seq2seq_forward.1']
  #allocation4 [shape = 'u8[512]{0}', space=smem, size = 0x200, scoped, tag = 'prefetched SMEM operand 0']
  %s0 = inlined_call_operand.vmem [shape: s32[7], index: 0, kind: input, shape index: {}]
  %s1 = inlined_call_operand.vmem [shape: s32[8,8,1], index: 1, kind: input, shape index: {}]
  %s2 = inlined_call_operand.vmem [shape: s32[8,8,1], index: 2, kind: input, shape index: {}]
  %s3 = inlined_call_operand.vmem [shape: f32[48,16], index: 3, kind: input, shape index: {}]
  %s4 = inlined_call_operand.vmem [shape: f32[48,128], index: 4, kind: input, shape index: {}]
  %s5 = inlined_call_operand.vmem [shape: f32[1,128], index: 5, kind: input, shape index: {}]
  %s6 = inlined_call_operand.vmem [shape: f32[64,16], index: 6, kind: input, shape index: {}]
  %s7 = inlined_call_operand.vmem [shape: f32[80,128], index: 7, kind: input, shape index: {}]
  %s8 = inlined_call_operand.vmem [shape: f32[1,128], index: 8, kind: input, shape index: {}]
  %s9 = inlined_call_operand.vmem [shape: f32[64,64], index: 9, kind: input, shape index: {}]
  %s10 = inlined_call_operand.vmem [shape: f32[1,64], index: 10, kind: input, shape index: {}]
  %s11 = inlined_call_operand.vmem [shape: f32[8,8,64], index: 11, kind: output, shape index: {}]
  %s12 = sld [smem:[#allocation0]]
  $region50: #{seq2seq_forward.1} parent=0
    _
  %s14 = ssub.s32 1, %s12
  %s15 = scalar_select 0, %s14, %s12
  %s16 = sshll.u32 %s0, 4
  %s17 = int_to_ptr.vmem [resolvable:$true] %s16
  %19 = dma.vmem_to_smem %s17, 16, [#allocation4], [#allocation3]
  %20 = dma.done [#allocation3], 16
  %21 = sfence
  // Predicated region
  $region2: #{seq2seq_forward.1} parent=0 // pred_check
    _
  $region3: #{seq2seq_forward.1} parent=0 // pred_check_branch
    %23 = sbr.rel (0) target = $region5
  $region4: #{seq2seq_forward.1} parent=0 // pred_region
    _
  $region5: #{seq2seq_forward.1} parent=0 // pred_fallthru
    _
  // Predicated region
  $region6: #{seq2seq_forward.1} parent=0 // pred_check
    _
  $region7: #{seq2seq_forward.1} parent=0 // pred_check_branch
    %25 = sbr.rel (0) target = $region9
  $region8: #{seq2seq_forward.1} parent=0 // pred_region
    _
  $region9: #{seq2seq_forward.1} parent=0 // pred_fallthru
    _
  // Predicated region
  $region10: #{seq2seq_forward.1} parent=0 // pred_check
    _
  $region11: #{seq2seq_forward.1} parent=0 // pred_check_branch
    %27 = sbr.rel (0) target = $region13
  $region12: #{seq2seq_forward.1} parent=0 // pred_region
    _
  $region13: #{seq2seq_forward.1} parent=0 // pred_fallthru
    _
  // Predicated region
  $region14: #{seq2seq_forward.1} parent=0 // pred_check
    _
  $region15: #{seq2seq_forward.1} parent=0 // pred_check_branch
    %29 = sbr.rel (0) target = $region17
  $region16: #{seq2seq_forward.1} parent=0 // pred_region
    _
  $region17: #{seq2seq_forward.1} parent=0 // pred_fallthru
    _
  // Predicated region
  $region18: #{seq2seq_forward.1} parent=0 // pred_check
    _
  $region19: #{seq2seq_forward.1} parent=0 // pred_check_branch
    %31 = sbr.rel (0) target = $region21
  $region20: #{seq2seq_forward.1} parent=0 // pred_region
    _
  $region21: #{seq2seq_forward.1} parent=0 // pred_fallthru
    _
  // Predicated region
  $region22: #{seq2seq_forward.1} parent=0 // pred_check
    _
  $region23: #{seq2seq_forward.1} parent=0 // pred_check_branch
    %33 = sbr.rel (0) target = $region25
  $region24: #{seq2seq_forward.1} parent=0 // pred_region
    _
  $region25: #{seq2seq_forward.1} parent=0 // pred_fallthru
    _
  // Predicated region
  $region26: #{seq2seq_forward.1} parent=0 // pred_check
    _
  $region27: #{seq2seq_forward.1} parent=0 // pred_check_branch
    %35 = sbr.rel (0) target = $region29
  $region28: #{seq2seq_forward.1} parent=0 // pred_region
    _
  $region29: #{seq2seq_forward.1} parent=0 // pred_fallthru
    _
  // Predicated region
  $region30: #{seq2seq_forward.1} parent=0 // pred_check
    _
  $region31: #{seq2seq_forward.1} parent=0 // pred_check_branch
    %37 = sbr.rel (0) target = $region33
  $region32: #{seq2seq_forward.1} parent=0 // pred_region
    _
  $region33: #{seq2seq_forward.1} parent=0 // pred_fallthru
    _
  // Predicated region
  $region34: #{seq2seq_forward.1} parent=0 // pred_check
    _
  $region35: #{seq2seq_forward.1} parent=0 // pred_check_branch
    %39 = sbr.rel (0) target = $region37
  $region36: #{seq2seq_forward.1} parent=0 // pred_region
    _
  $region37: #{seq2seq_forward.1} parent=0 // pred_fallthru
    _
  // Predicated region
  $region38: #{seq2seq_forward.1} parent=0 // pred_check
    _
  $region39: #{seq2seq_forward.1} parent=0 // pred_check_branch
    %41 = sbr.rel (0) target = $region41
  $region40: #{seq2seq_forward.1} parent=0 // pred_region
    _
  $region41: #{seq2seq_forward.1} parent=0 // pred_fallthru
    _
  %v42 = vlaneseq
  %v43 = vand.u32 %v42, 127
  %v44 = vld [vmem:[%s3] sm:$0xff]
  %v45 = vld [vmem:[%s3 + $0x8] sm:$0xff]
  %v46 = vld [vmem:[%s3 + $0x10] sm:$0xff]
  %v47 = vld [vmem:[%s3 + $0x18] sm:$0xff]
  %v48 = vld [vmem:[%s3 + $0x20] sm:$0xff]
  %v49 = vld [vmem:[%s3 + $0x28] sm:$0xff]
  %v50 = vld [vmem:[%s6] sm:$0xff]
  %v51 = vld [vmem:[%s6 + $0x8] sm:$0xff]
  %v52 = vld [vmem:[%s6 + $0x10] sm:$0xff]
  %v53 = vld [vmem:[%s6 + $0x18] sm:$0xff]
  %v54 = vld [vmem:[%s6 + $0x20] sm:$0xff]
  %v55 = vld [vmem:[%s6 + $0x28] sm:$0xff]
  %v56 = vld [vmem:[%s6 + $0x30] sm:$0xff]
  %v57 = vld [vmem:[%s6 + $0x38] sm:$0xff]
  %v58 = vld [vmem:[%s1] sm:$0xff]
  %59 = vset.pattern.permute.xlu0 0
  %60 = vperm.xlu0 %59, %v58
  %v61 = vpop.permute.xlu0 %60
  %vm62 = vcmp.eq.s32.totalorder %v43, %v61
  %v63 = vsel %vm62, 1, 0
  %v64 = vcvt.s32.f32 %v63
  %vm65 = vcmask 392192
  %v67 = vsel %vm65, %v64, 0
  %69 = vmatprep.subr.mxu0 0.0
  %70 = vmatpush1.msra.mxu0 %v44
  %71 = vmatprep.subr.mxu0 0.0
  %72 = vmatpush1.msra.mxu0 %v45
  %73 = vmatprep.subr.mxu0 0.0
  %74 = vmatpush1.msra.mxu0 %v46
  %75 = vmatprep.subr.mxu0 0.0
  %76 = vmatpush1.msra.mxu0 %v47
  %77 = vmatprep.subr.mxu0 0.0
  %78 = vmatpush1.msra.mxu0 %v48
  %79 = vmatprep.subr.mxu0 0.0
  %80 = vmatpush1.msra.mxu0 %v49
  %81 = vmatprep.subr.mxu0 0.0
  %82 = vmatpush1.msra.mxu0 0.0
  %83 = vmatprep.subr.mxu0 0.0
  %84 = vmatpush1.msra.mxu0 0.0
  %85 = vmatprep.subr.mxu0 0.0
  %86 = vmatpush1.msra.mxu0 0.0
  %87 = vmatprep.subr.mxu0 0.0
  %88 = vmatpush1.msra.mxu0 0.0
  %89 = vmatprep.subr.mxu0 0.0
  %90 = vmatpush1.msra.mxu0 0.0
  %91 = vmatprep.subr.mxu0 0.0
  %92 = vmatpush1.msra.mxu0 0.0
  %93 = vmatprep.subr.mxu0 0.0
  %94 = vmatpush1.msra.mxu0 0.0
  %95 = vmatprep.subr.mxu0 0.0
  %96 = vmatpush1.msra.mxu0 0.0
  %97 = vmatprep.subr.mxu0 0.0
  %98 = vmatpush1.msra.mxu0 0.0
  %99 = vmatprep.subr.mxu0 0.0
  %100 = vmatpush1.msra.mxu0 0.0
  %101 = vmatprep.subr.mxu0 0.0
  %102 = vmatpush1.msra.mxu0 0.0
  %103 = vmatprep.subr.mxu0 0.0
  %104 = vmatpush1.msra.mxu0 0.0
  %105 = vmatprep.subr.mxu0 0.0
  %106 = vmatpush1.msra.mxu0 0.0
  %107 = vmatprep.subr.mxu0 0.0
  %108 = vmatpush1.msra.mxu0 0.0
  %109 = vmatprep.subr.mxu0 0.0
  %110 = vmatpush1.msra.mxu0 0.0
  %111 = vmatprep.subr.mxu0 0.0
  %112 = vmatpush1.msra.mxu0 0.0
  %113 = vmatprep.subr.mxu0 0.0
  %114 = vmatpush1.msra.mxu0 0.0
  %115 = vmatprep.subr.mxu0 0.0
  %116 = vmatpush1.msra.mxu0 0.0
  %117 = vmatprep.subr.mxu0 0.0
  %118 = vmatpush1.msra.mxu0 0.0
  %119 = vmatprep.subr.mxu0 0.0
  %120 = vmatpush1.msra.mxu0 0.0
  %121 = vmatprep.subr.mxu0 0.0
  %122 = vmatpush1.msra.mxu0 0.0
  %123 = vmatprep.subr.mxu0 0.0
  %124 = vmatpush1.msra.mxu0 0.0
  %125 = vmatprep.subr.mxu0 0.0
  %126 = vmatpush1.msra.mxu0 0.0
  %127 = vmatprep.subr.mxu0 0.0
  %128 = vmatpush1.msra.mxu0 0.0
  %129 = vmatprep.subr.mxu0 0.0
  %130 = vmatpush1.msra.mxu0 0.0
  %131 = vmatprep.subr.mxu0 0.0
  %132 = vmatpush1.msra.mxu0 0.0
  %133 = vmatprep.mubr.f32.mxu0 0.0
  %134 = vmatmul.mubr.f32.gmra.mrb[0].mxu0 %v67
  %v135 = vpop.f32.mrb[0].mxu0
  %v136 = vadd.f32 0.0, %v135
  %v137 = vpop.f32.mrb[0].mxu0
  %138 = vdwg.mxu0
  %vm139 = vcmask 130048
  %v140 = vsel %vm139, %v136, 0.0
  %v141 = vld [vmem:[%s4] sm:$0xff]
  %v142 = vld [vmem:[%s4 + $0x8] sm:$0xff]
  %v143 = vld [vmem:[%s4 + $0x10] sm:$0xff]
  %v144 = vld [vmem:[%s4 + $0x18] sm:$0xff]
  %v145 = vld [vmem:[%s4 + $0x20] sm:$0xff]
  %v146 = vld [vmem:[%s4 + $0x28] sm:$0xff]
  %v147 = vld [vmem:[%s5] sm:$0x1]
  %v149 = vlaneseq
  %v150 = vshrl.u32 %v149, 7
  %v151 = vsub.s32 0, %v150
  %v152 = vrot.slane %v147, %v151
  %v155 = vsel %vm65, %v140, 0
  %157 = vmatprep.subr.mxu0 0.0
  %158 = vmatpush1.msra.mxu0 %v141
  %159 = vmatprep.subr.mxu0 0.0
  %160 = vmatpush1.msra.mxu0 %v142
  %161 = vmatprep.subr.mxu0 0.0
  %162 = vmatpush1.msra.mxu0 %v143
  %163 = vmatprep.subr.mxu0 0.0
  %164 = vmatpush1.msra.mxu0 %v144
  %165 = vmatprep.subr.mxu0 0.0
  %166 = vmatpush1.msra.mxu0 %v145
  %167 = vmatprep.subr.mxu0 0.0
  %168 = vmatpush1.msra.mxu0 %v146
  %169 = vmatprep.subr.mxu0 0.0
  %170 = vmatpush1.msra.mxu0 0.0
  %171 = vmatprep.subr.mxu0 0.0
  %172 = vmatpush1.msra.mxu0 0.0
  %173 = vmatprep.subr.mxu0 0.0
  %174 = vmatpush1.msra.mxu0 0.0
  %175 = vmatprep.subr.mxu0 0.0
  %176 = vmatpush1.msra.mxu0 0.0
  %177 = vmatprep.subr.mxu0 0.0
  %178 = vmatpush1.msra.mxu0 0.0
  %179 = vmatprep.subr.mxu0 0.0
  %180 = vmatpush1.msra.mxu0 0.0
  %181 = vmatprep.subr.mxu0 0.0
  %182 = vmatpush1.msra.mxu0 0.0
  %183 = vmatprep.subr.mxu0 0.0
  %184 = vmatpush1.msra.mxu0 0.0
  %185 = vmatprep.subr.mxu0 0.0
  %186 = vmatpush1.msra.mxu0 0.0
  %187 = vmatprep.subr.mxu0 0.0
  %188 = vmatpush1.msra.mxu0 0.0
  %189 = vmatprep.subr.mxu0 0.0
  %190 = vmatpush1.msra.mxu0 0.0
  %191 = vmatprep.subr.mxu0 0.0
  %192 = vmatpush1.msra.mxu0 0.0
  %193 = vmatprep.subr.mxu0 0.0
  %194 = vmatpush1.msra.mxu0 0.0
  %195 = vmatprep.subr.mxu0 0.0
  %196 = vmatpush1.msra.mxu0 0.0
  %197 = vmatprep.subr.mxu0 0.0
  %198 = vmatpush1.msra.mxu0 0.0
  %199 = vmatprep.subr.mxu0 0.0
  %200 = vmatpush1.msra.mxu0 0.0
  %201 = vmatprep.subr.mxu0 0.0
  %202 = vmatpush1.msra.mxu0 0.0
  %203 = vmatprep.subr.mxu0 0.0
  %204 = vmatpush1.msra.mxu0 0.0
  %205 = vmatprep.subr.mxu0 0.0
  %206 = vmatpush1.msra.mxu0 0.0
  %207 = vmatprep.subr.mxu0 0.0
  %208 = vmatpush1.msra.mxu0 0.0
  %209 = vmatprep.subr.mxu0 0.0
  %210 = vmatpush1.msra.mxu0 0.0
  %211 = vmatprep.subr.mxu0 0.0
  %212 = vmatpush1.msra.mxu0 0.0
  %213 = vmatprep.subr.mxu0 0.0
  %214 = vmatpush1.msra.mxu0 0.0
  %215 = vmatprep.subr.mxu0 0.0
  %216 = vmatpush1.msra.mxu0 0.0
  %217 = vmatprep.subr.mxu0 0.0
  %218 = vmatpush1.msra.mxu0 0.0
  %219 = vmatprep.subr.mxu0 0.0
  %220 = vmatpush1.msra.mxu0 0.0
  %221 = vmatprep.mubr.f32.mxu0 0.0
  %222 = vmatmul.mubr.f32.gmra.mrb[0].mxu0 %v155
  %v223 = vpop.f32.mrb[0].mxu0
  %v224 = vadd.f32 %v152, %v223
  %v225 = vpop.f32.mrb[0].mxu0
  %226 = vdwg.mxu0
  %v227 = vxor.u32 %v224, 2147483648
  %v228 = vmul.f32 %v227, 1.442695
  %v229 = vpow.pop %v228
  %v230 = vadd.f32 %v229, 1.0
  %v231 = vrcp.pop %v230
  %v232 = vmul.f32 1.0, %v231
  %v233 = vtanh.pop %v224
  %v234 = vmul.f32 %v232, 0.0
  %236 = vrot.lane.b32.xlu0 %v233, 32
  %v237 = vpop.permute.xlu0 %236
  %v239 = vmul.f32 %v232, %v237
  %241 = vrot.lane.b32.xlu0 %v239, 32
  %v242 = vpop.permute.xlu0 %241
  %v244 = vadd.f32 %v234, %v242
  %v245 = vtanh.pop %v244
  %247 = vrot.lane.b32.xlu0 %v245, 32
  %v248 = vpop.permute.xlu0 %247
  %v250 = vmul.f32 %v232, %v248
  %252 = vrot.lane.b32.xlu0 %v250, 64
  %v253 = vpop.permute.xlu0 %252
  %vm255 = vcmask 261120
  %256 = vst.msk [vmem:[#allocation2] sm:$0xff] %vm255, %v253
  %s257 = scalar_lea.vmem %s1, 8
  %v258 = vld [vmem:[%s257] sm:$0xff]
  %259 = vset.pattern.permute.xlu0 0
  %260 = vperm.xlu0 %259, %v258
  %v261 = vpop.permute.xlu0 %260
  %vm262 = vcmp.eq.s32.totalorder %v43, %v261
  %v263 = vsel %vm262, 1, 0
  %v264 = vcvt.s32.f32 %v263
  %v266 = vsel %vm65, %v264, 0
  %268 = vmatprep.subr.mxu0 0.0
  %269 = vmatpush1.msra.mxu0 %v44
  %270 = vmatprep.subr.mxu0 0.0
  %271 = vmatpush1.msra.mxu0 %v45
  %272 = vmatprep.subr.mxu0 0.0
  %273 = vmatpush1.msra.mxu0 %v46
  %274 = vmatprep.subr.mxu0 0.0
  %275 = vmatpush1.msra.mxu0 %v47
  %276 = vmatprep.subr.mxu0 0.0
  %277 = vmatpush1.msra.mxu0 %v48
  %278 = vmatprep.subr.mxu0 0.0
  %279 = vmatpush1.msra.mxu0 %v49
  %280 = vmatprep.subr.mxu0 0.0
  %281 = vmatpush1.msra.mxu0 0.0
  %282 = vmatprep.subr.mxu0 0.0
  %283 = vmatpush1.msra.mxu0 0.0
  %284 = vmatprep.subr.mxu0 0.0
  %285 = vmatpush1.msra.mxu0 0.0
  %286 = vmatprep.subr.mxu0 0.0
  %287 = vmatpush1.msra.mxu0 0.0
  %288 = vmatprep.subr.mxu0 0.0
  %289 = vmatpush1.msra.mxu0 0.0
  %290 = vmatprep.subr.mxu0 0.0
  %291 = vmatpush1.msra.mxu0 0.0
  %292 = vmatprep.subr.mxu0 0.0
  %293 = vmatpush1.msra.mxu0 0.0
  %294 = vmatprep.subr.mxu0 0.0
  %295 = vmatpush1.msra.mxu0 0.0
  %296 = vmatprep.subr.mxu0 0.0
  %297 = vmatpush1.msra.mxu0 0.0
  %298 = vmatprep.subr.mxu0 0.0
  %299 = vmatpush1.msra.mxu0 0.0
  %300 = vmatprep.subr.mxu0 0.0
  %301 = vmatpush1.msra.mxu0 0.0
  %302 = vmatprep.subr.mxu0 0.0
  %303 = vmatpush1.msra.mxu0 0.0
  %304 = vmatprep.subr.mxu0 0.0
  %305 = vmatpush1.msra.mxu0 0.0
  %306 = vmatprep.subr.mxu0 0.0
  %307 = vmatpush1.msra.mxu0 0.0
  %308 = vmatprep.subr.mxu0 0.0
  %309 = vmatpush1.msra.mxu0 0.0
  %310 = vmatprep.subr.mxu0 0.0
  %311 = vmatpush1.msra.mxu0 0.0
  %312 = vmatprep.subr.mxu0 0.0
  %313 = vmatpush1.msra.mxu0 0.0
  %314 = vmatprep.subr.mxu0 0.0
  %315 = vmatpush1.msra.mxu0 0.0
  %316 = vmatprep.subr.mxu0 0.0
  %317 = vmatpush1.msra.mxu0 0.0
  %318 = vmatprep.subr.mxu0 0.0
  %319 = vmatpush1.msra.mxu0 0.0
  %320 = vmatprep.subr.mxu0 0.0
  %321 = vmatpush1.msra.mxu0 0.0
  %322 = vmatprep.subr.mxu0 0.0
  %323 = vmatpush1.msra.mxu0 0.0
  %324 = vmatprep.subr.mxu0 0.0
  %325 = vmatpush1.msra.mxu0 0.0
  %326 = vmatprep.subr.mxu0 0.0
  %327 = vmatpush1.msra.mxu0 0.0
  %328 = vmatprep.subr.mxu0 0.0
  %329 = vmatpush1.msra.mxu0 0.0
  %330 = vmatprep.subr.mxu0 0.0
  %331 = vmatpush1.msra.mxu0 0.0
  %332 = vmatprep.mubr.f32.mxu0 0.0
  %333 = vmatmul.mubr.f32.gmra.mrb[0].mxu0 %v266
  %v334 = vpop.f32.mrb[0].mxu0
  %v335 = vadd.f32 0.0, %v334
  %v336 = vpop.f32.mrb[0].mxu0
  %337 = vdwg.mxu0
  %338 = vrot.lane.b32.xlu0 %v250, 80
  %v339 = vpop.permute.xlu0 %338
  %v341 = vsel %vm139, %v335, %v339
  %v342 = vld [vmem:[%s4] sm:$0xff]
  %v343 = vld [vmem:[%s4 + $0x8] sm:$0xff]
  %v344 = vld [vmem:[%s4 + $0x10] sm:$0xff]
  %v345 = vld [vmem:[%s4 + $0x18] sm:$0xff]
  %v346 = vld [vmem:[%s4 + $0x20] sm:$0xff]
  %v347 = vld [vmem:[%s4 + $0x28] sm:$0xff]
  %v348 = vld [vmem:[%s5] sm:$0x1]
  %v350 = vlaneseq
  %v351 = vshrl.u32 %v350, 7
  %v352 = vsub.s32 0, %v351
  %v353 = vrot.slane %v348, %v352
  %v356 = vsel %vm65, %v341, 0
  %358 = vmatprep.subr.mxu0 0.0
  %359 = vmatpush1.msra.mxu0 %v342
  %360 = vmatprep.subr.mxu0 0.0
  %361 = vmatpush1.msra.mxu0 %v343
  %362 = vmatprep.subr.mxu0 0.0
  %363 = vmatpush1.msra.mxu0 %v344
  %364 = vmatprep.subr.mxu0 0.0
  %365 = vmatpush1.msra.mxu0 %v345
  %366 = vmatprep.subr.mxu0 0.0
  %367 = vmatpush1.msra.mxu0 %v346
  %368 = vmatprep.subr.mxu0 0.0
  %369 = vmatpush1.msra.mxu0 %v347
  %370 = vmatprep.subr.mxu0 0.0
  %371 = vmatpush1.msra.mxu0 0.0
  %372 = vmatprep.subr.mxu0 0.0
  %373 = vmatpush1.msra.mxu0 0.0
  %374 = vmatprep.subr.mxu0 0.0
  %375 = vmatpush1.msra.mxu0 0.0
  %376 = vmatprep.subr.mxu0 0.0
  %377 = vmatpush1.msra.mxu0 0.0
  %378 = vmatprep.subr.mxu0 0.0
  %379 = vmatpush1.msra.mxu0 0.0
  %380 = vmatprep.subr.mxu0 0.0
  %381 = vmatpush1.msra.mxu0 0.0
  %382 = vmatprep.subr.mxu0 0.0
  %383 = vmatpush1.msra.mxu0 0.0
  %384 = vmatprep.subr.mxu0 0.0
  %385 = vmatpush1.msra.mxu0 0.0
  %386 = vmatprep.subr.mxu0 0.0
  %387 = vmatpush1.msra.mxu0 0.0
  %388 = vmatprep.subr.mxu0 0.0
  %389 = vmatpush1.msra.mxu0 0.0
  %390 = vmatprep.subr.mxu0 0.0
  %391 = vmatpush1.msra.mxu0 0.0
  %392 = vmatprep.subr.mxu0 0.0
  %393 = vmatpush1.msra.mxu0 0.0
  %394 = vmatprep.subr.mxu0 0.0
  %395 = vmatpush1.msra.mxu0 0.0
  %396 = vmatprep.subr.mxu0 0.0
  %397 = vmatpush1.msra.mxu0 0.0
  %398 = vmatprep.subr.mxu0 0.0
  %399 = vmatpush1.msra.mxu0 0.0
  %400 = vmatprep.subr.mxu0 0.0
  %401 = vmatpush1.msra.mxu0 0.0
  %402 = vmatprep.subr.mxu0 0.0
  %403 = vmatpush1.msra.mxu0 0.0
  %404 = vmatprep.subr.mxu0 0.0
  %405 = vmatpush1.msra.mxu0 0.0
  %406 = vmatprep.subr.mxu0 0.0
  %407 = vmatpush1.msra.mxu0 0.0
  %408 = vmatprep.subr.mxu0 0.0
  %409 = vmatpush1.msra.mxu0 0.0
  %410 = vmatprep.subr.mxu0 0.0
  %411 = vmatpush1.msra.mxu0 0.0
  %412 = vmatprep.subr.mxu0 0.0
  %413 = vmatpush1.msra.mxu0 0.0
  %414 = vmatprep.subr.mxu0 0.0
  %415 = vmatpush1.msra.mxu0 0.0
  %416 = vmatprep.subr.mxu0 0.0
  %417 = vmatpush1.msra.mxu0 0.0
  %418 = vmatprep.subr.mxu0 0.0
  %419 = vmatpush1.msra.mxu0 0.0
  %420 = vmatprep.subr.mxu0 0.0
  %421 = vmatpush1.msra.mxu0 0.0
  %422 = vmatprep.mubr.f32.mxu0 0.0
  %423 = vmatmul.mubr.f32.gmra.mrb[0].mxu0 %v356
  %v424 = vpop.f32.mrb[0].mxu0
  %v425 = vadd.f32 %v353, %v424
  %v426 = vpop.f32.mrb[0].mxu0
  %427 = vdwg.mxu0
  %v428 = vxor.u32 %v425, 2147483648
  %v429 = vmul.f32 %v428, 1.442695
  %v430 = vpow.pop %v429
  %v431 = vadd.f32 %v430, 1.0
  %v432 = vrcp.pop %v431
  %v433 = vmul.f32 1.0, %v432
  %v434 = vtanh.pop %v425
  %v435 = vmul.f32 %v433, %v244
  %437 = vrot.lane.b32.xlu0 %v434, 32
  %v438 = vpop.permute.xlu0 %437
  %v440 = vmul.f32 %v433, %v438
  %442 = vrot.lane.b32.xlu0 %v440, 32
  %v443 = vpop.permute.xlu0 %442
  %v445 = vadd.f32 %v435, %v443
  %v446 = vtanh.pop %v445
  %448 = vrot.lane.b32.xlu0 %v446, 32
  %v449 = vpop.permute.xlu0 %448
  %v451 = vmul.f32 %v433, %v449
  %453 = vrot.lane.b32.xlu0 %v451, 64
  %v454 = vpop.permute.xlu0 %453
  %s456 = scalar_lea.vmem [#allocation2], 8
  %457 = vst.msk [vmem:[%s456] sm:$0xff] %vm255, %v454
  %s458 = scalar_lea.vmem %s1, 16
  %v459 = vld [vmem:[%s458] sm:$0xff]
  %460 = vset.pattern.permute.xlu0 0
  %461 = vperm.xlu0 %460, %v459
  %v462 = vpop.permute.xlu0 %461
  %vm463 = vcmp.eq.s32.totalorder %v43, %v462
  %v464 = vsel %vm463, 1, 0
  %v465 = vcvt.s32.f32 %v464
  %v467 = vsel %vm65, %v465, 0
  %469 = vmatprep.subr.mxu0 0.0
  %470 = vmatpush1.msra.mxu0 %v44
  %471 = vmatprep.subr.mxu0 0.0
  %472 = vmatpush1.msra.mxu0 %v45
  %473 = vmatprep.subr.mxu0 0.0
  %474 = vmatpush1.msra.mxu0 %v46
  %475 = vmatprep.subr.mxu0 0.0
  %476 = vmatpush1.msra.mxu0 %v47
  %477 = vmatprep.subr.mxu0 0.0
  %478 = vmatpush1.msra.mxu0 %v48
  %479 = vmatprep.subr.mxu0 0.0
  %480 = vmatpush1.msra.mxu0 %v49
  %481 = vmatprep.subr.mxu0 0.0
  %482 = vmatpush1.msra.mxu0 0.0
  %483 = vmatprep.subr.mxu0 0.0
  %484 = vmatpush1.msra.mxu0 0.0
  %485 = vmatprep.subr.mxu0 0.0
  %486 = vmatpush1.msra.mxu0 0.0
  %487 = vmatprep.subr.mxu0 0.0
  %488 = vmatpush1.msra.mxu0 0.0
  %489 = vmatprep.subr.mxu0 0.0
  %490 = vmatpush1.msra.mxu0 0.0
  %491 = vmatprep.subr.mxu0 0.0
  %492 = vmatpush1.msra.mxu0 0.0
  %493 = vmatprep.subr.mxu0 0.0
  %494 = vmatpush1.msra.mxu0 0.0
  %495 = vmatprep.subr.mxu0 0.0
  %496 = vmatpush1.msra.mxu0 0.0
  %497 = vmatprep.subr.mxu0 0.0
  %498 = vmatpush1.msra.mxu0 0.0
  %499 = vmatprep.subr.mxu0 0.0
  %500 = vmatpush1.msra.mxu0 0.0
  %501 = vmatprep.subr.mxu0 0.0
  %502 = vmatpush1.msra.mxu0 0.0
  %503 = vmatprep.subr.mxu0 0.0
  %504 = vmatpush1.msra.mxu0 0.0
  %505 = vmatprep.subr.mxu0 0.0
  %506 = vmatpush1.msra.mxu0 0.0
  %507 = vmatprep.subr.mxu0 0.0
  %508 = vmatpush1.msra.mxu0 0.0
  %509 = vmatprep.subr.mxu0 0.0
  %510 = vmatpush1.msra.mxu0 0.0
  %511 = vmatprep.subr.mxu0 0.0
  %512 = vmatpush1.msra.mxu0 0.0
  %513 = vmatprep.subr.mxu0 0.0
  %514 = vmatpush1.msra.mxu0 0.0
  %515 = vmatprep.subr.mxu0 0.0
  %516 = vmatpush1.msra.mxu0 0.0
  %517 = vmatprep.subr.mxu0 0.0
  %518 = vmatpush1.msra.mxu0 0.0
  %519 = vmatprep.subr.mxu0 0.0
  %520 = vmatpush1.msra.mxu0 0.0
  %521 = vmatprep.subr.mxu0 0.0
  %522 = vmatpush1.msra.mxu0 0.0
  %523 = vmatprep.subr.mxu0 0.0
  %524 = vmatpush1.msra.mxu0 0.0
  %525 = vmatprep.subr.mxu0 0.0
  %526 = vmatpush1.msra.mxu0 0.0
  %527 = vmatprep.subr.mxu0 0.0
  %528 = vmatpush1.msra.mxu0 0.0
  %529 = vmatprep.subr.mxu0 0.0
  %530 = vmatpush1.msra.mxu0 0.0
  %531 = vmatprep.subr.mxu0 0.0
  %532 = vmatpush1.msra.mxu0 0.0
  %533 = vmatprep.mubr.f32.mxu0 0.0
  %534 = vmatmul.mubr.f32.gmra.mrb[0].mxu0 %v467
  %v535 = vpop.f32.mrb[0].mxu0
  %v536 = vadd.f32 0.0, %v535
  %v537 = vpop.f32.mrb[0].mxu0
  %538 = vdwg.mxu0
  %539 = vrot.lane.b32.xlu0 %v451, 80
  %v540 = vpop.permute.xlu0 %539
  %v542 = vsel %vm139, %v536, %v540
  %v543 = vld [vmem:[%s4] sm:$0xff]
  %v544 = vld [vmem:[%s4 + $0x8] sm:$0xff]
  %v545 = vld [vmem:[%s4 + $0x10] sm:$0xff]
  %v546 = vld [vmem:[%s4 + $0x18] sm:$0xff]
  %v547 = vld [vmem:[%s4 + $0x20] sm:$0xff]
  %v548 = vld [vmem:[%s4 + $0x28] sm:$0xff]
  %v549 = vld [vmem:[%s5] sm:$0x1]
  %v551 = vlaneseq
  %v552 = vshrl.u32 %v551, 7
  %v553 = vsub.s32 0, %v552
  %v554 = vrot.slane %v549, %v553
  %v557 = vsel %vm65, %v542, 0
  %559 = vmatprep.subr.mxu0 0.0
  %560 = vmatpush1.msra.mxu0 %v543
  %561 = vmatprep.subr.mxu0 0.0
  %562 = vmatpush1.msra.mxu0 %v544
  %563 = vmatprep.subr.mxu0 0.0
  %564 = vmatpush1.msra.mxu0 %v545
  %565 = vmatprep.subr.mxu0 0.0
  %566 = vmatpush1.msra.mxu0 %v546
  %567 = vmatprep.subr.mxu0 0.0
  %568 = vmatpush1.msra.mxu0 %v547
  %569 = vmatprep.subr.mxu0 0.0
  %570 = vmatpush1.msra.mxu0 %v548
  %571 = vmatprep.subr.mxu0 0.0
  %572 = vmatpush1.msra.mxu0 0.0
  %573 = vmatprep.subr.mxu0 0.0
  %574 = vmatpush1.msra.mxu0 0.0
  %575 = vmatprep.subr.mxu0 0.0
  %576 = vmatpush1.msra.mxu0 0.0
  %577 = vmatprep.subr.mxu0 0.0
  %578 = vmatpush1.msra.mxu0 0.0
  %579 = vmatprep.subr.mxu0 0.0
  %580 = vmatpush1.msra.mxu0 0.0
  %581 = vmatprep.subr.mxu0 0.0
  %582 = vmatpush1.msra.mxu0 0.0
  %583 = vmatprep.subr.mxu0 0.0
  %584 = vmatpush1.msra.mxu0 0.0
  %585 = vmatprep.subr.mxu0 0.0
  %586 = vmatpush1.msra.mxu0 0.0
  %587 = vmatprep.subr.mxu0 0.0
  %588 = vmatpush1.msra.mxu0 0.0
  %589 = vmatprep.subr.mxu0 0.0
  %590 = vmatpush1.msra.mxu0 0.0
  %591 = vmatprep.subr.mxu0 0.0
  %592 = vmatpush1.msra.mxu0 0.0
  %593 = vmatprep.subr.mxu0 0.0
  %594 = vmatpush1.msra.mxu0 0.0
  %595 = vmatprep.subr.mxu0 0.0
  %596 = vmatpush1.msra.mxu0 0.0
  %597 = vmatprep.subr.mxu0 0.0
  %598 = vmatpush1.msra.mxu0 0.0
  %599 = vmatprep.subr.mxu0 0.0
  %600 = vmatpush1.msra.mxu0 0.0
  %601 = vmatprep.subr.mxu0 0.0
  %602 = vmatpush1.msra.mxu0 0.0
  %603 = vmatprep.subr.mxu0 0.0
  %604 = vmatpush1.msra.mxu0 0.0
  %605 = vmatprep.subr.mxu0 0.0
  %606 = vmatpush1.msra.mxu0 0.0
  %607 = vmatprep.subr.mxu0 0.0
  %608 = vmatpush1.msra.mxu0 0.0
  %609 = vmatprep.subr.mxu0 0.0
  %610 = vmatpush1.msra.mxu0 0.0
  %611 = vmatprep.subr.mxu0 0.0
  %612 = vmatpush1.msra.mxu0 0.0
  %613 = vmatprep.subr.mxu0 0.0
  %614 = vmatpush1.msra.mxu0 0.0
  %615 = vmatprep.subr.mxu0 0.0
  %616 = vmatpush1.msra.mxu0 0.0
  %617 = vmatprep.subr.mxu0 0.0
  %618 = vmatpush1.msra.mxu0 0.0
  %619 = vmatprep.subr.mxu0 0.0
  %620 = vmatpush1.msra.mxu0 0.0
  %621 = vmatprep.subr.mxu0 0.0
  %622 = vmatpush1.msra.mxu0 0.0
  %623 = vmatprep.mubr.f32.mxu0 0.0
  %624 = vmatmul.mubr.f32.gmra.mrb[0].mxu0 %v557
  %v625 = vpop.f32.mrb[0].mxu0
  %v626 = vadd.f32 %v554, %v625
  %v627 = vpop.f32.mrb[0].mxu0
  %628 = vdwg.mxu0
  %v629 = vxor.u32 %v626, 2147483648
  %v630 = vmul.f32 %v629, 1.442695
  %v631 = vpow.pop %v630
  %v632 = vadd.f32 %v631, 1.0
  %v633 = vrcp.pop %v632
  %v634 = vmul.f32 1.0, %v633
  %v635 = vtanh.pop %v626
  %v636 = vmul.f32 %v634, %v445
  %638 = vrot.lane.b32.xlu0 %v635, 32
  %v639 = vpop.permute.xlu0 %638
  %v641 = vmul.f32 %v634, %v639
  %643 = vrot.lane.b32.xlu0 %v641, 32
  %v644 = vpop.permute.xlu0 %643
  %v646 = vadd.f32 %v636, %v644
  %v647 = vtanh.pop %v646
  %649 = vrot.lane.b32.xlu0 %v647, 32
  %v650 = vpop.permute.xlu0 %649
  %v652 = vmul.f32 %v634, %v650
  %654 = vrot.lane.b32.xlu0 %v652, 64
  %v655 = vpop.permute.xlu0 %654
  %s657 = scalar_lea.vmem [#allocation2], 16
  %658 = vst.msk [vmem:[%s657] sm:$0xff] %vm255, %v655
  %s659 = scalar_lea.vmem %s1, 24
  %v660 = vld [vmem:[%s659] sm:$0xff]
  %661 = vset.pattern.permute.xlu0 0
  %662 = vperm.xlu0 %661, %v660
  %v663 = vpop.permute.xlu0 %662
  %vm664 = vcmp.eq.s32.totalorder %v43, %v663
  %v665 = vsel %vm664, 1, 0
  %v666 = vcvt.s32.f32 %v665
  %v668 = vsel %vm65, %v666, 0
  %670 = vmatprep.subr.mxu0 0.0
  %671 = vmatpush1.msra.mxu0 %v44
  %672 = vmatprep.subr.mxu0 0.0
  %673 = vmatpush1.msra.mxu0 %v45
  %674 = vmatprep.subr.mxu0 0.0
  %675 = vmatpush1.msra.mxu0 %v46
  %676 = vmatprep.subr.mxu0 0.0
  %677 = vmatpush1.msra.mxu0 %v47
  %678 = vmatprep.subr.mxu0 0.0
  %679 = vmatpush1.msra.mxu0 %v48
  %680 = vmatprep.subr.mxu0 0.0
  %681 = vmatpush1.msra.mxu0 %v49
  %682 = vmatprep.subr.mxu0 0.0
  %683 = vmatpush1.msra.mxu0 0.0
  %684 = vmatprep.subr.mxu0 0.0
  %685 = vmatpush1.msra.mxu0 0.0
  %686 = vmatprep.subr.mxu0 0.0
  %687 = vmatpush1.msra.mxu0 0.0
  %688 = vmatprep.subr.mxu0 0.0
  %689 = vmatpush1.msra.mxu0 0.0
  %690 = vmatprep.subr.mxu0 0.0
  %691 = vmatpush1.msra.mxu0 0.0
  %692 = vmatprep.subr.mxu0 0.0
  %693 = vmatpush1.msra.mxu0 0.0
  %694 = vmatprep.subr.mxu0 0.0
  %695 = vmatpush1.msra.mxu0 0.0
  %696 = vmatprep.subr.mxu0 0.0
  %697 = vmatpush1.msra.mxu0 0.0
  %698 = vmatprep.subr.mxu0 0.0
  %699 = vmatpush1.msra.mxu0 0.0
  %700 = vmatprep.subr.mxu0 0.0
  %701 = vmatpush1.msra.mxu0 0.0
  %702 = vmatprep.subr.mxu0 0.0
  %703 = vmatpush1.msra.mxu0 0.0
  %704 = vmatprep.subr.mxu0 0.0
  %705 = vmatpush1.msra.mxu0 0.0
  %706 = vmatprep.subr.mxu0 0.0
  %707 = vmatpush1.msra.mxu0 0.0
  %708 = vmatprep.subr.mxu0 0.0
  %709 = vmatpush1.msra.mxu0 0.0
  %710 = vmatprep.subr.mxu0 0.0
  %711 = vmatpush1.msra.mxu0 0.0
  %712 = vmatprep.subr.mxu0 0.0
  %713 = vmatpush1.msra.mxu0 0.0
  %714 = vmatprep.subr.mxu0 0.0
  %715 = vmatpush1.msra.mxu0 0.0
  %716 = vmatprep.subr.mxu0 0.0
  %717 = vmatpush1.msra.mxu0 0.0
  %718 = vmatprep.subr.mxu0 0.0
  %719 = vmatpush1.msra.mxu0 0.0
  %720 = vmatprep.subr.mxu0 0.0
  %721 = vmatpush1.msra.mxu0 0.0
  %722 = vmatprep.subr.mxu0 0.0
  %723 = vmatpush1.msra.mxu0 0.0
  %724 = vmatprep.subr.mxu0 0.0
  %725 = vmatpush1.msra.mxu0 0.0
  %726 = vmatprep.subr.mxu0 0.0
  %727 = vmatpush1.msra.mxu0 0.0
  %728 = vmatprep.subr.mxu0 0.0
  %729 = vmatpush1.msra.mxu0 0.0
  %730 = vmatprep.subr.mxu0 0.0
  %731 = vmatpush1.msra.mxu0 0.0
  %732 = vmatprep.subr.mxu0 0.0
  %733 = vmatpush1.msra.mxu0 0.0
  %734 = vmatprep.mubr.f32.mxu0 0.0
  %735 = vmatmul.mubr.f32.gmra.mrb[0].mxu0 %v668
  %v736 = vpop.f32.mrb[0].mxu0
  %v737 = vadd.f32 0.0, %v736
  %v738 = vpop.f32.mrb[0].mxu0
  %739 = vdwg.mxu0
  %740 = vrot.lane.b32.xlu0 %v652, 80
  %v741 = vpop.permute.xlu0 %740
  %v743 = vsel %vm139, %v737, %v741
  %v744 = vld [vmem:[%s4] sm:$0xff]
  %v745 = vld [vmem:[%s4 + $0x8] sm:$0xff]
  %v746 = vld [vmem:[%s4 + $0x10] sm:$0xff]
  %v747 = vld [vmem:[%s4 + $0x18] sm:$0xff]
  %v748 = vld [vmem:[%s4 + $0x20] sm:$0xff]
  %v749 = vld [vmem:[%s4 + $0x28] sm:$0xff]
  %v750 = vld [vmem:[%s5] sm:$0x1]
  %v752 = vlaneseq
  %v753 = vshrl.u32 %v752, 7
  %v754 = vsub.s32 0, %v753
  %v755 = vrot.slane %v750, %v754
  %v758 = vsel %vm65, %v743, 0
  %760 = vmatprep.subr.mxu0 0.0
  %761 = vmatpush1.msra.mxu0 %v744
  %762 = vmatprep.subr.mxu0 0.0
  %763 = vmatpush1.msra.mxu0 %v745
  %764 = vmatprep.subr.mxu0 0.0
  %765 = vmatpush1.msra.mxu0 %v746
  %766 = vmatprep.subr.mxu0 0.0
  %767 = vmatpush1.msra.mxu0 %v747
  %768 = vmatprep.subr.mxu0 0.0
  %769 = vmatpush1.msra.mxu0 %v748
  %770 = vmatprep.subr.mxu0 0.0
  %771 = vmatpush1.msra.mxu0 %v749
  %772 = vmatprep.subr.mxu0 0.0
  %773 = vmatpush1.msra.mxu0 0.0
  %774 = vmatprep.subr.mxu0 0.0
  %775 = vmatpush1.msra.mxu0 0.0
  %776 = vmatprep.subr.mxu0 0.0
  %777 = vmatpush1.msra.mxu0 0.0
  %778 = vmatprep.subr.mxu0 0.0
  %779 = vmatpush1.msra.mxu0 0.0
  %780 = vmatprep.subr.mxu0 0.0
  %781 = vmatpush1.msra.mxu0 0.0
  %782 = vmatprep.subr.mxu0 0.0
  %783 = vmatpush1.msra.mxu0 0.0
  %784 = vmatprep.subr.mxu0 0.0
  %785 = vmatpush1.msra.mxu0 0.0
  %786 = vmatprep.subr.mxu0 0.0
  %787 = vmatpush1.msra.mxu0 0.0
  %788 = vmatprep.subr.mxu0 0.0
  %789 = vmatpush1.msra.mxu0 0.0
  %790 = vmatprep.subr.mxu0 0.0
  %791 = vmatpush1.msra.mxu0 0.0
  %792 = vmatprep.subr.mxu0 0.0
  %793 = vmatpush1.msra.mxu0 0.0
  %794 = vmatprep.subr.mxu0 0.0
  %795 = vmatpush1.msra.mxu0 0.0
  %796 = vmatprep.subr.mxu0 0.0
  %797 = vmatpush1.msra.mxu0 0.0
  %798 = vmatprep.subr.mxu0 0.0
  %799 = vmatpush1.msra.mxu0 0.0
  %800 = vmatprep.subr.mxu0 0.0
  %801 = vmatpush1.msra.mxu0 0.0
  %802 = vmatprep.subr.mxu0 0.0
  %803 = vmatpush1.msra.mxu0 0.0
  %804 = vmatprep.subr.mxu0 0.0
  %805 = vmatpush1.msra.mxu0 0.0
  %806 = vmatprep.subr.mxu0 0.0
  %807 = vmatpush1.msra.mxu0 0.0
  %808 = vmatprep.subr.mxu0 0.0
  %809 = vmatpush1.msra.mxu0 0.0
  %810 = vmatprep.subr.mxu0 0.0
  %811 = vmatpush1.msra.mxu0 0.0
  %812 = vmatprep.subr.mxu0 0.0
  %813 = vmatpush1.msra.mxu0 0.0
  %814 = vmatprep.subr.mxu0 0.0
  %815 = vmatpush1.msra.mxu0 0.0
  %816 = vmatprep.subr.mxu0 0.0
  %817 = vmatpush1.msra.mxu0 0.0
  %818 = vmatprep.subr.mxu0 0.0
  %819 = vmatpush1.msra.mxu0 0.0
  %820 = vmatprep.subr.mxu0 0.0
  %821 = vmatpush1.msra.mxu0 0.0
  %822 = vmatprep.subr.mxu0 0.0
  %823 = vmatpush1.msra.mxu0 0.0
  %824 = vmatprep.mubr.f32.mxu0 0.0
  %825 = vmatmul.mubr.f32.gmra.mrb[0].mxu0 %v758
  %v826 = vpop.f32.mrb[0].mxu0
  %v827 = vadd.f32 %v755, %v826
  %v828 = vpop.f32.mrb[0].mxu0
  %829 = vdwg.mxu0
  %v830 = vxor.u32 %v827, 2147483648
  %v831 = vmul.f32 %v830, 1.442695
  %v832 = vpow.pop %v831
  %v833 = vadd.f32 %v832, 1.0
  %v834 = vrcp.pop %v833
  %v835 = vmul.f32 1.0, %v834
  %v836 = vtanh.pop %v827
  %v837 = vmul.f32 %v835, %v646
  %839 = vrot.lane.b32.xlu0 %v836, 32
  %v840 = vpop.permute.xlu0 %839
  %v842 = vmul.f32 %v835, %v840
  %844 = vrot.lane.b32.xlu0 %v842, 32
  %v845 = vpop.permute.xlu0 %844
  %v847 = vadd.f32 %v837, %v845
  %v848 = vtanh.pop %v847
  %850 = vrot.lane.b32.xlu0 %v848, 32
  %v851 = vpop.permute.xlu0 %850
  %v853 = vmul.f32 %v835, %v851
  %855 = vrot.lane.b32.xlu0 %v853, 64
  %v856 = vpop.permute.xlu0 %855
  %s858 = scalar_lea.vmem [#allocation2], 24
  %859 = vst.msk [vmem:[%s858] sm:$0xff] %vm255, %v856
  %s860 = scalar_lea.vmem %s1, 32
  %v861 = vld [vmem:[%s860] sm:$0xff]
  %862 = vset.pattern.permute.xlu0 0
  %863 = vperm.xlu0 %862, %v861
  %v864 = vpop.permute.xlu0 %863
  %vm865 = vcmp.eq.s32.totalorder %v43, %v864
  %v866 = vsel %vm865, 1, 0
  %v867 = vcvt.s32.f32 %v866
  %v869 = vsel %vm65, %v867, 0
  %871 = vmatprep.subr.mxu0 0.0
  %872 = vmatpush1.msra.mxu0 %v44
  %873 = vmatprep.subr.mxu0 0.0
  %874 = vmatpush1.msra.mxu0 %v45
  %875 = vmatprep.subr.mxu0 0.0
  %876 = vmatpush1.msra.mxu0 %v46
  %877 = vmatprep.subr.mxu0 0.0
  %878 = vmatpush1.msra.mxu0 %v47
  %879 = vmatprep.subr.mxu0 0.0
  %880 = vmatpush1.msra.mxu0 %v48
  %881 = vmatprep.subr.mxu0 0.0
  %882 = vmatpush1.msra.mxu0 %v49
  %883 = vmatprep.subr.mxu0 0.0
  %884 = vmatpush1.msra.mxu0 0.0
  %885 = vmatprep.subr.mxu0 0.0
  %886 = vmatpush1.msra.mxu0 0.0
  %887 = vmatprep.subr.mxu0 0.0
  %888 = vmatpush1.msra.mxu0 0.0
  %889 = vmatprep.subr.mxu0 0.0
  %890 = vmatpush1.msra.mxu0 0.0
  %891 = vmatprep.subr.mxu0 0.0
  %892 = vmatpush1.msra.mxu0 0.0
  %893 = vmatprep.subr.mxu0 0.0
  %894 = vmatpush1.msra.mxu0 0.0
  %895 = vmatprep.subr.mxu0 0.0
  %896 = vmatpush1.msra.mxu0 0.0
  %897 = vmatprep.subr.mxu0 0.0
  %898 = vmatpush1.msra.mxu0 0.0
  %899 = vmatprep.subr.mxu0 0.0
  %900 = vmatpush1.msra.mxu0 0.0
  %901 = vmatprep.subr.mxu0 0.0
  %902 = vmatpush1.msra.mxu0 0.0
  %903 = vmatprep.subr.mxu0 0.0
  %904 = vmatpush1.msra.mxu0 0.0
  %905 = vmatprep.subr.mxu0 0.0
  %906 = vmatpush1.msra.mxu0 0.0
  %907 = vmatprep.subr.mxu0 0.0
  %908 = vmatpush1.msra.mxu0 0.0
  %909 = vmatprep.subr.mxu0 0.0
  %910 = vmatpush1.msra.mxu0 0.0
  %911 = vmatprep.subr.mxu0 0.0
  %912 = vmatpush1.msra.mxu0 0.0
  %913 = vmatprep.subr.mxu0 0.0
  %914 = vmatpush1.msra.mxu0 0.0
  %915 = vmatprep.subr.mxu0 0.0
  %916 = vmatpush1.msra.mxu0 0.0
  %917 = vmatprep.subr.mxu0 0.0
  %918 = vmatpush1.msra.mxu0 0.0
  %919 = vmatprep.subr.mxu0 0.0
  %920 = vmatpush1.msra.mxu0 0.0
  %921 = vmatprep.subr.mxu0 0.0
  %922 = vmatpush1.msra.mxu0 0.0
  %923 = vmatprep.subr.mxu0 0.0
  %924 = vmatpush1.msra.mxu0 0.0
  %925 = vmatprep.subr.mxu0 0.0
  %926 = vmatpush1.msra.mxu0 0.0
  %927 = vmatprep.subr.mxu0 0.0
  %928 = vmatpush1.msra.mxu0 0.0
  %929 = vmatprep.subr.mxu0 0.0
  %930 = vmatpush1.msra.mxu0 0.0
  %931 = vmatprep.subr.mxu0 0.0
  %932 = vmatpush1.msra.mxu0 0.0
  %933 = vmatprep.subr.mxu0 0.0
  %934 = vmatpush1.msra.mxu0 0.0
  %935 = vmatprep.mubr.f32.mxu0 0.0
  %936 = vmatmul.mubr.f32.gmra.mrb[0].mxu0 %v869
  %v937 = vpop.f32.mrb[0].mxu0
  %v938 = vadd.f32 0.0, %v937
  %v939 = vpop.f32.mrb[0].mxu0
  %940 = vdwg.mxu0
  %941 = vrot.lane.b32.xlu0 %v853, 80
  %v942 = vpop.permute.xlu0 %941
  %v944 = vsel %vm139, %v938, %v942
  %v945 = vld [vmem:[%s4] sm:$0xff]
  %v946 = vld [vmem:[%s4 + $0x8] sm:$0xff]
  %v947 = vld [vmem:[%s4 + $0x10] sm:$0xff]
  %v948 = vld [vmem:[%s4 + $0x18] sm:$0xff]
  %v949 = vld [vmem:[%s4 + $0x20] sm:$0xff]
  %v950 = vld [vmem:[%s4 + $0x28] sm:$0xff]
  %v951 = vld [vmem:[%s5] sm:$0x1]
  %v953 = vlaneseq
  %v954 = vshrl.u32 %v953, 7
  %v955 = vsub.s32 0, %v954
  %v956 = vrot.slane %v951, %v955
  %v959 = vsel %vm65, %v944, 0
  %961 = vmatprep.subr.mxu0 0.0
  %962 = vmatpush1.msra.mxu0 %v945
  %963 = vmatprep.subr.mxu0 0.0
  %964 = vmatpush1.msra.mxu0 %v946
  %965 = vmatprep.subr.mxu0 0.0
  %966 = vmatpush1.msra.mxu0 %v947
  %967 = vmatprep.subr.mxu0 0.0
  %968 = vmatpush1.msra.mxu0 %v948
  %969 = vmatprep.subr.mxu0 0.0
  %970 = vmatpush1.msra.mxu0 %v949
  %971 = vmatprep.subr.mxu0 0.0
  %972 = vmatpush1.msra.mxu0 %v950
  %973 = vmatprep.subr.mxu0 0.0
  %974 = vmatpush1.msra.mxu0 0.0
  %975 = vmatprep.subr.mxu0 0.0
  %976 = vmatpush1.msra.mxu0 0.0
  %977 = vmatprep.subr.mxu0 0.0
  %978 = vmatpush1.msra.mxu0 0.0
  %979 = vmatprep.subr.mxu0 0.0
  %980 = vmatpush1.msra.mxu0 0.0
  %981 = vmatprep.subr.mxu0 0.0
  %982 = vmatpush1.msra.mxu0 0.0
  %983 = vmatprep.subr.mxu0 0.0
  %984 = vmatpush1.msra.mxu0 0.0
  %985 = vmatprep.subr.mxu0 0.0
  %986 = vmatpush1.msra.mxu0 0.0
  %987 = vmatprep.subr.mxu0 0.0
  %988 = vmatpush1.msra.mxu0 0.0
  %989 = vmatprep.subr.mxu0 0.0
  %990 = vmatpush1.msra.mxu0 0.0
  %991 = vmatprep.subr.mxu0 0.0
  %992 = vmatpush1.msra.mxu0 0.0
  %993 = vmatprep.subr.mxu0 0.0
  %994 = vmatpush1.msra.mxu0 0.0
  %995 = vmatprep.subr.mxu0 0.0
  %996 = vmatpush1.msra.mxu0 0.0
  %997 = vmatprep.subr.mxu0 0.0
  %998 = vmatpush1.msra.mxu0 0.0
  %999 = vmatprep.subr.mxu0 0.0
  %1000 = vmatpush1.msra.mxu0 0.0
  %1001 = vmatprep.subr.mxu0 0.0
  %1002 = vmatpush1.msra.mxu0 0.0
  %1003 = vmatprep.subr.mxu0 0.0
  %1004 = vmatpush1.msra.mxu0 0.0
  %1005 = vmatprep.subr.mxu0 0.0
  %1006 = vmatpush1.msra.mxu0 0.0
  %1007 = vmatprep.subr.mxu0 0.0
  %1008 = vmatpush1.msra.mxu0 0.0
  %1009 = vmatprep.subr.mxu0 0.0
  %1010 = vmatpush1.msra.mxu0 0.0
  %1011 = vmatprep.subr.mxu0 0.0
  %1012 = vmatpush1.msra.mxu0 0.0
  %1013 = vmatprep.subr.mxu0 0.0
  %1014 = vmatpush1.msra.mxu0 0.0
  %1015 = vmatprep.subr.mxu0 0.0
  %1016 = vmatpush1.msra.mxu0 0.0
  %1017 = vmatprep.subr.mxu0 0.0
  %1018 = vmatpush1.msra.mxu0 0.0
  %1019 = vmatprep.subr.mxu0 0.0
  %1020 = vmatpush1.msra.mxu0 0.0
  %1021 = vmatprep.subr.mxu0 0.0
  %1022 = vmatpush1.msra.mxu0 0.0
  %1023 = vmatprep.subr.mxu0 0.0
  %1024 = vmatpush1.msra.mxu0 0.0
  %1025 = vmatprep.mubr.f32.mxu0 0.0
  %1026 = vmatmul.mubr.f32.gmra.mrb[0].mxu0 %v959
  %v1027 = vpop.f32.mrb[0].mxu0
  %v1028 = vadd.f32 %v956, %v1027
  %v1029 = vpop.f32.mrb[0].mxu0
  %1030 = vdwg.mxu0
  %v1031 = vxor.u32 %v1028, 2147483648
  %v1032 = vmul.f32 %v1031, 1.442695
  %v1033 = vpow.pop %v1032
  %v1034 = vadd.f32 %v1033, 1.0
  %v1035 = vrcp.pop %v1034
  %v1036 = vmul.f32 1.0, %v1035
  %v1037 = vtanh.pop %v1028
  %v1038 = vmul.f32 %v1036, %v847
  %1040 = vrot.lane.b32.xlu0 %v1037, 32
  %v1041 = vpop.permute.xlu0 %1040
  %v1043 = vmul.f32 %v1036, %v1041
  %1045 = vrot.lane.b32.xlu0 %v1043, 32
  %v1046 = vpop.permute.xlu0 %1045
  %v1048 = vadd.f32 %v1038, %v1046
  %v1049 = vtanh.pop %v1048
  %1051 = vrot.lane.b32.xlu0 %v1049, 32
  %v1052 = vpop.permute.xlu0 %1051
  %v1054 = vmul.f32 %v1036, %v1052
  %1056 = vrot.lane.b32.xlu0 %v1054, 64
  %v1057 = vpop.permute.xlu0 %1056
  %s1059 = scalar_lea.vmem [#allocation2], 32
  %1060 = vst.msk [vmem:[%s1059] sm:$0xff] %vm255, %v1057
  %s1061 = scalar_lea.vmem %s1, 40
  %v1062 = vld [vmem:[%s1061] sm:$0xff]
  %1063 = vset.pattern.permute.xlu0 0
  %1064 = vperm.xlu0 %1063, %v1062
  %v1065 = vpop.permute.xlu0 %1064
  %vm1066 = vcmp.eq.s32.totalorder %v43, %v1065
  %v1067 = vsel %vm1066, 1, 0
  %v1068 = vcvt.s32.f32 %v1067
  %v1070 = vsel %vm65, %v1068, 0
  %1072 = vmatprep.subr.mxu0 0.0
  %1073 = vmatpush1.msra.mxu0 %v44
  %1074 = vmatprep.subr.mxu0 0.0
  %1075 = vmatpush1.msra.mxu0 %v45
  %1076 = vmatprep.subr.mxu0 0.0
  %1077 = vmatpush1.msra.mxu0 %v46
  %1078 = vmatprep.subr.mxu0 0.0
  %1079 = vmatpush1.msra.mxu0 %v47
  %1080 = vmatprep.subr.mxu0 0.0
  %1081 = vmatpush1.msra.mxu0 %v48
  %1082 = vmatprep.subr.mxu0 0.0
  %1083 = vmatpush1.msra.mxu0 %v49
  %1084 = vmatprep.subr.mxu0 0.0
  %1085 = vmatpush1.msra.mxu0 0.0
  %1086 = vmatprep.subr.mxu0 0.0
  %1087 = vmatpush1.msra.mxu0 0.0
  %1088 = vmatprep.subr.mxu0 0.0
  %1089 = vmatpush1.msra.mxu0 0.0
  %1090 = vmatprep.subr.mxu0 0.0
  %1091 = vmatpush1.msra.mxu0 0.0
  %1092 = vmatprep.subr.mxu0 0.0
  %1093 = vmatpush1.msra.mxu0 0.0
  %1094 = vmatprep.subr.mxu0 0.0
  %1095 = vmatpush1.msra.mxu0 0.0
  %1096 = vmatprep.subr.mxu0 0.0
  %1097 = vmatpush1.msra.mxu0 0.0
  %1098 = vmatprep.subr.mxu0 0.0
  %1099 = vmatpush1.msra.mxu0 0.0
  %1100 = vmatprep.subr.mxu0 0.0
  %1101 = vmatpush1.msra.mxu0 0.0
  %1102 = vmatprep.subr.mxu0 0.0
  %1103 = vmatpush1.msra.mxu0 0.0
  %1104 = vmatprep.subr.mxu0 0.0
  %1105 = vmatpush1.msra.mxu0 0.0
  %1106 = vmatprep.subr.mxu0 0.0
  %1107 = vmatpush1.msra.mxu0 0.0
  %1108 = vmatprep.subr.mxu0 0.0
  %1109 = vmatpush1.msra.mxu0 0.0
  %1110 = vmatprep.subr.mxu0 0.0
  %1111 = vmatpush1.msra.mxu0 0.0
  %1112 = vmatprep.subr.mxu0 0.0
  %1113 = vmatpush1.msra.mxu0 0.0
  %1114 = vmatprep.subr.mxu0 0.0
  %1115 = vmatpush1.msra.mxu0 0.0
  %1116 = vmatprep.subr.mxu0 0.0
  %1117 = vmatpush1.msra.mxu0 0.0
  %1118 = vmatprep.subr.mxu0 0.0
  %1119 = vmatpush1.msra.mxu0 0.0
  %1120 = vmatprep.subr.mxu0 0.0
  %1121 = vmatpush1.msra.mxu0 0.0
  %1122 = vmatprep.subr.mxu0 0.0
  %1123 = vmatpush1.msra.mxu0 0.0
  %1124 = vmatprep.subr.mxu0 0.0
  %1125 = vmatpush1.msra.mxu0 0.0
  %1126 = vmatprep.subr.mxu0 0.0
  %1127 = vmatpush1.msra.mxu0 0.0
  %1128 = vmatprep.subr.mxu0 0.0
  %1129 = vmatpush1.msra.mxu0 0.0
  %1130 = vmatprep.subr.mxu0 0.0
  %1131 = vmatpush1.msra.mxu0 0.0
  %1132 = vmatprep.subr.mxu0 0.0
  %1133 = vmatpush1.msra.mxu0 0.0
  %1134 = vmatprep.subr.mxu0 0.0
  %1135 = vmatpush1.msra.mxu0 0.0
  %1136 = vmatprep.mubr.f32.mxu0 0.0
  %1137 = vmatmul.mubr.f32.gmra.mrb[0].mxu0 %v1070
  %v1138 = vpop.f32.mrb[0].mxu0
  %v1139 = vadd.f32 0.0, %v1138
  %v1140 = vpop.f32.mrb[0].mxu0
  %1141 = vdwg.mxu0
  %1142 = vrot.lane.b32.xlu0 %v1054, 80
  %v1143 = vpop.permute.xlu0 %1142
  %v1145 = vsel %vm139, %v1139, %v1143
  %v1146 = vld [vmem:[%s4] sm:$0xff]
  %v1147 = vld [vmem:[%s4 + $0x8] sm:$0xff]
  %v1148 = vld [vmem:[%s4 + $0x10] sm:$0xff]
  %v1149 = vld [vmem:[%s4 + $0x18] sm:$0xff]
  %v1150 = vld [vmem:[%s4 + $0x20] sm:$0xff]
  %v1151 = vld [vmem:[%s4 + $0x28] sm:$0xff]
  %v1152 = vld [vmem:[%s5] sm:$0x1]
  %v1154 = vlaneseq
  %v1155 = vshrl.u32 %v1154, 7
  %v1156 = vsub.s32 0, %v1155
  %v1157 = vrot.slane %v1152, %v1156
  %v1160 = vsel %vm65, %v1145, 0
  %1162 = vmatprep.subr.mxu0 0.0
  %1163 = vmatpush1.msra.mxu0 %v1146
  %1164 = vmatprep.subr.mxu0 0.0
  %1165 = vmatpush1.msra.mxu0 %v1147
  %1166 = vmatprep.subr.mxu0 0.0
  %1167 = vmatpush1.msra.mxu0 %v1148
  %1168 = vmatprep.subr.mxu0 0.0
  %1169 = vmatpush1.msra.mxu0 %v1149
  %1170 = vmatprep.subr.mxu0 0.0
  %1171 = vmatpush1.msra.mxu0 %v1150
  %1172 = vmatprep.subr.mxu0 0.0
  %1173 = vmatpush1.msra.mxu0 %v1151
  %1174 = vmatprep.subr.mxu0 0.0
  %1175 = vmatpush1.msra.mxu0 0.0
  %1176 = vmatprep.subr.mxu0 0.0
  %1177 = vmatpush1.msra.mxu0 0.0
  %1178 = vmatprep.subr.mxu0 0.0
  %1179 = vmatpush1.msra.mxu0 0.0
  %1180 = vmatprep.subr.mxu0 0.0
  %1181 = vmatpush1.msra.mxu0 0.0
  %1182 = vmatprep.subr.mxu0 0.0
  %1183 = vmatpush1.msra.mxu0 0.0
  %1184 = vmatprep.subr.mxu0 0.0
  %1185 = vmatpush1.msra.mxu0 0.0
  %1186 = vmatprep.subr.mxu0 0.0
  %1187 = vmatpush1.msra.mxu0 0.0
  %1188 = vmatprep.subr.mxu0 0.0
  %1189 = vmatpush1.msra.mxu0 0.0
  %1190 = vmatprep.subr.mxu0 0.0
  %1191 = vmatpush1.msra.mxu0 0.0
  %1192 = vmatprep.subr.mxu0 0.0
  %1193 = vmatpush1.msra.mxu0 0.0
  %1194 = vmatprep.subr.mxu0 0.0
  %1195 = vmatpush1.msra.mxu0 0.0
  %1196 = vmatprep.subr.mxu0 0.0
  %1197 = vmatpush1.msra.mxu0 0.0
  %1198 = vmatprep.subr.mxu0 0.0
  %1199 = vmatpush1.msra.mxu0 0.0
  %1200 = vmatprep.subr.mxu0 0.0
  %1201 = vmatpush1.msra.mxu0 0.0
  %1202 = vmatprep.subr.mxu0 0.0
  %1203 = vmatpush1.msra.mxu0 0.0
  %1204 = vmatprep.subr.mxu0 0.0
  %1205 = vmatpush1.msra.mxu0 0.0
  %1206 = vmatprep.subr.mxu0 0.0
  %1207 = vmatpush1.msra.mxu0 0.0
  %1208 = vmatprep.subr.mxu0 0.0
  %1209 = vmatpush1.msra.mxu0 0.0
  %1210 = vmatprep.subr.mxu0 0.0
  %1211 = vmatpush1.msra.mxu0 0.0
  %1212 = vmatprep.subr.mxu0 0.0
  %1213 = vmatpush1.msra.mxu0 0.0
  %1214 = vmatprep.subr.mxu0 0.0
  %1215 = vmatpush1.msra.mxu0 0.0
  %1216 = vmatprep.subr.mxu0 0.0
  %1217 = vmatpush1.msra.mxu0 0.0
  %1218 = vmatprep.subr.mxu0 0.0
  %1219 = vmatpush1.msra.mxu0 0.0
  %1220 = vmatprep.subr.mxu0 0.0
  %1221 = vmatpush1.msra.mxu0 0.0
  %1222 = vmatprep.subr.mxu0 0.0
  %1223 = vmatpush1.msra.mxu0 0.0
  %1224 = vmatprep.subr.mxu0 0.0
  %1225 = vmatpush1.msra.mxu0 0.0
  %1226 = vmatprep.mubr.f32.mxu0 0.0
  %1227 = vmatmul.mubr.f32.gmra.mrb[0].mxu0 %v1160
  %v1228 = vpop.f32.mrb[0].mxu0
  %v1229 = vadd.f32 %v1157, %v1228
  %v1230 = vpop.f32.mrb[0].mxu0
  %1231 = vdwg.mxu0
  %v1232 = vxor.u32 %v1229, 2147483648
  %v1233 = vmul.f32 %v1232, 1.442695
  %v1234 = vpow.pop %v1233
  %v1235 = vadd.f32 %v1234, 1.0
  %v1236 = vrcp.pop %v1235
  %v1237 = vmul.f32 1.0, %v1236
  %v1238 = vtanh.pop %v1229
  %v1239 = vmul.f32 %v1237, %v1048
  %1241 = vrot.lane.b32.xlu0 %v1238, 32
  %v1242 = vpop.permute.xlu0 %1241
  %v1244 = vmul.f32 %v1237, %v1242
  %1246 = vrot.lane.b32.xlu0 %v1244, 32
  %v1247 = vpop.permute.xlu0 %1246
  %v1249 = vadd.f32 %v1239, %v1247
  %v1250 = vtanh.pop %v1249
  %1252 = vrot.lane.b32.xlu0 %v1250, 32
  %v1253 = vpop.permute.xlu0 %1252
  %v1255 = vmul.f32 %v1237, %v1253
  %1257 = vrot.lane.b32.xlu0 %v1255, 64
  %v1258 = vpop.permute.xlu0 %1257
  %s1260 = scalar_lea.vmem [#allocation2], 40
  %1261 = vst.msk [vmem:[%s1260] sm:$0xff] %vm255, %v1258
  %s1262 = scalar_lea.vmem %s1, 48
  %v1263 = vld [vmem:[%s1262] sm:$0xff]
  %1264 = vset.pattern.permute.xlu0 0
  %1265 = vperm.xlu0 %1264, %v1263
  %v1266 = vpop.permute.xlu0 %1265
  %vm1267 = vcmp.eq.s32.totalorder %v43, %v1266
  %v1268 = vsel %vm1267, 1, 0
  %v1269 = vcvt.s32.f32 %v1268
  %v1271 = vsel %vm65, %v1269, 0
  %1273 = vmatprep.subr.mxu0 0.0
  %1274 = vmatpush1.msra.mxu0 %v44
  %1275 = vmatprep.subr.mxu0 0.0
  %1276 = vmatpush1.msra.mxu0 %v45
  %1277 = vmatprep.subr.mxu0 0.0
  %1278 = vmatpush1.msra.mxu0 %v46
  %1279 = vmatprep.subr.mxu0 0.0
  %1280 = vmatpush1.msra.mxu0 %v47
  %1281 = vmatprep.subr.mxu0 0.0
  %1282 = vmatpush1.msra.mxu0 %v48
  %1283 = vmatprep.subr.mxu0 0.0
  %1284 = vmatpush1.msra.mxu0 %v49
  %1285 = vmatprep.subr.mxu0 0.0
  %1286 = vmatpush1.msra.mxu0 0.0
  %1287 = vmatprep.subr.mxu0 0.0
  %1288 = vmatpush1.msra.mxu0 0.0
  %1289 = vmatprep.subr.mxu0 0.0
  %1290 = vmatpush1.msra.mxu0 0.0
  %1291 = vmatprep.subr.mxu0 0.0
  %1292 = vmatpush1.msra.mxu0 0.0
  %1293 = vmatprep.subr.mxu0 0.0
  %1294 = vmatpush1.msra.mxu0 0.0
  %1295 = vmatprep.subr.mxu0 0.0
  %1296 = vmatpush1.msra.mxu0 0.0
  %1297 = vmatprep.subr.mxu0 0.0
  %1298 = vmatpush1.msra.mxu0 0.0
  %1299 = vmatprep.subr.mxu0 0.0
  %1300 = vmatpush1.msra.mxu0 0.0
  %1301 = vmatprep.subr.mxu0 0.0
  %1302 = vmatpush1.msra.mxu0 0.0
  %1303 = vmatprep.subr.mxu0 0.0
  %1304 = vmatpush1.msra.mxu0 0.0
  %1305 = vmatprep.subr.mxu0 0.0
  %1306 = vmatpush1.msra.mxu0 0.0
  %1307 = vmatprep.subr.mxu0 0.0
  %1308 = vmatpush1.msra.mxu0 0.0
  %1309 = vmatprep.subr.mxu0 0.0
  %1310 = vmatpush1.msra.mxu0 0.0
  %1311 = vmatprep.subr.mxu0 0.0
  %1312 = vmatpush1.msra.mxu0 0.0
  %1313 = vmatprep.subr.mxu0 0.0
  %1314 = vmatpush1.msra.mxu0 0.0
  %1315 = vmatprep.subr.mxu0 0.0
  %1316 = vmatpush1.msra.mxu0 0.0
  %1317 = vmatprep.subr.mxu0 0.0
  %1318 = vmatpush1.msra.mxu0 0.0
  %1319 = vmatprep.subr.mxu0 0.0
  %1320 = vmatpush1.msra.mxu0 0.0
  %1321 = vmatprep.subr.mxu0 0.0
  %1322 = vmatpush1.msra.mxu0 0.0
  %1323 = vmatprep.subr.mxu0 0.0
  %1324 = vmatpush1.msra.mxu0 0.0
  %1325 = vmatprep.subr.mxu0 0.0
  %1326 = vmatpush1.msra.mxu0 0.0
  %1327 = vmatprep.subr.mxu0 0.0
  %1328 = vmatpush1.msra.mxu0 0.0
  %1329 = vmatprep.subr.mxu0 0.0
  %1330 = vmatpush1.msra.mxu0 0.0
  %1331 = vmatprep.subr.mxu0 0.0
  %1332 = vmatpush1.msra.mxu0 0.0
  %1333 = vmatprep.subr.mxu0 0.0
  %1334 = vmatpush1.msra.mxu0 0.0
  %1335 = vmatprep.subr.mxu0 0.0
  %1336 = vmatpush1.msra.mxu0 0.0
  %1337 = vmatprep.mubr.f32.mxu0 0.0
  %1338 = vmatmul.mubr.f32.gmra.mrb[0].mxu0 %v1271
  %v1339 = vpop.f32.mrb[0].mxu0
  %v1340 = vadd.f32 0.0, %v1339
  %v1341 = vpop.f32.mrb[0].mxu0
  %1342 = vdwg.mxu0
  %1343 = vrot.lane.b32.xlu0 %v1255, 80
  %v1344 = vpop.permute.xlu0 %1343
  %v1346 = vsel %vm139, %v1340, %v1344
  %v1347 = vld [vmem:[%s4] sm:$0xff]
  %v1348 = vld [vmem:[%s4 + $0x8] sm:$0xff]
  %v1349 = vld [vmem:[%s4 + $0x10] sm:$0xff]
  %v1350 = vld [vmem:[%s4 + $0x18] sm:$0xff]
  %v1351 = vld [vmem:[%s4 + $0x20] sm:$0xff]
  %v1352 = vld [vmem:[%s4 + $0x28] sm:$0xff]
  %v1353 = vld [vmem:[%s5] sm:$0x1]
  %v1355 = vlaneseq
  %v1356 = vshrl.u32 %v1355, 7
  %v1357 = vsub.s32 0, %v1356
  %v1358 = vrot.slane %v1353, %v1357
  %v1361 = vsel %vm65, %v1346, 0
  %1363 = vmatprep.subr.mxu0 0.0
  %1364 = vmatpush1.msra.mxu0 %v1347
  %1365 = vmatprep.subr.mxu0 0.0
  %1366 = vmatpush1.msra.mxu0 %v1348
  %1367 = vmatprep.subr.mxu0 0.0
  %1368 = vmatpush1.msra.mxu0 %v1349
  %1369 = vmatprep.subr.mxu0 0.0
  %1370 = vmatpush1.msra.mxu0 %v1350
  %1371 = vmatprep.subr.mxu0 0.0
  %1372 = vmatpush1.msra.mxu0 %v1351
  %1373 = vmatprep.subr.mxu0 0.0
  %1374 = vmatpush1.msra.mxu0 %v1352
  %1375 = vmatprep.subr.mxu0 0.0
  %1376 = vmatpush1.msra.mxu0 0.0
  %1377 = vmatprep.subr.mxu0 0.0
  %1378 = vmatpush1.msra.mxu0 0.0
  %1379 = vmatprep.subr.mxu0 0.0
  %1380 = vmatpush1.msra.mxu0 0.0
  %1381 = vmatprep.subr.mxu0 0.0
  %1382 = vmatpush1.msra.mxu0 0.0
  %1383 = vmatprep.subr.mxu0 0.0
  %1384 = vmatpush1.msra.mxu0 0.0
  %1385 = vmatprep.subr.mxu0 0.0
  %1386 = vmatpush1.msra.mxu0 0.0
  %1387 = vmatprep.subr.mxu0 0.0
  %1388 = vmatpush1.msra.mxu0 0.0
  %1389 = vmatprep.subr.mxu0 0.0
  %1390 = vmatpush1.msra.mxu0 0.0
  %1391 = vmatprep.subr.mxu0 0.0
  %1392 = vmatpush1.msra.mxu0 0.0
  %1393 = vmatprep.subr.mxu0 0.0
  %1394 = vmatpush1.msra.mxu0 0.0
  %1395 = vmatprep.subr.mxu0 0.0
  %1396 = vmatpush1.msra.mxu0 0.0
  %1397 = vmatprep.subr.mxu0 0.0
  %1398 = vmatpush1.msra.mxu0 0.0
  %1399 = vmatprep.subr.mxu0 0.0
  %1400 = vmatpush1.msra.mxu0 0.0
  %1401 = vmatprep.subr.mxu0 0.0
  %1402 = vmatpush1.msra.mxu0 0.0
  %1403 = vmatprep.subr.mxu0 0.0
  %1404 = vmatpush1.msra.mxu0 0.0
  %1405 = vmatprep.subr.mxu0 0.0
  %1406 = vmatpush1.msra.mxu0 0.0
  %1407 = vmatprep.subr.mxu0 0.0
  %1408 = vmatpush1.msra.mxu0 0.0
  %1409 = vmatprep.subr.mxu0 0.0
  %1410 = vmatpush1.msra.mxu0 0.0
  %1411 = vmatprep.subr.mxu0 0.0
  %1412 = vmatpush1.msra.mxu0 0.0
  %1413 = vmatprep.subr.mxu0 0.0
  %1414 = vmatpush1.msra.mxu0 0.0
  %1415 = vmatprep.subr.mxu0 0.0
  %1416 = vmatpush1.msra.mxu0 0.0
  %1417 = vmatprep.subr.mxu0 0.0
  %1418 = vmatpush1.msra.mxu0 0.0
  %1419 = vmatprep.subr.mxu0 0.0
  %1420 = vmatpush1.msra.mxu0 0.0
  %1421 = vmatprep.subr.mxu0 0.0
  %1422 = vmatpush1.msra.mxu0 0.0
  %1423 = vmatprep.subr.mxu0 0.0
  %1424 = vmatpush1.msra.mxu0 0.0
  %1425 = vmatprep.subr.mxu0 0.0
  %1426 = vmatpush1.msra.mxu0 0.0
  %1427 = vmatprep.mubr.f32.mxu0 0.0
  %1428 = vmatmul.mubr.f32.gmra.mrb[0].mxu0 %v1361
  %v1429 = vpop.f32.mrb[0].mxu0
  %v1430 = vadd.f32 %v1358, %v1429
  %v1431 = vpop.f32.mrb[0].mxu0
  %1432 = vdwg.mxu0
  %v1433 = vxor.u32 %v1430, 2147483648
  %v1434 = vmul.f32 %v1433, 1.442695
  %v1435 = vpow.pop %v1434
  %v1436 = vadd.f32 %v1435, 1.0
  %v1437 = vrcp.pop %v1436
  %v1438 = vmul.f32 1.0, %v1437
  %v1439 = vtanh.pop %v1430
  %v1440 = vmul.f32 %v1438, %v1249
  %1442 = vrot.lane.b32.xlu0 %v1439, 32
  %v1443 = vpop.permute.xlu0 %1442
  %v1445 = vmul.f32 %v1438, %v1443
  %1447 = vrot.lane.b32.xlu0 %v1445, 32
  %v1448 = vpop.permute.xlu0 %1447
  %v1450 = vadd.f32 %v1440, %v1448
  %v1451 = vtanh.pop %v1450
  %1453 = vrot.lane.b32.xlu0 %v1451, 32
  %v1454 = vpop.permute.xlu0 %1453
  %v1456 = vmul.f32 %v1438, %v1454
  %1458 = vrot.lane.b32.xlu0 %v1456, 64
  %v1459 = vpop.permute.xlu0 %1458
  %s1461 = scalar_lea.vmem [#allocation2], 48
  %1462 = vst.msk [vmem:[%s1461] sm:$0xff] %vm255, %v1459
  %s1463 = scalar_lea.vmem %s1, 56
  %v1464 = vld [vmem:[%s1463] sm:$0xff]
  %1465 = vset.pattern.permute.xlu0 0
  %1466 = vperm.xlu0 %1465, %v1464
  %v1467 = vpop.permute.xlu0 %1466
  %vm1468 = vcmp.eq.s32.totalorder %v43, %v1467
  %v1469 = vsel %vm1468, 1, 0
  %v1470 = vcvt.s32.f32 %v1469
  %v1472 = vsel %vm65, %v1470, 0
  %1474 = vmatprep.subr.mxu0 0.0
  %1475 = vmatpush1.msra.mxu0 %v44
  %1476 = vmatprep.subr.mxu0 0.0
  %1477 = vmatpush1.msra.mxu0 %v45
  %1478 = vmatprep.subr.mxu0 0.0
  %1479 = vmatpush1.msra.mxu0 %v46
  %1480 = vmatprep.subr.mxu0 0.0
  %1481 = vmatpush1.msra.mxu0 %v47
  %1482 = vmatprep.subr.mxu0 0.0
  %1483 = vmatpush1.msra.mxu0 %v48
  %1484 = vmatprep.subr.mxu0 0.0
  %1485 = vmatpush1.msra.mxu0 %v49
  %1486 = vmatprep.subr.mxu0 0.0
  %1487 = vmatpush1.msra.mxu0 0.0
  %1488 = vmatprep.subr.mxu0 0.0
  %1489 = vmatpush1.msra.mxu0 0.0
  %1490 = vmatprep.subr.mxu0 0.0
  %1491 = vmatpush1.msra.mxu0 0.0
  %1492 = vmatprep.subr.mxu0 0.0
  %1493 = vmatpush1.msra.mxu0 0.0
  %1494 = vmatprep.subr.mxu0 0.0
  %1495 = vmatpush1.msra.mxu0 0.0
  %1496 = vmatprep.subr.mxu0 0.0
  %1497 = vmatpush1.msra.mxu0 0.0
  %1498 = vmatprep.subr.mxu0 0.0
  %1499 = vmatpush1.msra.mxu0 0.0
  %1500 = vmatprep.subr.mxu0 0.0
  %1501 = vmatpush1.msra.mxu0 0.0
  %1502 = vmatprep.subr.mxu0 0.0
  %1503 = vmatpush1.msra.mxu0 0.0
  %1504 = vmatprep.subr.mxu0 0.0
  %1505 = vmatpush1.msra.mxu0 0.0
  %1506 = vmatprep.subr.mxu0 0.0
  %1507 = vmatpush1.msra.mxu0 0.0
  %1508 = vmatprep.subr.mxu0 0.0
  %1509 = vmatpush1.msra.mxu0 0.0
  %1510 = vmatprep.subr.mxu0 0.0
  %1511 = vmatpush1.msra.mxu0 0.0
  %1512 = vmatprep.subr.mxu0 0.0
  %1513 = vmatpush1.msra.mxu0 0.0
  %1514 = vmatprep.subr.mxu0 0.0
  %1515 = vmatpush1.msra.mxu0 0.0
  %1516 = vmatprep.subr.mxu0 0.0
  %1517 = vmatpush1.msra.mxu0 0.0
  %1518 = vmatprep.subr.mxu0 0.0
  %1519 = vmatpush1.msra.mxu0 0.0
  %1520 = vmatprep.subr.mxu0 0.0
  %1521 = vmatpush1.msra.mxu0 0.0
  %1522 = vmatprep.subr.mxu0 0.0
  %1523 = vmatpush1.msra.mxu0 0.0
  %1524 = vmatprep.subr.mxu0 0.0
  %1525 = vmatpush1.msra.mxu0 0.0
  %1526 = vmatprep.subr.mxu0 0.0
  %1527 = vmatpush1.msra.mxu0 0.0
  %1528 = vmatprep.subr.mxu0 0.0
  %1529 = vmatpush1.msra.mxu0 0.0
  %1530 = vmatprep.subr.mxu0 0.0
  %1531 = vmatpush1.msra.mxu0 0.0
  %1532 = vmatprep.subr.mxu0 0.0
  %1533 = vmatpush1.msra.mxu0 0.0
  %1534 = vmatprep.subr.mxu0 0.0
  %1535 = vmatpush1.msra.mxu0 0.0
  %1536 = vmatprep.subr.mxu0 0.0
  %1537 = vmatpush1.msra.mxu0 0.0
  %1538 = vmatprep.mubr.f32.mxu0 0.0
  %1539 = vmatmul.mubr.f32.gmra.mrb[0].mxu0 %v1472
  %v1540 = vpop.f32.mrb[0].mxu0
  %v1541 = vadd.f32 0.0, %v1540
  %v1542 = vpop.f32.mrb[0].mxu0
  %1543 = vdwg.mxu0
  %1544 = vrot.lane.b32.xlu0 %v1456, 80
  %v1545 = vpop.permute.xlu0 %1544
  %v1547 = vsel %vm139, %v1541, %v1545
  %v1548 = vld [vmem:[%s4] sm:$0xff]
  %v1549 = vld [vmem:[%s4 + $0x8] sm:$0xff]
  %v1550 = vld [vmem:[%s4 + $0x10] sm:$0xff]
  %v1551 = vld [vmem:[%s4 + $0x18] sm:$0xff]
  %v1552 = vld [vmem:[%s4 + $0x20] sm:$0xff]
  %v1553 = vld [vmem:[%s4 + $0x28] sm:$0xff]
  %v1554 = vld [vmem:[%s5] sm:$0x1]
  %v1556 = vlaneseq
  %v1557 = vshrl.u32 %v1556, 7
  %v1558 = vsub.s32 0, %v1557
  %v1559 = vrot.slane %v1554, %v1558
  %v1562 = vsel %vm65, %v1547, 0
  %1564 = vmatprep.subr.mxu0 0.0
  %1565 = vmatpush1.msra.mxu0 %v1548
  %1566 = vmatprep.subr.mxu0 0.0
  %1567 = vmatpush1.msra.mxu0 %v1549
  %1568 = vmatprep.subr.mxu0 0.0
  %1569 = vmatpush1.msra.mxu0 %v1550
  %1570 = vmatprep.subr.mxu0 0.0
  %1571 = vmatpush1.msra.mxu0 %v1551
  %1572 = vmatprep.subr.mxu0 0.0
  %1573 = vmatpush1.msra.mxu0 %v1552
  %1574 = vmatprep.subr.mxu0 0.0
  %1575 = vmatpush1.msra.mxu0 %v1553
  %1576 = vmatprep.subr.mxu0 0.0
  %1577 = vmatpush1.msra.mxu0 0.0
  %1578 = vmatprep.subr.mxu0 0.0
  %1579 = vmatpush1.msra.mxu0 0.0
  %1580 = vmatprep.subr.mxu0 0.0
  %1581 = vmatpush1.msra.mxu0 0.0
  %1582 = vmatprep.subr.mxu0 0.0
  %1583 = vmatpush1.msra.mxu0 0.0
  %1584 = vmatprep.subr.mxu0 0.0
  %1585 = vmatpush1.msra.mxu0 0.0
  %1586 = vmatprep.subr.mxu0 0.0
  %1587 = vmatpush1.msra.mxu0 0.0
  %1588 = vmatprep.subr.mxu0 0.0
  %1589 = vmatpush1.msra.mxu0 0.0
  %1590 = vmatprep.subr.mxu0 0.0
  %1591 = vmatpush1.msra.mxu0 0.0
  %1592 = vmatprep.subr.mxu0 0.0
  %1593 = vmatpush1.msra.mxu0 0.0
  %1594 = vmatprep.subr.mxu0 0.0
  %1595 = vmatpush1.msra.mxu0 0.0
  %1596 = vmatprep.subr.mxu0 0.0
  %1597 = vmatpush1.msra.mxu0 0.0
  %1598 = vmatprep.subr.mxu0 0.0
  %1599 = vmatpush1.msra.mxu0 0.0
  %1600 = vmatprep.subr.mxu0 0.0
  %1601 = vmatpush1.msra.mxu0 0.0
  %1602 = vmatprep.subr.mxu0 0.0
  %1603 = vmatpush1.msra.mxu0 0.0
  %1604 = vmatprep.subr.mxu0 0.0
  %1605 = vmatpush1.msra.mxu0 0.0
  %1606 = vmatprep.subr.mxu0 0.0
  %1607 = vmatpush1.msra.mxu0 0.0
  %1608 = vmatprep.subr.mxu0 0.0
  %1609 = vmatpush1.msra.mxu0 0.0
  %1610 = vmatprep.subr.mxu0 0.0
  %1611 = vmatpush1.msra.mxu0 0.0
  %1612 = vmatprep.subr.mxu0 0.0
  %1613 = vmatpush1.msra.mxu0 0.0
  %1614 = vmatprep.subr.mxu0 0.0
  %1615 = vmatpush1.msra.mxu0 0.0
  %1616 = vmatprep.subr.mxu0 0.0
  %1617 = vmatpush1.msra.mxu0 0.0
  %1618 = vmatprep.subr.mxu0 0.0
  %1619 = vmatpush1.msra.mxu0 0.0
  %1620 = vmatprep.subr.mxu0 0.0
  %1621 = vmatpush1.msra.mxu0 0.0
  %1622 = vmatprep.subr.mxu0 0.0
  %1623 = vmatpush1.msra.mxu0 0.0
  %1624 = vmatprep.subr.mxu0 0.0
  %1625 = vmatpush1.msra.mxu0 0.0
  %1626 = vmatprep.subr.mxu0 0.0
  %1627 = vmatpush1.msra.mxu0 0.0
  %1628 = vmatprep.mubr.f32.mxu0 0.0
  %1629 = vmatmul.mubr.f32.gmra.mrb[0].mxu0 %v1562
  %v1630 = vpop.f32.mrb[0].mxu0
  %v1631 = vadd.f32 %v1559, %v1630
  %v1632 = vpop.f32.mrb[0].mxu0
  %1633 = vdwg.mxu0
  %v1634 = vxor.u32 %v1631, 2147483648
  %v1635 = vmul.f32 %v1634, 1.442695
  %v1636 = vpow.pop %v1635
  %v1637 = vadd.f32 %v1636, 1.0
  %v1638 = vrcp.pop %v1637
  %v1639 = vmul.f32 1.0, %v1638
  %v1640 = vtanh.pop %v1631
  %v1641 = vmul.f32 %v1639, %v1450
  %1643 = vrot.lane.b32.xlu0 %v1640, 32
  %v1644 = vpop.permute.xlu0 %1643
  %v1646 = vmul.f32 %v1639, %v1644
  %1648 = vrot.lane.b32.xlu0 %v1646, 32
  %v1649 = vpop.permute.xlu0 %1648
  %v1651 = vadd.f32 %v1641, %v1649
  %v1652 = vtanh.pop %v1651
  %1654 = vrot.lane.b32.xlu0 %v1652, 32
  %v1655 = vpop.permute.xlu0 %1654
  %v1657 = vmul.f32 %v1639, %v1655
  %1659 = vrot.lane.b32.xlu0 %v1657, 64
  %v1660 = vpop.permute.xlu0 %1659
  %s1662 = scalar_lea.vmem [#allocation2], 56
  %1663 = vst.msk [vmem:[%s1662] sm:$0xff] %vm255, %v1660
  %v1664 = vld [vmem:[#allocation2] sm:$0xff]
  %v1665 = vld [vmem:[#allocation2 + $0x8] sm:$0xff]
  %v1666 = vld [vmem:[#allocation2 + $0x10] sm:$0xff]
  %v1667 = vld [vmem:[#allocation2 + $0x18] sm:$0xff]
  %v1668 = vld [vmem:[#allocation2 + $0x20] sm:$0xff]
  %v1669 = vld [vmem:[#allocation2 + $0x28] sm:$0xff]
  %v1670 = vld [vmem:[#allocation2 + $0x30] sm:$0xff]
  %v1671 = vld [vmem:[#allocation2 + $0x38] sm:$0xff]
  %vm1672 = vcmask 523264
  %1673 = vst.msk [vmem:[%s11] sm:$0xff] %vm1672, 0.0
  %v1674 = vld [vmem:[%s2] sm:$0xff]
  %1675 = vset.pattern.permute.xlu0 0
  %1676 = vperm.xlu0 %1675, %v1674
  %v1677 = vpop.permute.xlu0 %1676
  %vm1678 = vcmp.eq.s32.totalorder %v43, %v1677
  %v1679 = vsel %vm1678, 1, 0
  %v1680 = vcvt.s32.f32 %v1679
  %v1682 = vsel %vm1672, %v1680, 0
  %1684 = vmatprep.subr.mxu0 0.0
  %1685 = vmatpush1.msra.mxu0 %v50
  %1686 = vmatprep.subr.mxu0 0.0
  %1687 = vmatpush1.msra.mxu0 %v51
  %1688 = vmatprep.subr.mxu0 0.0
  %1689 = vmatpush1.msra.mxu0 %v52
  %1690 = vmatprep.subr.mxu0 0.0
  %1691 = vmatpush1.msra.mxu0 %v53
  %1692 = vmatprep.subr.mxu0 0.0
  %1693 = vmatpush1.msra.mxu0 %v54
  %1694 = vmatprep.subr.mxu0 0.0
  %1695 = vmatpush1.msra.mxu0 %v55
  %1696 = vmatprep.subr.mxu0 0.0
  %1697 = vmatpush1.msra.mxu0 %v56
  %1698 = vmatprep.subr.mxu0 0.0
  %1699 = vmatpush1.msra.mxu0 %v57
  %1700 = vmatprep.subr.mxu0 0.0
  %1701 = vmatpush1.msra.mxu0 0.0
  %1702 = vmatprep.subr.mxu0 0.0
  %1703 = vmatpush1.msra.mxu0 0.0
  %1704 = vmatprep.subr.mxu0 0.0
  %1705 = vmatpush1.msra.mxu0 0.0
  %1706 = vmatprep.subr.mxu0 0.0
  %1707 = vmatpush1.msra.mxu0 0.0
  %1708 = vmatprep.subr.mxu0 0.0
  %1709 = vmatpush1.msra.mxu0 0.0
  %1710 = vmatprep.subr.mxu0 0.0
  %1711 = vmatpush1.msra.mxu0 0.0
  %1712 = vmatprep.subr.mxu0 0.0
  %1713 = vmatpush1.msra.mxu0 0.0
  %1714 = vmatprep.subr.mxu0 0.0
  %1715 = vmatpush1.msra.mxu0 0.0
  %1716 = vmatprep.subr.mxu0 0.0
  %1717 = vmatpush1.msra.mxu0 0.0
  %1718 = vmatprep.subr.mxu0 0.0
  %1719 = vmatpush1.msra.mxu0 0.0
  %1720 = vmatprep.subr.mxu0 0.0
  %1721 = vmatpush1.msra.mxu0 0.0
  %1722 = vmatprep.subr.mxu0 0.0
  %1723 = vmatpush1.msra.mxu0 0.0
  %1724 = vmatprep.subr.mxu0 0.0
  %1725 = vmatpush1.msra.mxu0 0.0
  %1726 = vmatprep.subr.mxu0 0.0
  %1727 = vmatpush1.msra.mxu0 0.0
  %1728 = vmatprep.subr.mxu0 0.0
  %1729 = vmatpush1.msra.mxu0 0.0
  %1730 = vmatprep.subr.mxu0 0.0
  %1731 = vmatpush1.msra.mxu0 0.0
  %1732 = vmatprep.subr.mxu0 0.0
  %1733 = vmatpush1.msra.mxu0 0.0
  %1734 = vmatprep.subr.mxu0 0.0
  %1735 = vmatpush1.msra.mxu0 0.0
  %1736 = vmatprep.subr.mxu0 0.0
  %1737 = vmatpush1.msra.mxu0 0.0
  %1738 = vmatprep.subr.mxu0 0.0
  %1739 = vmatpush1.msra.mxu0 0.0
  %1740 = vmatprep.subr.mxu0 0.0
  %1741 = vmatpush1.msra.mxu0 0.0
  %1742 = vmatprep.subr.mxu0 0.0
  %1743 = vmatpush1.msra.mxu0 0.0
  %1744 = vmatprep.subr.mxu0 0.0
  %1745 = vmatpush1.msra.mxu0 0.0
  %1746 = vmatprep.subr.mxu0 0.0
  %1747 = vmatpush1.msra.mxu0 0.0
  %1748 = vmatprep.mubr.f32.mxu0 0.0
  %1749 = vmatmul.mubr.f32.gmra.mrb[0].mxu0 %v1682
  %v1750 = vpop.f32.mrb[0].mxu0
  %v1751 = vadd.f32 0.0, %v1750
  %v1752 = vpop.f32.mrb[0].mxu0
  %1753 = vdwg.mxu0
  %v1754 = vmul.f32 %v1664, %v1660
  %v1755 = vmul.f32 %v1665, %v1660
  %v1756 = vmul.f32 %v1666, %v1660
  %v1757 = vmul.f32 %v1667, %v1660
  %v1758 = vmul.f32 %v1668, %v1660
  %v1759 = vmul.f32 %v1669, %v1660
  %v1760 = vmul.f32 %v1670, %v1660
  %v1761 = vmul.f32 %v1671, %v1660
  %v1762 = vsel %vm255, %v1754, 0.0
  %1763 = vadd.xlane.f32.xlu0 %v1762
  %v1764 = vpop.xlane.xlu0 %1763
  %v1765 = vsel %vm255, %v1755, 0.0
  %1766 = vadd.xlane.f32.xlu0 %v1765
  %v1767 = vpop.xlane.xlu0 %1766
  %v1768 = vsel %vm255, %v1756, 0.0
  %1769 = vadd.xlane.f32.xlu0 %v1768
  %v1770 = vpop.xlane.xlu0 %1769
  %v1771 = vsel %vm255, %v1757, 0.0
  %1772 = vadd.xlane.f32.xlu0 %v1771
  %v1773 = vpop.xlane.xlu0 %1772
  %v1774 = vsel %vm255, %v1758, 0.0
  %1775 = vadd.xlane.f32.xlu0 %v1774
  %v1776 = vpop.xlane.xlu0 %1775
  %v1777 = vsel %vm255, %v1759, 0.0
  %1778 = vadd.xlane.f32.xlu0 %v1777
  %v1779 = vpop.xlane.xlu0 %1778
  %v1780 = vsel %vm255, %v1760, 0.0
  %1781 = vadd.xlane.f32.xlu0 %v1780
  %v1782 = vpop.xlane.xlu0 %1781
  %v1783 = vsel %vm255, %v1761, 0.0
  %1784 = vadd.xlane.f32.xlu0 %v1783
  %v1785 = vpop.xlane.xlu0 %1784
  %v1786 = vmax.f32 %v1764, %v1776
  %v1787 = vmax.f32 %v1767, %v1779
  %v1788 = vmax.f32 %v1770, %v1782
  %v1789 = vmax.f32 %v1773, %v1785
  %v1790 = vmax.f32 %v1786, %v1787
  %v1791 = vmax.f32 %v1788, %v1789
  %v1792 = vmax.f32 %v1790, %v1791
  %v1793 = vsub.f32 %v1764, %v1792
  %v1794 = vsub.f32 %v1767, %v1792
  %v1795 = vsub.f32 %v1770, %v1792
  %v1796 = vsub.f32 %v1773, %v1792
  %v1797 = vsub.f32 %v1776, %v1792
  %v1798 = vsub.f32 %v1779, %v1792
  %v1799 = vsub.f32 %v1782, %v1792
  %v1800 = vsub.f32 %v1785, %v1792
  %v1801 = vmul.f32 %v1793, 1.442695
  %v1802 = vpow.pop %v1801
  %v1803 = vmul.f32 %v1794, 1.442695
  %v1804 = vpow.pop %v1803
  %v1805 = vmul.f32 %v1795, 1.442695
  %v1806 = vpow.pop %v1805
  %v1807 = vmul.f32 %v1796, 1.442695
  %v1808 = vpow.pop %v1807
  %v1809 = vmul.f32 %v1797, 1.442695
  %v1810 = vpow.pop %v1809
  %v1811 = vmul.f32 %v1798, 1.442695
  %v1812 = vpow.pop %v1811
  %v1813 = vmul.f32 %v1799, 1.442695
  %v1814 = vpow.pop %v1813
  %v1815 = vmul.f32 %v1800, 1.442695
  %v1816 = vpow.pop %v1815
  %v1817 = vadd.f32 %v1802, %v1804
  %v1818 = vadd.f32 %v1817, %v1806
  %v1819 = vadd.f32 %v1818, %v1808
  %v1820 = vadd.f32 %v1819, %v1810
  %v1821 = vadd.f32 %v1820, %v1812
  %v1822 = vadd.f32 %v1821, %v1814
  %v1823 = vadd.f32 %v1822, %v1816
  %v1824 = vrcp.pop %v1823
  %v1825 = vmul.f32 %v1802, %v1824
  %v1826 = vmul.f32 %v1804, %v1824
  %v1827 = vmul.f32 %v1806, %v1824
  %v1828 = vmul.f32 %v1808, %v1824
  %v1829 = vmul.f32 %v1810, %v1824
  %v1830 = vmul.f32 %v1812, %v1824
  %v1831 = vmul.f32 %v1814, %v1824
  %v1832 = vmul.f32 %v1816, %v1824
  %v1833 = vmul.f32 %v1825, %v1664
  %v1834 = vmul.f32 %v1826, %v1665
  %v1835 = vmul.f32 %v1827, %v1666
  %v1836 = vmul.f32 %v1828, %v1667
  %v1837 = vmul.f32 %v1829, %v1668
  %v1838 = vmul.f32 %v1830, %v1669
  %v1839 = vmul.f32 %v1831, %v1670
  %v1840 = vmul.f32 %v1832, %v1671
  %v1841 = vsel %vm255, %v1833, 0.0
  %v1842 = vsel %vm255, %v1834, 0.0
  %v1843 = vadd.f32 %v1841, %v1842
  %v1844 = vsel %vm255, %v1835, 0.0
  %v1845 = vadd.f32 %v1843, %v1844
  %v1846 = vsel %vm255, %v1836, 0.0
  %v1847 = vadd.f32 %v1845, %v1846
  %v1848 = vsel %vm255, %v1837, 0.0
  %v1849 = vadd.f32 %v1847, %v1848
  %v1850 = vsel %vm255, %v1838, 0.0
  %v1851 = vadd.f32 %v1849, %v1850
  %v1852 = vsel %vm255, %v1839, 0.0
  %v1853 = vadd.f32 %v1851, %v1852
  %v1854 = vsel %vm255, %v1840, 0.0
  %v1855 = vadd.f32 %v1853, %v1854
  %1857 = vrot.lane.b32.xlu0 %v1855, 16
  %v1858 = vpop.permute.xlu0 %1857
  %1860 = vrot.lane.b32.xlu0 %v1657, 112
  %v1861 = vpop.permute.xlu0 %1860
  %v1863 = vsel %vm139, %v1751, %v1858
  %v1864 = vsel %vm65, %v1863, %v1861
  %v1865 = vld [vmem:[%s7] sm:$0xff]
  %v1866 = vld [vmem:[%s7 + $0x8] sm:$0xff]
  %v1867 = vld [vmem:[%s7 + $0x10] sm:$0xff]
  %v1868 = vld [vmem:[%s7 + $0x18] sm:$0xff]
  %v1869 = vld [vmem:[%s7 + $0x20] sm:$0xff]
  %v1870 = vld [vmem:[%s7 + $0x28] sm:$0xff]
  %v1871 = vld [vmem:[%s7 + $0x30] sm:$0xff]
  %v1872 = vld [vmem:[%s7 + $0x38] sm:$0xff]
  %v1873 = vld [vmem:[%s7 + $0x40] sm:$0xff]
  %v1874 = vld [vmem:[%s7 + $0x48] sm:$0xff]
  %v1875 = vld [vmem:[%s8] sm:$0x1]
  %v1877 = vlaneseq
  %v1878 = vshrl.u32 %v1877, 7
  %v1879 = vsub.s32 0, %v1878
  %v1880 = vrot.slane %v1875, %v1879
  %vm1882 = vcmask 654336
  %v1884 = vsel %vm1882, %v1864, 0
  %1886 = vmatprep.subr.mxu0 0.0
  %1887 = vmatpush1.msra.mxu0 %v1865
  %1888 = vmatprep.subr.mxu0 0.0
  %1889 = vmatpush1.msra.mxu0 %v1866
  %1890 = vmatprep.subr.mxu0 0.0
  %1891 = vmatpush1.msra.mxu0 %v1867
  %1892 = vmatprep.subr.mxu0 0.0
  %1893 = vmatpush1.msra.mxu0 %v1868
  %1894 = vmatprep.subr.mxu0 0.0
  %1895 = vmatpush1.msra.mxu0 %v1869
  %1896 = vmatprep.subr.mxu0 0.0
  %1897 = vmatpush1.msra.mxu0 %v1870
  %1898 = vmatprep.subr.mxu0 0.0
  %1899 = vmatpush1.msra.mxu0 %v1871
  %1900 = vmatprep.subr.mxu0 0.0
  %1901 = vmatpush1.msra.mxu0 %v1872
  %1902 = vmatprep.subr.mxu0 0.0
  %1903 = vmatpush1.msra.mxu0 %v1873
  %1904 = vmatprep.subr.mxu0 0.0
  %1905 = vmatpush1.msra.mxu0 %v1874
  %1906 = vmatprep.subr.mxu0 0.0
  %1907 = vmatpush1.msra.mxu0 0.0
  %1908 = vmatprep.subr.mxu0 0.0
  %1909 = vmatpush1.msra.mxu0 0.0
  %1910 = vmatprep.subr.mxu0 0.0
  %1911 = vmatpush1.msra.mxu0 0.0
  %1912 = vmatprep.subr.mxu0 0.0
  %1913 = vmatpush1.msra.mxu0 0.0
  %1914 = vmatprep.subr.mxu0 0.0
  %1915 = vmatpush1.msra.mxu0 0.0
  %1916 = vmatprep.subr.mxu0 0.0
  %1917 = vmatpush1.msra.mxu0 0.0
  %1918 = vmatprep.subr.mxu0 0.0
  %1919 = vmatpush1.msra.mxu0 0.0
  %1920 = vmatprep.subr.mxu0 0.0
  %1921 = vmatpush1.msra.mxu0 0.0
  %1922 = vmatprep.subr.mxu0 0.0
  %1923 = vmatpush1.msra.mxu0 0.0
  %1924 = vmatprep.subr.mxu0 0.0
  %1925 = vmatpush1.msra.mxu0 0.0
  %1926 = vmatprep.subr.mxu0 0.0
  %1927 = vmatpush1.msra.mxu0 0.0
  %1928 = vmatprep.subr.mxu0 0.0
  %1929 = vmatpush1.msra.mxu0 0.0
  %1930 = vmatprep.subr.mxu0 0.0
  %1931 = vmatpush1.msra.mxu0 0.0
  %1932 = vmatprep.subr.mxu0 0.0
  %1933 = vmatpush1.msra.mxu0 0.0
  %1934 = vmatprep.subr.mxu0 0.0
  %1935 = vmatpush1.msra.mxu0 0.0
  %1936 = vmatprep.subr.mxu0 0.0
  %1937 = vmatpush1.msra.mxu0 0.0
  %1938 = vmatprep.subr.mxu0 0.0
  %1939 = vmatpush1.msra.mxu0 0.0
  %1940 = vmatprep.subr.mxu0 0.0
  %1941 = vmatpush1.msra.mxu0 0.0
  %1942 = vmatprep.subr.mxu0 0.0
  %1943 = vmatpush1.msra.mxu0 0.0
  %1944 = vmatprep.subr.mxu0 0.0
  %1945 = vmatpush1.msra.mxu0 0.0
  %1946 = vmatprep.subr.mxu0 0.0
  %1947 = vmatpush1.msra.mxu0 0.0
  %1948 = vmatprep.subr.mxu0 0.0
  %1949 = vmatpush1.msra.mxu0 0.0
  %1950 = vmatprep.mubr.f32.mxu0 0.0
  %1951 = vmatmul.mubr.f32.gmra.mrb[0].mxu0 %v1884
  %v1952 = vpop.f32.mrb[0].mxu0
  %v1953 = vadd.f32 %v1880, %v1952
  %v1954 = vpop.f32.mrb[0].mxu0
  %1955 = vdwg.mxu0
  %v1956 = vxor.u32 %v1953, 2147483648
  %v1957 = vmul.f32 %v1956, 1.442695
  %v1958 = vpow.pop %v1957
  %v1959 = vadd.f32 %v1958, 1.0
  %v1960 = vrcp.pop %v1959
  %v1961 = vmul.f32 1.0, %v1960
  %v1962 = vtanh.pop %v1953
  %v1963 = vmul.f32 %v1961, %v1651
  %1965 = vrot.lane.b32.xlu0 %v1962, 32
  %v1966 = vpop.permute.xlu0 %1965
  %v1968 = vmul.f32 %v1961, %v1966
  %1970 = vrot.lane.b32.xlu0 %v1968, 32
  %v1971 = vpop.permute.xlu0 %1970
  %v1973 = vadd.f32 %v1963, %v1971
  %v1974 = vtanh.pop %v1973
  %1976 = vrot.lane.b32.xlu0 %v1974, 32
  %v1977 = vpop.permute.xlu0 %1976
  %v1979 = vmul.f32 %v1961, %v1977
  %1981 = vrot.lane.b32.xlu0 %v1979, 64
  %v1982 = vpop.permute.xlu0 %1981
  %1984 = vrot.lane.b32.xlu0 %v1855, 32
  %v1985 = vpop.permute.xlu0 %1984
  %v1987 = vsel %vm255, %v1982, %v1985
  %v1988 = vld [vmem:[%s9] sm:$0xff]
  %v1989 = vld [vmem:[%s9 + $0x8] sm:$0xff]
  %v1990 = vld [vmem:[%s9 + $0x10] sm:$0xff]
  %v1991 = vld [vmem:[%s9 + $0x18] sm:$0xff]
  %v1992 = vld [vmem:[%s9 + $0x20] sm:$0xff]
  %v1993 = vld [vmem:[%s9 + $0x28] sm:$0xff]
  %v1994 = vld [vmem:[%s9 + $0x30] sm:$0xff]
  %v1995 = vld [vmem:[%s9 + $0x38] sm:$0xff]
  %v1996 = vld [vmem:[%s10] sm:$0x1]
  %v1998 = vlaneseq
  %v1999 = vshrl.u32 %v1998, 7
  %v2000 = vsub.s32 0, %v1999
  %v2001 = vrot.slane %v1996, %v2000
  %v2004 = vsel %vm1672, %v1987, 0
  %2006 = vmatprep.subr.mxu0 0.0
  %2007 = vmatpush1.msra.mxu0 %v1988
  %2008 = vmatprep.subr.mxu0 0.0
  %2009 = vmatpush1.msra.mxu0 %v1989
  %2010 = vmatprep.subr.mxu0 0.0
  %2011 = vmatpush1.msra.mxu0 %v1990
  %2012 = vmatprep.subr.mxu0 0.0
  %2013 = vmatpush1.msra.mxu0 %v1991
  %2014 = vmatprep.subr.mxu0 0.0
  %2015 = vmatpush1.msra.mxu0 %v1992
  %2016 = vmatprep.subr.mxu0 0.0
  %2017 = vmatpush1.msra.mxu0 %v1993
  %2018 = vmatprep.subr.mxu0 0.0
  %2019 = vmatpush1.msra.mxu0 %v1994
  %2020 = vmatprep.subr.mxu0 0.0
  %2021 = vmatpush1.msra.mxu0 %v1995
  %2022 = vmatprep.subr.mxu0 0.0
  %2023 = vmatpush1.msra.mxu0 0.0
  %2024 = vmatprep.subr.mxu0 0.0
  %2025 = vmatpush1.msra.mxu0 0.0
  %2026 = vmatprep.subr.mxu0 0.0
  %2027 = vmatpush1.msra.mxu0 0.0
  %2028 = vmatprep.subr.mxu0 0.0
  %2029 = vmatpush1.msra.mxu0 0.0
  %2030 = vmatprep.subr.mxu0 0.0
  %2031 = vmatpush1.msra.mxu0 0.0
  %2032 = vmatprep.subr.mxu0 0.0
  %2033 = vmatpush1.msra.mxu0 0.0
  %2034 = vmatprep.subr.mxu0 0.0
  %2035 = vmatpush1.msra.mxu0 0.0
  %2036 = vmatprep.subr.mxu0 0.0
  %2037 = vmatpush1.msra.mxu0 0.0
  %2038 = vmatprep.subr.mxu0 0.0
  %2039 = vmatpush1.msra.mxu0 0.0
  %2040 = vmatprep.subr.mxu0 0.0
  %2041 = vmatpush1.msra.mxu0 0.0
  %2042 = vmatprep.subr.mxu0 0.0
  %2043 = vmatpush1.msra.mxu0 0.0
  %2044 = vmatprep.subr.mxu0 0.0
  %2045 = vmatpush1.msra.mxu0 0.0
  %2046 = vmatprep.subr.mxu0 0.0
  %2047 = vmatpush1.msra.mxu0 0.0
  %2048 = vmatprep.subr.mxu0 0.0
  %2049 = vmatpush1.msra.mxu0 0.0
  %2050 = vmatprep.subr.mxu0 0.0
  %2051 = vmatpush1.msra.mxu0 0.0
  %2052 = vmatprep.subr.mxu0 0.0
  %2053 = vmatpush1.msra.mxu0 0.0
  %2054 = vmatprep.subr.mxu0 0.0
  %2055 = vmatpush1.msra.mxu0 0.0
  %2056 = vmatprep.subr.mxu0 0.0
  %2057 = vmatpush1.msra.mxu0 0.0
  %2058 = vmatprep.subr.mxu0 0.0
  %2059 = vmatpush1.msra.mxu0 0.0
  %2060 = vmatprep.subr.mxu0 0.0
  %2061 = vmatpush1.msra.mxu0 0.0
  %2062 = vmatprep.subr.mxu0 0.0
  %2063 = vmatpush1.msra.mxu0 0.0
  %2064 = vmatprep.subr.mxu0 0.0
  %2065 = vmatpush1.msra.mxu0 0.0
  %2066 = vmatprep.subr.mxu0 0.0
  %2067 = vmatpush1.msra.mxu0 0.0
  %2068 = vmatprep.subr.mxu0 0.0
  %2069 = vmatpush1.msra.mxu0 0.0
  %2070 = vmatprep.mubr.f32.mxu0 0.0
  %2071 = vmatmul.mubr.f32.gmra.mrb[0].mxu0 %v2004
  %v2072 = vpop.f32.mrb[0].mxu0
  %v2073 = vadd.f32 %v2001, %v2072
  %v2074 = vpop.f32.mrb[0].mxu0
  %2075 = vdwg.mxu0
  %s2076 = scalar_lea.vmem %s11, 8
  %2077 = vst.msk [vmem:[%s2076] sm:$0xff] %vm1672, %v2073
  %v2078 = vsel %vm1672, %v2073, -inf
  %2079 = vmax.xlane.f32.xlu0 %v2078
  %v2080 = vpop.xlane.xlu0 %2079
  %vm2081 = vcmp.ge.f32.partialorder %v2073, %v2080
  %v2082 = vsel %vm2081, %v43, 64
  %v2083 = vsel %vm1672, %v2082, 2147483647
  %v2084 = vand.u32 %v2083, 65535
  %v2085 = vshra.s32 %v2083, 16
  %v2086 = vcvt.s32.f32 %v2084
  %v2087 = vcvt.s32.f32 %v2085
  %2088 = vmin.xlane.f32.xlu0 %v2087
  %v2089 = vpop.xlane.xlu0 %2088
  %vm2090 = vcmp.eq.f32.partialorder %v2087, %v2089
  %v2091 = vsel %vm2090, %v2086, inf
  %2092 = vmin.xlane.f32.xlu0 %v2091
  %v2093 = vpop.xlane.xlu0 %2092
  %v2094 = vcvt.f32.s32 %v2093
  %v2095 = vcvt.f32.s32 %v2089
  %v2096 = vshll.u32 %v2095, 16
  %v2097 = vadd.s32 %v2096, %v2094
  %vm2098 = vcmp.eq.s32.totalorder %v43, %v2097
  %v2099 = vsel %vm2098, 1, 0
  %v2100 = vcvt.s32.f32 %v2099
  %s2101 = scalar_lea.vmem %s2, 8
  %v2102 = vld [vmem:[%s2101] sm:$0xff]
  %2103 = vset.pattern.permute.xlu0 0
  %2104 = vperm.xlu0 %2103, %v2102
  %v2105 = vpop.permute.xlu0 %2104
  %vm2106 = vcmp.eq.s32.totalorder %v43, %v2105
  %v2107 = vsel %vm2106, 1, 0
  %v2108 = vcvt.s32.f32 %v2107
  %s2109 = sld [smem:[#allocation4]]
  %p2110 = scmp.ne.s32.totalorder %s2109, 0
  %s2111 = scalar_select %p2110, 1, 0
  %v2112 = vstv %s2111
  %vm2113 = vcmp.eq.s32.totalorder %v2112, 1
  %v2114 = vsel %vm2113, %v2108, %v2100
  %v2116 = vsel %vm1672, %v2114, 0
  %2118 = vmatprep.subr.mxu0 0.0
  %2119 = vmatpush1.msra.mxu0 %v50
  %2120 = vmatprep.subr.mxu0 0.0
  %2121 = vmatpush1.msra.mxu0 %v51
  %2122 = vmatprep.subr.mxu0 0.0
  %2123 = vmatpush1.msra.mxu0 %v52
  %2124 = vmatprep.subr.mxu0 0.0
  %2125 = vmatpush1.msra.mxu0 %v53
  %2126 = vmatprep.subr.mxu0 0.0
  %2127 = vmatpush1.msra.mxu0 %v54
  %2128 = vmatprep.subr.mxu0 0.0
  %2129 = vmatpush1.msra.mxu0 %v55
  %2130 = vmatprep.subr.mxu0 0.0
  %2131 = vmatpush1.msra.mxu0 %v56
  %2132 = vmatprep.subr.mxu0 0.0
  %2133 = vmatpush1.msra.mxu0 %v57
  %2134 = vmatprep.subr.mxu0 0.0
  %2135 = vmatpush1.msra.mxu0 0.0
  %2136 = vmatprep.subr.mxu0 0.0
  %2137 = vmatpush1.msra.mxu0 0.0
  %2138 = vmatprep.subr.mxu0 0.0
  %2139 = vmatpush1.msra.mxu0 0.0
  %2140 = vmatprep.subr.mxu0 0.0
  %2141 = vmatpush1.msra.mxu0 0.0
  %2142 = vmatprep.subr.mxu0 0.0
  %2143 = vmatpush1.msra.mxu0 0.0
  %2144 = vmatprep.subr.mxu0 0.0
  %2145 = vmatpush1.msra.mxu0 0.0
  %2146 = vmatprep.subr.mxu0 0.0
  %2147 = vmatpush1.msra.mxu0 0.0
  %2148 = vmatprep.subr.mxu0 0.0
  %2149 = vmatpush1.msra.mxu0 0.0
  %2150 = vmatprep.subr.mxu0 0.0
  %2151 = vmatpush1.msra.mxu0 0.0
  %2152 = vmatprep.subr.mxu0 0.0
  %2153 = vmatpush1.msra.mxu0 0.0
  %2154 = vmatprep.subr.mxu0 0.0
  %2155 = vmatpush1.msra.mxu0 0.0
  %2156 = vmatprep.subr.mxu0 0.0
  %2157 = vmatpush1.msra.mxu0 0.0
  %2158 = vmatprep.subr.mxu0 0.0
  %2159 = vmatpush1.msra.mxu0 0.0
  %2160 = vmatprep.subr.mxu0 0.0
  %2161 = vmatpush1.msra.mxu0 0.0
  %2162 = vmatprep.subr.mxu0 0.0
  %2163 = vmatpush1.msra.mxu0 0.0
  %2164 = vmatprep.subr.mxu0 0.0
  %2165 = vmatpush1.msra.mxu0 0.0
  %2166 = vmatprep.subr.mxu0 0.0
  %2167 = vmatpush1.msra.mxu0 0.0
  %2168 = vmatprep.subr.mxu0 0.0
  %2169 = vmatpush1.msra.mxu0 0.0
  %2170 = vmatprep.subr.mxu0 0.0
  %2171 = vmatpush1.msra.mxu0 0.0
  %2172 = vmatprep.subr.mxu0 0.0
  %2173 = vmatpush1.msra.mxu0 0.0
  %2174 = vmatprep.subr.mxu0 0.0
  %2175 = vmatpush1.msra.mxu0 0.0
  %2176 = vmatprep.subr.mxu0 0.0
  %2177 = vmatpush1.msra.mxu0 0.0
  %2178 = vmatprep.subr.mxu0 0.0
  %2179 = vmatpush1.msra.mxu0 0.0
  %2180 = vmatprep.subr.mxu0 0.0
  %2181 = vmatpush1.msra.mxu0 0.0
  %2182 = vmatprep.mubr.f32.mxu0 0.0
  %2183 = vmatmul.mubr.f32.gmra.mrb[0].mxu0 %v2116
  %v2184 = vpop.f32.mrb[0].mxu0
  %v2185 = vadd.f32 0.0, %v2184
  %v2186 = vpop.f32.mrb[0].mxu0
  %2187 = vdwg.mxu0
  %v2188 = vmul.f32 %v1664, %v1982
  %v2189 = vmul.f32 %v1665, %v1982
  %v2190 = vmul.f32 %v1666, %v1982
  %v2191 = vmul.f32 %v1667, %v1982
  %v2192 = vmul.f32 %v1668, %v1982
  %v2193 = vmul.f32 %v1669, %v1982
  %v2194 = vmul.f32 %v1670, %v1982
  %v2195 = vmul.f32 %v1671, %v1982
  %v2196 = vsel %vm255, %v2188, 0.0
  %2197 = vadd.xlane.f32.xlu0 %v2196
  %v2198 = vpop.xlane.xlu0 %2197
  %v2199 = vsel %vm255, %v2189, 0.0
  %2200 = vadd.xlane.f32.xlu0 %v2199
  %v2201 = vpop.xlane.xlu0 %2200
  %v2202 = vsel %vm255, %v2190, 0.0
  %2203 = vadd.xlane.f32.xlu0 %v2202
  %v2204 = vpop.xlane.xlu0 %2203
  %v2205 = vsel %vm255, %v2191, 0.0
  %2206 = vadd.xlane.f32.xlu0 %v2205
  %v2207 = vpop.xlane.xlu0 %2206
  %v2208 = vsel %vm255, %v2192, 0.0
  %2209 = vadd.xlane.f32.xlu0 %v2208
  %v2210 = vpop.xlane.xlu0 %2209
  %v2211 = vsel %vm255, %v2193, 0.0
  %2212 = vadd.xlane.f32.xlu0 %v2211
  %v2213 = vpop.xlane.xlu0 %2212
  %v2214 = vsel %vm255, %v2194, 0.0
  %2215 = vadd.xlane.f32.xlu0 %v2214
  %v2216 = vpop.xlane.xlu0 %2215
  %v2217 = vsel %vm255, %v2195, 0.0
  %2218 = vadd.xlane.f32.xlu0 %v2217
  %v2219 = vpop.xlane.xlu0 %2218
  %v2220 = vmax.f32 %v2198, %v2210
  %v2221 = vmax.f32 %v2201, %v2213
  %v2222 = vmax.f32 %v2204, %v2216
  %v2223 = vmax.f32 %v2207, %v2219
  %v2224 = vmax.f32 %v2220, %v2221
  %v2225 = vmax.f32 %v2222, %v2223
  %v2226 = vmax.f32 %v2224, %v2225
  %v2227 = vsub.f32 %v2198, %v2226
  %v2228 = vsub.f32 %v2201, %v2226
  %v2229 = vsub.f32 %v2204, %v2226
  %v2230 = vsub.f32 %v2207, %v2226
  %v2231 = vsub.f32 %v2210, %v2226
  %v2232 = vsub.f32 %v2213, %v2226
  %v2233 = vsub.f32 %v2216, %v2226
  %v2234 = vsub.f32 %v2219, %v2226
  %v2235 = vmul.f32 %v2227, 1.442695
  %v2236 = vpow.pop %v2235
  %v2237 = vmul.f32 %v2228, 1.442695
  %v2238 = vpow.pop %v2237
  %v2239 = vmul.f32 %v2229, 1.442695
  %v2240 = vpow.pop %v2239
  %v2241 = vmul.f32 %v2230, 1.442695
  %v2242 = vpow.pop %v2241
  %v2243 = vmul.f32 %v2231, 1.442695
  %v2244 = vpow.pop %v2243
  %v2245 = vmul.f32 %v2232, 1.442695
  %v2246 = vpow.pop %v2245
  %v2247 = vmul.f32 %v2233, 1.442695
  %v2248 = vpow.pop %v2247
  %v2249 = vmul.f32 %v2234, 1.442695
  %v2250 = vpow.pop %v2249
  %v2251 = vadd.f32 %v2236, %v2238
  %v2252 = vadd.f32 %v2251, %v2240
  %v2253 = vadd.f32 %v2252, %v2242
  %v2254 = vadd.f32 %v2253, %v2244
  %v2255 = vadd.f32 %v2254, %v2246
  %v2256 = vadd.f32 %v2255, %v2248
  %v2257 = vadd.f32 %v2256, %v2250
  %v2258 = vrcp.pop %v2257
  %v2259 = vmul.f32 %v2236, %v2258
  %v2260 = vmul.f32 %v2238, %v2258
  %v2261 = vmul.f32 %v2240, %v2258
  %v2262 = vmul.f32 %v2242, %v2258
  %v2263 = vmul.f32 %v2244, %v2258
  %v2264 = vmul.f32 %v2246, %v2258
  %v2265 = vmul.f32 %v2248, %v2258
  %v2266 = vmul.f32 %v2250, %v2258
  %v2267 = vmul.f32 %v2259, %v1664
  %v2268 = vmul.f32 %v2260, %v1665
  %v2269 = vmul.f32 %v2261, %v1666
  %v2270 = vmul.f32 %v2262, %v1667
  %v2271 = vmul.f32 %v2263, %v1668
  %v2272 = vmul.f32 %v2264, %v1669
  %v2273 = vmul.f32 %v2265, %v1670
  %v2274 = vmul.f32 %v2266, %v1671
  %v2275 = vsel %vm255, %v2267, 0.0
  %v2276 = vsel %vm255, %v2268, 0.0
  %v2277 = vadd.f32 %v2275, %v2276
  %v2278 = vsel %vm255, %v2269, 0.0
  %v2279 = vadd.f32 %v2277, %v2278
  %v2280 = vsel %vm255, %v2270, 0.0
  %v2281 = vadd.f32 %v2279, %v2280
  %v2282 = vsel %vm255, %v2271, 0.0
  %v2283 = vadd.f32 %v2281, %v2282
  %v2284 = vsel %vm255, %v2272, 0.0
  %v2285 = vadd.f32 %v2283, %v2284
  %v2286 = vsel %vm255, %v2273, 0.0
  %v2287 = vadd.f32 %v2285, %v2286
  %v2288 = vsel %vm255, %v2274, 0.0
  %v2289 = vadd.f32 %v2287, %v2288
  %2291 = vrot.lane.b32.xlu0 %v2289, 16
  %v2292 = vpop.permute.xlu0 %2291
  %2294 = vrot.lane.b32.xlu0 %v1979, 112
  %v2295 = vpop.permute.xlu0 %2294
  %v2297 = vsel %vm139, %v2185, %v2292
  %v2298 = vsel %vm65, %v2297, %v2295
  %v2299 = vld [vmem:[%s7] sm:$0xff]
  %v2300 = vld [vmem:[%s7 + $0x8] sm:$0xff]
  %v2301 = vld [vmem:[%s7 + $0x10] sm:$0xff]
  %v2302 = vld [vmem:[%s7 + $0x18] sm:$0xff]
  %v2303 = vld [vmem:[%s7 + $0x20] sm:$0xff]
  %v2304 = vld [vmem:[%s7 + $0x28] sm:$0xff]
  %v2305 = vld [vmem:[%s7 + $0x30] sm:$0xff]
  %v2306 = vld [vmem:[%s7 + $0x38] sm:$0xff]
  %v2307 = vld [vmem:[%s7 + $0x40] sm:$0xff]
  %v2308 = vld [vmem:[%s7 + $0x48] sm:$0xff]
  %v2309 = vld [vmem:[%s8] sm:$0x1]
  %v2311 = vlaneseq
  %v2312 = vshrl.u32 %v2311, 7
  %v2313 = vsub.s32 0, %v2312
  %v2314 = vrot.slane %v2309, %v2313
  %v2317 = vsel %vm1882, %v2298, 0
  %2319 = vmatprep.subr.mxu0 0.0
  %2320 = vmatpush1.msra.mxu0 %v2299
  %2321 = vmatprep.subr.mxu0 0.0
  %2322 = vmatpush1.msra.mxu0 %v2300
  %2323 = vmatprep.subr.mxu0 0.0
  %2324 = vmatpush1.msra.mxu0 %v2301
  %2325 = vmatprep.subr.mxu0 0.0
  %2326 = vmatpush1.msra.mxu0 %v2302
  %2327 = vmatprep.subr.mxu0 0.0
  %2328 = vmatpush1.msra.mxu0 %v2303
  %2329 = vmatprep.subr.mxu0 0.0
  %2330 = vmatpush1.msra.mxu0 %v2304
  %2331 = vmatprep.subr.mxu0 0.0
  %2332 = vmatpush1.msra.mxu0 %v2305
  %2333 = vmatprep.subr.mxu0 0.0
  %2334 = vmatpush1.msra.mxu0 %v2306
  %2335 = vmatprep.subr.mxu0 0.0
  %2336 = vmatpush1.msra.mxu0 %v2307
  %2337 = vmatprep.subr.mxu0 0.0
  %2338 = vmatpush1.msra.mxu0 %v2308
  %2339 = vmatprep.subr.mxu0 0.0
  %2340 = vmatpush1.msra.mxu0 0.0
  %2341 = vmatprep.subr.mxu0 0.0
  %2342 = vmatpush1.msra.mxu0 0.0
  %2343 = vmatprep.subr.mxu0 0.0
  %2344 = vmatpush1.msra.mxu0 0.0
  %2345 = vmatprep.subr.mxu0 0.0
  %2346 = vmatpush1.msra.mxu0 0.0
  %2347 = vmatprep.subr.mxu0 0.0
  %2348 = vmatpush1.msra.mxu0 0.0
  %2349 = vmatprep.subr.mxu0 0.0
  %2350 = vmatpush1.msra.mxu0 0.0
  %2351 = vmatprep.subr.mxu0 0.0
  %2352 = vmatpush1.msra.mxu0 0.0
  %2353 = vmatprep.subr.mxu0 0.0
  %2354 = vmatpush1.msra.mxu0 0.0
  %2355 = vmatprep.subr.mxu0 0.0
  %2356 = vmatpush1.msra.mxu0 0.0
  %2357 = vmatprep.subr.mxu0 0.0
  %2358 = vmatpush1.msra.mxu0 0.0
  %2359 = vmatprep.subr.mxu0 0.0
  %2360 = vmatpush1.msra.mxu0 0.0
  %2361 = vmatprep.subr.mxu0 0.0
  %2362 = vmatpush1.msra.mxu0 0.0
  %2363 = vmatprep.subr.mxu0 0.0
  %2364 = vmatpush1.msra.mxu0 0.0
  %2365 = vmatprep.subr.mxu0 0.0
  %2366 = vmatpush1.msra.mxu0 0.0
  %2367 = vmatprep.subr.mxu0 0.0
  %2368 = vmatpush1.msra.mxu0 0.0
  %2369 = vmatprep.subr.mxu0 0.0
  %2370 = vmatpush1.msra.mxu0 0.0
  %2371 = vmatprep.subr.mxu0 0.0
  %2372 = vmatpush1.msra.mxu0 0.0
  %2373 = vmatprep.subr.mxu0 0.0
  %2374 = vmatpush1.msra.mxu0 0.0
  %2375 = vmatprep.subr.mxu0 0.0
  %2376 = vmatpush1.msra.mxu0 0.0
  %2377 = vmatprep.subr.mxu0 0.0
  %2378 = vmatpush1.msra.mxu0 0.0
  %2379 = vmatprep.subr.mxu0 0.0
  %2380 = vmatpush1.msra.mxu0 0.0
  %2381 = vmatprep.subr.mxu0 0.0
  %2382 = vmatpush1.msra.mxu0 0.0
  %2383 = vmatprep.mubr.f32.mxu0 0.0
  %2384 = vmatmul.mubr.f32.gmra.mrb[0].mxu0 %v2317
  %v2385 = vpop.f32.mrb[0].mxu0
  %v2386 = vadd.f32 %v2314, %v2385
  %v2387 = vpop.f32.mrb[0].mxu0
  %2388 = vdwg.mxu0
  %v2389 = vxor.u32 %v2386, 2147483648
  %v2390 = vmul.f32 %v2389, 1.442695
  %v2391 = vpow.pop %v2390
  %v2392 = vadd.f32 %v2391, 1.0
  %v2393 = vrcp.pop %v2392
  %v2394 = vmul.f32 1.0, %v2393
  %v2395 = vtanh.pop %v2386
  %v2396 = vmul.f32 %v2394, %v1973
  %2398 = vrot.lane.b32.xlu0 %v2395, 32
  %v2399 = vpop.permute.xlu0 %2398
  %v2401 = vmul.f32 %v2394, %v2399
  %2403 = vrot.lane.b32.xlu0 %v2401, 32
  %v2404 = vpop.permute.xlu0 %2403
  %v2406 = vadd.f32 %v2396, %v2404
  %v2407 = vtanh.pop %v2406
  %2409 = vrot.lane.b32.xlu0 %v2407, 32
  %v2410 = vpop.permute.xlu0 %2409
  %v2412 = vmul.f32 %v2394, %v2410
  %2414 = vrot.lane.b32.xlu0 %v2412, 64
  %v2415 = vpop.permute.xlu0 %2414
  %2417 = vrot.lane.b32.xlu0 %v2289, 32
  %v2418 = vpop.permute.xlu0 %2417
  %v2420 = vsel %vm255, %v2415, %v2418
  %v2421 = vld [vmem:[%s9] sm:$0xff]
  %v2422 = vld [vmem:[%s9 + $0x8] sm:$0xff]
  %v2423 = vld [vmem:[%s9 + $0x10] sm:$0xff]
  %v2424 = vld [vmem:[%s9 + $0x18] sm:$0xff]
  %v2425 = vld [vmem:[%s9 + $0x20] sm:$0xff]
  %v2426 = vld [vmem:[%s9 + $0x28] sm:$0xff]
  %v2427 = vld [vmem:[%s9 + $0x30] sm:$0xff]
  %v2428 = vld [vmem:[%s9 + $0x38] sm:$0xff]
  %v2429 = vld [vmem:[%s10] sm:$0x1]
  %v2431 = vlaneseq
  %v2432 = vshrl.u32 %v2431, 7
  %v2433 = vsub.s32 0, %v2432
  %v2434 = vrot.slane %v2429, %v2433
  %v2437 = vsel %vm1672, %v2420, 0
  %2439 = vmatprep.subr.mxu0 0.0
  %2440 = vmatpush1.msra.mxu0 %v2421
  %2441 = vmatprep.subr.mxu0 0.0
  %2442 = vmatpush1.msra.mxu0 %v2422
  %2443 = vmatprep.subr.mxu0 0.0
  %2444 = vmatpush1.msra.mxu0 %v2423
  %2445 = vmatprep.subr.mxu0 0.0
  %2446 = vmatpush1.msra.mxu0 %v2424
  %2447 = vmatprep.subr.mxu0 0.0
  %2448 = vmatpush1.msra.mxu0 %v2425
  %2449 = vmatprep.subr.mxu0 0.0
  %2450 = vmatpush1.msra.mxu0 %v2426
  %2451 = vmatprep.subr.mxu0 0.0
  %2452 = vmatpush1.msra.mxu0 %v2427
  %2453 = vmatprep.subr.mxu0 0.0
  %2454 = vmatpush1.msra.mxu0 %v2428
  %2455 = vmatprep.subr.mxu0 0.0
  %2456 = vmatpush1.msra.mxu0 0.0
  %2457 = vmatprep.subr.mxu0 0.0
  %2458 = vmatpush1.msra.mxu0 0.0
  %2459 = vmatprep.subr.mxu0 0.0
  %2460 = vmatpush1.msra.mxu0 0.0
  %2461 = vmatprep.subr.mxu0 0.0
  %2462 = vmatpush1.msra.mxu0 0.0
  %2463 = vmatprep.subr.mxu0 0.0
  %2464 = vmatpush1.msra.mxu0 0.0
  %2465 = vmatprep.subr.mxu0 0.0
  %2466 = vmatpush1.msra.mxu0 0.0
  %2467 = vmatprep.subr.mxu0 0.0
  %2468 = vmatpush1.msra.mxu0 0.0
  %2469 = vmatprep.subr.mxu0 0.0
  %2470 = vmatpush1.msra.mxu0 0.0
  %2471 = vmatprep.subr.mxu0 0.0
  %2472 = vmatpush1.msra.mxu0 0.0
  %2473 = vmatprep.subr.mxu0 0.0
  %2474 = vmatpush1.msra.mxu0 0.0
  %2475 = vmatprep.subr.mxu0 0.0
  %2476 = vmatpush1.msra.mxu0 0.0
  %2477 = vmatprep.subr.mxu0 0.0
  %2478 = vmatpush1.msra.mxu0 0.0
  %2479 = vmatprep.subr.mxu0 0.0
  %2480 = vmatpush1.msra.mxu0 0.0
  %2481 = vmatprep.subr.mxu0 0.0
  %2482 = vmatpush1.msra.mxu0 0.0
  %2483 = vmatprep.subr.mxu0 0.0
  %2484 = vmatpush1.msra.mxu0 0.0
  %2485 = vmatprep.subr.mxu0 0.0
  %2486 = vmatpush1.msra.mxu0 0.0
  %2487 = vmatprep.subr.mxu0 0.0
  %2488 = vmatpush1.msra.mxu0 0.0
  %2489 = vmatprep.subr.mxu0 0.0
  %2490 = vmatpush1.msra.mxu0 0.0
  %2491 = vmatprep.subr.mxu0 0.0
  %2492 = vmatpush1.msra.mxu0 0.0
  %2493 = vmatprep.subr.mxu0 0.0
  %2494 = vmatpush1.msra.mxu0 0.0
  %2495 = vmatprep.subr.mxu0 0.0
  %2496 = vmatpush1.msra.mxu0 0.0
  %2497 = vmatprep.subr.mxu0 0.0
  %2498 = vmatpush1.msra.mxu0 0.0
  %2499 = vmatprep.subr.mxu0 0.0
  %2500 = vmatpush1.msra.mxu0 0.0
  %2501 = vmatprep.subr.mxu0 0.0
  %2502 = vmatpush1.msra.mxu0 0.0
  %2503 = vmatprep.mubr.f32.mxu0 0.0
  %2504 = vmatmul.mubr.f32.gmra.mrb[0].mxu0 %v2437
  %v2505 = vpop.f32.mrb[0].mxu0
  %v2506 = vadd.f32 %v2434, %v2505
  %v2507 = vpop.f32.mrb[0].mxu0
  %2508 = vdwg.mxu0
  %s2509 = scalar_lea.vmem %s11, 16
  %2510 = vst.msk [vmem:[%s2509] sm:$0xff] %vm1672, %v2506
  %v2511 = vsel %vm1672, %v2506, -inf
  %2512 = vmax.xlane.f32.xlu0 %v2511
  %v2513 = vpop.xlane.xlu0 %2512
  %vm2514 = vcmp.ge.f32.partialorder %v2506, %v2513
  %v2515 = vsel %vm2514, %v43, 64
  %v2516 = vsel %vm1672, %v2515, 2147483647
  %v2517 = vand.u32 %v2516, 65535
  %v2518 = vshra.s32 %v2516, 16
  %v2519 = vcvt.s32.f32 %v2517
  %v2520 = vcvt.s32.f32 %v2518
  %2521 = vmin.xlane.f32.xlu0 %v2520
  %v2522 = vpop.xlane.xlu0 %2521
  %vm2523 = vcmp.eq.f32.partialorder %v2520, %v2522
  %v2524 = vsel %vm2523, %v2519, inf
  %2525 = vmin.xlane.f32.xlu0 %v2524
  %v2526 = vpop.xlane.xlu0 %2525
  %v2527 = vcvt.f32.s32 %v2526
  %v2528 = vcvt.f32.s32 %v2522
  %v2529 = vshll.u32 %v2528, 16
  %v2530 = vadd.s32 %v2529, %v2527
  %vm2531 = vcmp.eq.s32.totalorder %v43, %v2530
  %v2532 = vsel %vm2531, 1, 0
  %v2533 = vcvt.s32.f32 %v2532
  %s2534 = scalar_lea.vmem %s2, 16
  %v2535 = vld [vmem:[%s2534] sm:$0xff]
  %2536 = vset.pattern.permute.xlu0 0
  %2537 = vperm.xlu0 %2536, %v2535
  %v2538 = vpop.permute.xlu0 %2537
  %vm2539 = vcmp.eq.s32.totalorder %v43, %v2538
  %v2540 = vsel %vm2539, 1, 0
  %v2541 = vcvt.s32.f32 %v2540
  %s2542 = sld [smem:[#allocation4 + $0x1]]
  %p2543 = scmp.ne.s32.totalorder %s2542, 0
  %s2544 = scalar_select %p2543, 1, 0
  %v2545 = vstv %s2544
  %vm2546 = vcmp.eq.s32.totalorder %v2545, 1
  %v2547 = vsel %vm2546, %v2541, %v2533
  %v2549 = vsel %vm1672, %v2547, 0
  %2551 = vmatprep.subr.mxu0 0.0
  %2552 = vmatpush1.msra.mxu0 %v50
  %2553 = vmatprep.subr.mxu0 0.0
  %2554 = vmatpush1.msra.mxu0 %v51
  %2555 = vmatprep.subr.mxu0 0.0
  %2556 = vmatpush1.msra.mxu0 %v52
  %2557 = vmatprep.subr.mxu0 0.0
  %2558 = vmatpush1.msra.mxu0 %v53
  %2559 = vmatprep.subr.mxu0 0.0
  %2560 = vmatpush1.msra.mxu0 %v54
  %2561 = vmatprep.subr.mxu0 0.0
  %2562 = vmatpush1.msra.mxu0 %v55
  %2563 = vmatprep.subr.mxu0 0.0
  %2564 = vmatpush1.msra.mxu0 %v56
  %2565 = vmatprep.subr.mxu0 0.0
  %2566 = vmatpush1.msra.mxu0 %v57
  %2567 = vmatprep.subr.mxu0 0.0
  %2568 = vmatpush1.msra.mxu0 0.0
  %2569 = vmatprep.subr.mxu0 0.0
  %2570 = vmatpush1.msra.mxu0 0.0
  %2571 = vmatprep.subr.mxu0 0.0
  %2572 = vmatpush1.msra.mxu0 0.0
  %2573 = vmatprep.subr.mxu0 0.0
  %2574 = vmatpush1.msra.mxu0 0.0
  %2575 = vmatprep.subr.mxu0 0.0
  %2576 = vmatpush1.msra.mxu0 0.0
  %2577 = vmatprep.subr.mxu0 0.0
  %2578 = vmatpush1.msra.mxu0 0.0
  %2579 = vmatprep.subr.mxu0 0.0
  %2580 = vmatpush1.msra.mxu0 0.0
  %2581 = vmatprep.subr.mxu0 0.0
  %2582 = vmatpush1.msra.mxu0 0.0
  %2583 = vmatprep.subr.mxu0 0.0
  %2584 = vmatpush1.msra.mxu0 0.0
  %2585 = vmatprep.subr.mxu0 0.0
  %2586 = vmatpush1.msra.mxu0 0.0
  %2587 = vmatprep.subr.mxu0 0.0
  %2588 = vmatpush1.msra.mxu0 0.0
  %2589 = vmatprep.subr.mxu0 0.0
  %2590 = vmatpush1.msra.mxu0 0.0
  %2591 = vmatprep.subr.mxu0 0.0
  %2592 = vmatpush1.msra.mxu0 0.0
  %2593 = vmatprep.subr.mxu0 0.0
  %2594 = vmatpush1.msra.mxu0 0.0
  %2595 = vmatprep.subr.mxu0 0.0
  %2596 = vmatpush1.msra.mxu0 0.0
  %2597 = vmatprep.subr.mxu0 0.0
  %2598 = vmatpush1.msra.mxu0 0.0
  %2599 = vmatprep.subr.mxu0 0.0
  %2600 = vmatpush1.msra.mxu0 0.0
  %2601 = vmatprep.subr.mxu0 0.0
  %2602 = vmatpush1.msra.mxu0 0.0
  %2603 = vmatprep.subr.mxu0 0.0
  %2604 = vmatpush1.msra.mxu0 0.0
  %2605 = vmatprep.subr.mxu0 0.0
  %2606 = vmatpush1.msra.mxu0 0.0
  %2607 = vmatprep.subr.mxu0 0.0
  %2608 = vmatpush1.msra.mxu0 0.0
  %2609 = vmatprep.subr.mxu0 0.0
  %2610 = vmatpush1.msra.mxu0 0.0
  %2611 = vmatprep.subr.mxu0 0.0
  %2612 = vmatpush1.msra.mxu0 0.0
  %2613 = vmatprep.subr.mxu0 0.0
  %2614 = vmatpush1.msra.mxu0 0.0
  %2615 = vmatprep.mubr.f32.mxu0 0.0
  %2616 = vmatmul.mubr.f32.gmra.mrb[0].mxu0 %v2549
  %v2617 = vpop.f32.mrb[0].mxu0
  %v2618 = vadd.f32 0.0, %v2617
  %v2619 = vpop.f32.mrb[0].mxu0
  %2620 = vdwg.mxu0
  %v2621 = vmul.f32 %v1664, %v2415
  %v2622 = vmul.f32 %v1665, %v2415
  %v2623 = vmul.f32 %v1666, %v2415
  %v2624 = vmul.f32 %v1667, %v2415
  %v2625 = vmul.f32 %v1668, %v2415
  %v2626 = vmul.f32 %v1669, %v2415
  %v2627 = vmul.f32 %v1670, %v2415
  %v2628 = vmul.f32 %v1671, %v2415
  %v2629 = vsel %vm255, %v2621, 0.0
  %2630 = vadd.xlane.f32.xlu0 %v2629
  %v2631 = vpop.xlane.xlu0 %2630
  %v2632 = vsel %vm255, %v2622, 0.0
  %2633 = vadd.xlane.f32.xlu0 %v2632
  %v2634 = vpop.xlane.xlu0 %2633
  %v2635 = vsel %vm255, %v2623, 0.0
  %2636 = vadd.xlane.f32.xlu0 %v2635
  %v2637 = vpop.xlane.xlu0 %2636
  %v2638 = vsel %vm255, %v2624, 0.0
  %2639 = vadd.xlane.f32.xlu0 %v2638
  %v2640 = vpop.xlane.xlu0 %2639
  %v2641 = vsel %vm255, %v2625, 0.0
  %2642 = vadd.xlane.f32.xlu0 %v2641
  %v2643 = vpop.xlane.xlu0 %2642
  %v2644 = vsel %vm255, %v2626, 0.0
  %2645 = vadd.xlane.f32.xlu0 %v2644
  %v2646 = vpop.xlane.xlu0 %2645
  %v2647 = vsel %vm255, %v2627, 0.0
  %2648 = vadd.xlane.f32.xlu0 %v2647
  %v2649 = vpop.xlane.xlu0 %2648
  %v2650 = vsel %vm255, %v2628, 0.0
  %2651 = vadd.xlane.f32.xlu0 %v2650
  %v2652 = vpop.xlane.xlu0 %2651
  %v2653 = vmax.f32 %v2631, %v2643
  %v2654 = vmax.f32 %v2634, %v2646
  %v2655 = vmax.f32 %v2637, %v2649
  %v2656 = vmax.f32 %v2640, %v2652
  %v2657 = vmax.f32 %v2653, %v2654
  %v2658 = vmax.f32 %v2655, %v2656
  %v2659 = vmax.f32 %v2657, %v2658
  %v2660 = vsub.f32 %v2631, %v2659
  %v2661 = vsub.f32 %v2634, %v2659
  %v2662 = vsub.f32 %v2637, %v2659
  %v2663 = vsub.f32 %v2640, %v2659
  %v2664 = vsub.f32 %v2643, %v2659
  %v2665 = vsub.f32 %v2646, %v2659
  %v2666 = vsub.f32 %v2649, %v2659
  %v2667 = vsub.f32 %v2652, %v2659
  %v2668 = vmul.f32 %v2660, 1.442695
  %v2669 = vpow.pop %v2668
  %v2670 = vmul.f32 %v2661, 1.442695
  %v2671 = vpow.pop %v2670
  %v2672 = vmul.f32 %v2662, 1.442695
  %v2673 = vpow.pop %v2672
  %v2674 = vmul.f32 %v2663, 1.442695
  %v2675 = vpow.pop %v2674
  %v2676 = vmul.f32 %v2664, 1.442695
  %v2677 = vpow.pop %v2676
  %v2678 = vmul.f32 %v2665, 1.442695
  %v2679 = vpow.pop %v2678
  %v2680 = vmul.f32 %v2666, 1.442695
  %v2681 = vpow.pop %v2680
  %v2682 = vmul.f32 %v2667, 1.442695
  %v2683 = vpow.pop %v2682
  %v2684 = vadd.f32 %v2669, %v2671
  %v2685 = vadd.f32 %v2684, %v2673
  %v2686 = vadd.f32 %v2685, %v2675
  %v2687 = vadd.f32 %v2686, %v2677
  %v2688 = vadd.f32 %v2687, %v2679
  %v2689 = vadd.f32 %v2688, %v2681
  %v2690 = vadd.f32 %v2689, %v2683
  %v2691 = vrcp.pop %v2690
  %v2692 = vmul.f32 %v2669, %v2691
  %v2693 = vmul.f32 %v2671, %v2691
  %v2694 = vmul.f32 %v2673, %v2691
  %v2695 = vmul.f32 %v2675, %v2691
  %v2696 = vmul.f32 %v2677, %v2691
  %v2697 = vmul.f32 %v2679, %v2691
  %v2698 = vmul.f32 %v2681, %v2691
  %v2699 = vmul.f32 %v2683, %v2691
  %v2700 = vmul.f32 %v2692, %v1664
  %v2701 = vmul.f32 %v2693, %v1665
  %v2702 = vmul.f32 %v2694, %v1666
  %v2703 = vmul.f32 %v2695, %v1667
  %v2704 = vmul.f32 %v2696, %v1668
  %v2705 = vmul.f32 %v2697, %v1669
  %v2706 = vmul.f32 %v2698, %v1670
  %v2707 = vmul.f32 %v2699, %v1671
  %v2708 = vsel %vm255, %v2700, 0.0
  %v2709 = vsel %vm255, %v2701, 0.0
  %v2710 = vadd.f32 %v2708, %v2709
  %v2711 = vsel %vm255, %v2702, 0.0
  %v2712 = vadd.f32 %v2710, %v2711
  %v2713 = vsel %vm255, %v2703, 0.0
  %v2714 = vadd.f32 %v2712, %v2713
  %v2715 = vsel %vm255, %v2704, 0.0
  %v2716 = vadd.f32 %v2714, %v2715
  %v2717 = vsel %vm255, %v2705, 0.0
  %v2718 = vadd.f32 %v2716, %v2717
  %v2719 = vsel %vm255, %v2706, 0.0
  %v2720 = vadd.f32 %v2718, %v2719
  %v2721 = vsel %vm255, %v2707, 0.0
  %v2722 = vadd.f32 %v2720, %v2721
  %2724 = vrot.lane.b32.xlu0 %v2722, 16
  %v2725 = vpop.permute.xlu0 %2724
  %2727 = vrot.lane.b32.xlu0 %v2412, 112
  %v2728 = vpop.permute.xlu0 %2727
  %v2730 = vsel %vm139, %v2618, %v2725
  %v2731 = vsel %vm65, %v2730, %v2728
  %v2732 = vld [vmem:[%s7] sm:$0xff]
  %v2733 = vld [vmem:[%s7 + $0x8] sm:$0xff]
  %v2734 = vld [vmem:[%s7 + $0x10] sm:$0xff]
  %v2735 = vld [vmem:[%s7 + $0x18] sm:$0xff]
  %v2736 = vld [vmem:[%s7 + $0x20] sm:$0xff]
  %v2737 = vld [vmem:[%s7 + $0x28] sm:$0xff]
  %v2738 = vld [vmem:[%s7 + $0x30] sm:$0xff]
  %v2739 = vld [vmem:[%s7 + $0x38] sm:$0xff]
  %v2740 = vld [vmem:[%s7 + $0x40] sm:$0xff]
  %v2741 = vld [vmem:[%s7 + $0x48] sm:$0xff]
  %v2742 = vld [vmem:[%s8] sm:$0x1]
  %v2744 = vlaneseq
  %v2745 = vshrl.u32 %v2744, 7
  %v2746 = vsub.s32 0, %v2745
  %v2747 = vrot.slane %v2742, %v2746
  %v2750 = vsel %vm1882, %v2731, 0
  %2752 = vmatprep.subr.mxu0 0.0
  %2753 = vmatpush1.msra.mxu0 %v2732
  %2754 = vmatprep.subr.mxu0 0.0
  %2755 = vmatpush1.msra.mxu0 %v2733
  %2756 = vmatprep.subr.mxu0 0.0
  %2757 = vmatpush1.msra.mxu0 %v2734
  %2758 = vmatprep.subr.mxu0 0.0
  %2759 = vmatpush1.msra.mxu0 %v2735
  %2760 = vmatprep.subr.mxu0 0.0
  %2761 = vmatpush1.msra.mxu0 %v2736
  %2762 = vmatprep.subr.mxu0 0.0
  %2763 = vmatpush1.msra.mxu0 %v2737
  %2764 = vmatprep.subr.mxu0 0.0
  %2765 = vmatpush1.msra.mxu0 %v2738
  %2766 = vmatprep.subr.mxu0 0.0
  %2767 = vmatpush1.msra.mxu0 %v2739
  %2768 = vmatprep.subr.mxu0 0.0
  %2769 = vmatpush1.msra.mxu0 %v2740
  %2770 = vmatprep.subr.mxu0 0.0
  %2771 = vmatpush1.msra.mxu0 %v2741
  %2772 = vmatprep.subr.mxu0 0.0
  %2773 = vmatpush1.msra.mxu0 0.0
  %2774 = vmatprep.subr.mxu0 0.0
  %2775 = vmatpush1.msra.mxu0 0.0
  %2776 = vmatprep.subr.mxu0 0.0
  %2777 = vmatpush1.msra.mxu0 0.0
  %2778 = vmatprep.subr.mxu0 0.0
  %2779 = vmatpush1.msra.mxu0 0.0
  %2780 = vmatprep.subr.mxu0 0.0
  %2781 = vmatpush1.msra.mxu0 0.0
  %2782 = vmatprep.subr.mxu0 0.0
  %2783 = vmatpush1.msra.mxu0 0.0
  %2784 = vmatprep.subr.mxu0 0.0
  %2785 = vmatpush1.msra.mxu0 0.0
  %2786 = vmatprep.subr.mxu0 0.0
  %2787 = vmatpush1.msra.mxu0 0.0
  %2788 = vmatprep.subr.mxu0 0.0
  %2789 = vmatpush1.msra.mxu0 0.0
  %2790 = vmatprep.subr.mxu0 0.0
  %2791 = vmatpush1.msra.mxu0 0.0
  %2792 = vmatprep.subr.mxu0 0.0
  %2793 = vmatpush1.msra.mxu0 0.0
  %2794 = vmatprep.subr.mxu0 0.0
  %2795 = vmatpush1.msra.mxu0 0.0
  %2796 = vmatprep.subr.mxu0 0.0
  %2797 = vmatpush1.msra.mxu0 0.0
  %2798 = vmatprep.subr.mxu0 0.0
  %2799 = vmatpush1.msra.mxu0 0.0
  %2800 = vmatprep.subr.mxu0 0.0
  %2801 = vmatpush1.msra.mxu0 0.0
  %2802 = vmatprep.subr.mxu0 0.0
  %2803 = vmatpush1.msra.mxu0 0.0
  %2804 = vmatprep.subr.mxu0 0.0
  %2805 = vmatpush1.msra.mxu0 0.0
  %2806 = vmatprep.subr.mxu0 0.0
  %2807 = vmatpush1.msra.mxu0 0.0
  %2808 = vmatprep.subr.mxu0 0.0
  %2809 = vmatpush1.msra.mxu0 0.0
  %2810 = vmatprep.subr.mxu0 0.0
  %2811 = vmatpush1.msra.mxu0 0.0
  %2812 = vmatprep.subr.mxu0 0.0
  %2813 = vmatpush1.msra.mxu0 0.0
  %2814 = vmatprep.subr.mxu0 0.0
  %2815 = vmatpush1.msra.mxu0 0.0
  %2816 = vmatprep.mubr.f32.mxu0 0.0
  %2817 = vmatmul.mubr.f32.gmra.mrb[0].mxu0 %v2750
  %v2818 = vpop.f32.mrb[0].mxu0
  %v2819 = vadd.f32 %v2747, %v2818
  %v2820 = vpop.f32.mrb[0].mxu0
  %2821 = vdwg.mxu0
  %v2822 = vxor.u32 %v2819, 2147483648
  %v2823 = vmul.f32 %v2822, 1.442695
  %v2824 = vpow.pop %v2823
  %v2825 = vadd.f32 %v2824, 1.0
  %v2826 = vrcp.pop %v2825
  %v2827 = vmul.f32 1.0, %v2826
  %v2828 = vtanh.pop %v2819
  %v2829 = vmul.f32 %v2827, %v2406
  %2831 = vrot.lane.b32.xlu0 %v2828, 32
  %v2832 = vpop.permute.xlu0 %2831
  %v2834 = vmul.f32 %v2827, %v2832
  %2836 = vrot.lane.b32.xlu0 %v2834, 32
  %v2837 = vpop.permute.xlu0 %2836
  %v2839 = vadd.f32 %v2829, %v2837
  %v2840 = vtanh.pop %v2839
  %2842 = vrot.lane.b32.xlu0 %v2840, 32
  %v2843 = vpop.permute.xlu0 %2842
  %v2845 = vmul.f32 %v2827, %v2843
  %2847 = vrot.lane.b32.xlu0 %v2845, 64
  %v2848 = vpop.permute.xlu0 %2847
  %2850 = vrot.lane.b32.xlu0 %v2722, 32
  %v2851 = vpop.permute.xlu0 %2850
  %v2853 = vsel %vm255, %v2848, %v2851
  %v2854 = vld [vmem:[%s9] sm:$0xff]
  %v2855 = vld [vmem:[%s9 + $0x8] sm:$0xff]
  %v2856 = vld [vmem:[%s9 + $0x10] sm:$0xff]
  %v2857 = vld [vmem:[%s9 + $0x18] sm:$0xff]
  %v2858 = vld [vmem:[%s9 + $0x20] sm:$0xff]
  %v2859 = vld [vmem:[%s9 + $0x28] sm:$0xff]
  %v2860 = vld [vmem:[%s9 + $0x30] sm:$0xff]
  %v2861 = vld [vmem:[%s9 + $0x38] sm:$0xff]
  %v2862 = vld [vmem:[%s10] sm:$0x1]
  %v2864 = vlaneseq
  %v2865 = vshrl.u32 %v2864, 7
  %v2866 = vsub.s32 0, %v2865
  %v2867 = vrot.slane %v2862, %v2866
  %v2870 = vsel %vm1672, %v2853, 0
  %2872 = vmatprep.subr.mxu0 0.0
  %2873 = vmatpush1.msra.mxu0 %v2854
  %2874 = vmatprep.subr.mxu0 0.0
  %2875 = vmatpush1.msra.mxu0 %v2855
  %2876 = vmatprep.subr.mxu0 0.0
  %2877 = vmatpush1.msra.mxu0 %v2856
  %2878 = vmatprep.subr.mxu0 0.0
  %2879 = vmatpush1.msra.mxu0 %v2857
  %2880 = vmatprep.subr.mxu0 0.0
  %2881 = vmatpush1.msra.mxu0 %v2858
  %2882 = vmatprep.subr.mxu0 0.0
  %2883 = vmatpush1.msra.mxu0 %v2859
  %2884 = vmatprep.subr.mxu0 0.0
  %2885 = vmatpush1.msra.mxu0 %v2860
  %2886 = vmatprep.subr.mxu0 0.0
  %2887 = vmatpush1.msra.mxu0 %v2861
  %2888 = vmatprep.subr.mxu0 0.0
  %2889 = vmatpush1.msra.mxu0 0.0
  %2890 = vmatprep.subr.mxu0 0.0
  %2891 = vmatpush1.msra.mxu0 0.0
  %2892 = vmatprep.subr.mxu0 0.0
  %2893 = vmatpush1.msra.mxu0 0.0
  %2894 = vmatprep.subr.mxu0 0.0
  %2895 = vmatpush1.msra.mxu0 0.0
  %2896 = vmatprep.subr.mxu0 0.0
  %2897 = vmatpush1.msra.mxu0 0.0
  %2898 = vmatprep.subr.mxu0 0.0
  %2899 = vmatpush1.msra.mxu0 0.0
  %2900 = vmatprep.subr.mxu0 0.0
  %2901 = vmatpush1.msra.mxu0 0.0
  %2902 = vmatprep.subr.mxu0 0.0
  %2903 = vmatpush1.msra.mxu0 0.0
  %2904 = vmatprep.subr.mxu0 0.0
  %2905 = vmatpush1.msra.mxu0 0.0
  %2906 = vmatprep.subr.mxu0 0.0
  %2907 = vmatpush1.msra.mxu0 0.0
  %2908 = vmatprep.subr.mxu0 0.0
  %2909 = vmatpush1.msra.mxu0 0.0
  %2910 = vmatprep.subr.mxu0 0.0
  %2911 = vmatpush1.msra.mxu0 0.0
  %2912 = vmatprep.subr.mxu0 0.0
  %2913 = vmatpush1.msra.mxu0 0.0
  %2914 = vmatprep.subr.mxu0 0.0
  %2915 = vmatpush1.msra.mxu0 0.0
  %2916 = vmatprep.subr.mxu0 0.0
  %2917 = vmatpush1.msra.mxu0 0.0
  %2918 = vmatprep.subr.mxu0 0.0
  %2919 = vmatpush1.msra.mxu0 0.0
  %2920 = vmatprep.subr.mxu0 0.0
  %2921 = vmatpush1.msra.mxu0 0.0
  %2922 = vmatprep.subr.mxu0 0.0
  %2923 = vmatpush1.msra.mxu0 0.0
  %2924 = vmatprep.subr.mxu0 0.0
  %2925 = vmatpush1.msra.mxu0 0.0
  %2926 = vmatprep.subr.mxu0 0.0
  %2927 = vmatpush1.msra.mxu0 0.0
  %2928 = vmatprep.subr.mxu0 0.0
  %2929 = vmatpush1.msra.mxu0 0.0
  %2930 = vmatprep.subr.mxu0 0.0
  %2931 = vmatpush1.msra.mxu0 0.0
  %2932 = vmatprep.subr.mxu0 0.0
  %2933 = vmatpush1.msra.mxu0 0.0
  %2934 = vmatprep.subr.mxu0 0.0
  %2935 = vmatpush1.msra.mxu0 0.0
  %2936 = vmatprep.mubr.f32.mxu0 0.0
  %2937 = vmatmul.mubr.f32.gmra.mrb[0].mxu0 %v2870
  %v2938 = vpop.f32.mrb[0].mxu0
  %v2939 = vadd.f32 %v2867, %v2938
  %v2940 = vpop.f32.mrb[0].mxu0
  %2941 = vdwg.mxu0
  %s2942 = scalar_lea.vmem %s11, 24
  %2943 = vst.msk [vmem:[%s2942] sm:$0xff] %vm1672, %v2939
  %v2944 = vsel %vm1672, %v2939, -inf
  %2945 = vmax.xlane.f32.xlu0 %v2944
  %v2946 = vpop.xlane.xlu0 %2945
  %vm2947 = vcmp.ge.f32.partialorder %v2939, %v2946
  %v2948 = vsel %vm2947, %v43, 64
  %v2949 = vsel %vm1672, %v2948, 2147483647
  %v2950 = vand.u32 %v2949, 65535
  %v2951 = vshra.s32 %v2949, 16
  %v2952 = vcvt.s32.f32 %v2950
  %v2953 = vcvt.s32.f32 %v2951
  %2954 = vmin.xlane.f32.xlu0 %v2953
  %v2955 = vpop.xlane.xlu0 %2954
  %vm2956 = vcmp.eq.f32.partialorder %v2953, %v2955
  %v2957 = vsel %vm2956, %v2952, inf
  %2958 = vmin.xlane.f32.xlu0 %v2957
  %v2959 = vpop.xlane.xlu0 %2958
  %v2960 = vcvt.f32.s32 %v2959
  %v2961 = vcvt.f32.s32 %v2955
  %v2962 = vshll.u32 %v2961, 16
  %v2963 = vadd.s32 %v2962, %v2960
  %vm2964 = vcmp.eq.s32.totalorder %v43, %v2963
  %v2965 = vsel %vm2964, 1, 0
  %v2966 = vcvt.s32.f32 %v2965
  %s2967 = scalar_lea.vmem %s2, 24
  %v2968 = vld [vmem:[%s2967] sm:$0xff]
  %2969 = vset.pattern.permute.xlu0 0
  %2970 = vperm.xlu0 %2969, %v2968
  %v2971 = vpop.permute.xlu0 %2970
  %vm2972 = vcmp.eq.s32.totalorder %v43, %v2971
  %v2973 = vsel %vm2972, 1, 0
  %v2974 = vcvt.s32.f32 %v2973
  %s2975 = sld [smem:[#allocation4 + $0x2]]
  %p2976 = scmp.ne.s32.totalorder %s2975, 0
  %s2977 = scalar_select %p2976, 1, 0
  %v2978 = vstv %s2977
  %vm2979 = vcmp.eq.s32.totalorder %v2978, 1
  %v2980 = vsel %vm2979, %v2974, %v2966
  %v2982 = vsel %vm1672, %v2980, 0
  %2984 = vmatprep.subr.mxu0 0.0
  %2985 = vmatpush1.msra.mxu0 %v50
  %2986 = vmatprep.subr.mxu0 0.0
  %2987 = vmatpush1.msra.mxu0 %v51
  %2988 = vmatprep.subr.mxu0 0.0
  %2989 = vmatpush1.msra.mxu0 %v52
  %2990 = vmatprep.subr.mxu0 0.0
  %2991 = vmatpush1.msra.mxu0 %v53
  %2992 = vmatprep.subr.mxu0 0.0
  %2993 = vmatpush1.msra.mxu0 %v54
  %2994 = vmatprep.subr.mxu0 0.0
  %2995 = vmatpush1.msra.mxu0 %v55
  %2996 = vmatprep.subr.mxu0 0.0
  %2997 = vmatpush1.msra.mxu0 %v56
  %2998 = vmatprep.subr.mxu0 0.0
  %2999 = vmatpush1.msra.mxu0 %v57
  %3000 = vmatprep.subr.mxu0 0.0
  %3001 = vmatpush1.msra.mxu0 0.0
  %3002 = vmatprep.subr.mxu0 0.0
  %3003 = vmatpush1.msra.mxu0 0.0
  %3004 = vmatprep.subr.mxu0 0.0
  %3005 = vmatpush1.msra.mxu0 0.0
  %3006 = vmatprep.subr.mxu0 0.0
  %3007 = vmatpush1.msra.mxu0 0.0
  %3008 = vmatprep.subr.mxu0 0.0
  %3009 = vmatpush1.msra.mxu0 0.0
  %3010 = vmatprep.subr.mxu0 0.0
  %3011 = vmatpush1.msra.mxu0 0.0
  %3012 = vmatprep.subr.mxu0 0.0
  %3013 = vmatpush1.msra.mxu0 0.0
  %3014 = vmatprep.subr.mxu0 0.0
  %3015 = vmatpush1.msra.mxu0 0.0
  %3016 = vmatprep.subr.mxu0 0.0
  %3017 = vmatpush1.msra.mxu0 0.0
  %3018 = vmatprep.subr.mxu0 0.0
  %3019 = vmatpush1.msra.mxu0 0.0
  %3020 = vmatprep.subr.mxu0 0.0
  %3021 = vmatpush1.msra.mxu0 0.0
  %3022 = vmatprep.subr.mxu0 0.0
  %3023 = vmatpush1.msra.mxu0 0.0
  %3024 = vmatprep.subr.mxu0 0.0
  %3025 = vmatpush1.msra.mxu0 0.0
  %3026 = vmatprep.subr.mxu0 0.0
  %3027 = vmatpush1.msra.mxu0 0.0
  %3028 = vmatprep.subr.mxu0 0.0
  %3029 = vmatpush1.msra.mxu0 0.0
  %3030 = vmatprep.subr.mxu0 0.0
  %3031 = vmatpush1.msra.mxu0 0.0
  %3032 = vmatprep.subr.mxu0 0.0
  %3033 = vmatpush1.msra.mxu0 0.0
  %3034 = vmatprep.subr.mxu0 0.0
  %3035 = vmatpush1.msra.mxu0 0.0
  %3036 = vmatprep.subr.mxu0 0.0
  %3037 = vmatpush1.msra.mxu0 0.0
  %3038 = vmatprep.subr.mxu0 0.0
  %3039 = vmatpush1.msra.mxu0 0.0
  %3040 = vmatprep.subr.mxu0 0.0
  %3041 = vmatpush1.msra.mxu0 0.0
  %3042 = vmatprep.subr.mxu0 0.0
  %3043 = vmatpush1.msra.mxu0 0.0
  %3044 = vmatprep.subr.mxu0 0.0
  %3045 = vmatpush1.msra.mxu0 0.0
  %3046 = vmatprep.subr.mxu0 0.0
  %3047 = vmatpush1.msra.mxu0 0.0
  %3048 = vmatprep.mubr.f32.mxu0 0.0
  %3049 = vmatmul.mubr.f32.gmra.mrb[0].mxu0 %v2982
  %v3050 = vpop.f32.mrb[0].mxu0
  %v3051 = vadd.f32 0.0, %v3050
  %v3052 = vpop.f32.mrb[0].mxu0
  %3053 = vdwg.mxu0
  %v3054 = vmul.f32 %v1664, %v2848
  %v3055 = vmul.f32 %v1665, %v2848
  %v3056 = vmul.f32 %v1666, %v2848
  %v3057 = vmul.f32 %v1667, %v2848
  %v3058 = vmul.f32 %v1668, %v2848
  %v3059 = vmul.f32 %v1669, %v2848
  %v3060 = vmul.f32 %v1670, %v2848
  %v3061 = vmul.f32 %v1671, %v2848
  %v3062 = vsel %vm255, %v3054, 0.0
  %3063 = vadd.xlane.f32.xlu0 %v3062
  %v3064 = vpop.xlane.xlu0 %3063
  %v3065 = vsel %vm255, %v3055, 0.0
  %3066 = vadd.xlane.f32.xlu0 %v3065
  %v3067 = vpop.xlane.xlu0 %3066
  %v3068 = vsel %vm255, %v3056, 0.0
  %3069 = vadd.xlane.f32.xlu0 %v3068
  %v3070 = vpop.xlane.xlu0 %3069
  %v3071 = vsel %vm255, %v3057, 0.0
  %3072 = vadd.xlane.f32.xlu0 %v3071
  %v3073 = vpop.xlane.xlu0 %3072
  %v3074 = vsel %vm255, %v3058, 0.0
  %3075 = vadd.xlane.f32.xlu0 %v3074
  %v3076 = vpop.xlane.xlu0 %3075
  %v3077 = vsel %vm255, %v3059, 0.0
  %3078 = vadd.xlane.f32.xlu0 %v3077
  %v3079 = vpop.xlane.xlu0 %3078
  %v3080 = vsel %vm255, %v3060, 0.0
  %3081 = vadd.xlane.f32.xlu0 %v3080
  %v3082 = vpop.xlane.xlu0 %3081
  %v3083 = vsel %vm255, %v3061, 0.0
  %3084 = vadd.xlane.f32.xlu0 %v3083
  %v3085 = vpop.xlane.xlu0 %3084
  %v3086 = vmax.f32 %v3064, %v3076
  %v3087 = vmax.f32 %v3067, %v3079
  %v3088 = vmax.f32 %v3070, %v3082
  %v3089 = vmax.f32 %v3073, %v3085
  %v3090 = vmax.f32 %v3086, %v3087
  %v3091 = vmax.f32 %v3088, %v3089
  %v3092 = vmax.f32 %v3090, %v3091
  %v3093 = vsub.f32 %v3064, %v3092
  %v3094 = vsub.f32 %v3067, %v3092
  %v3095 = vsub.f32 %v3070, %v3092
  %v3096 = vsub.f32 %v3073, %v3092
  %v3097 = vsub.f32 %v3076, %v3092
  %v3098 = vsub.f32 %v3079, %v3092
  %v3099 = vsub.f32 %v3082, %v3092
  %v3100 = vsub.f32 %v3085, %v3092
  %v3101 = vmul.f32 %v3093, 1.442695
  %v3102 = vpow.pop %v3101
  %v3103 = vmul.f32 %v3094, 1.442695
  %v3104 = vpow.pop %v3103
  %v3105 = vmul.f32 %v3095, 1.442695
  %v3106 = vpow.pop %v3105
  %v3107 = vmul.f32 %v3096, 1.442695
  %v3108 = vpow.pop %v3107
  %v3109 = vmul.f32 %v3097, 1.442695
  %v3110 = vpow.pop %v3109
  %v3111 = vmul.f32 %v3098, 1.442695
  %v3112 = vpow.pop %v3111
  %v3113 = vmul.f32 %v3099, 1.442695
  %v3114 = vpow.pop %v3113
  %v3115 = vmul.f32 %v3100, 1.442695
  %v3116 = vpow.pop %v3115
  %v3117 = vadd.f32 %v3102, %v3104
  %v3118 = vadd.f32 %v3117, %v3106
  %v3119 = vadd.f32 %v3118, %v3108
  %v3120 = vadd.f32 %v3119, %v3110
  %v3121 = vadd.f32 %v3120, %v3112
  %v3122 = vadd.f32 %v3121, %v3114
  %v3123 = vadd.f32 %v3122, %v3116
  %v3124 = vrcp.pop %v3123
  %v3125 = vmul.f32 %v3102, %v3124
  %v3126 = vmul.f32 %v3104, %v3124
  %v3127 = vmul.f32 %v3106, %v3124
  %v3128 = vmul.f32 %v3108, %v3124
  %v3129 = vmul.f32 %v3110, %v3124
  %v3130 = vmul.f32 %v3112, %v3124
  %v3131 = vmul.f32 %v3114, %v3124
  %v3132 = vmul.f32 %v3116, %v3124
  %v3133 = vmul.f32 %v3125, %v1664
  %v3134 = vmul.f32 %v3126, %v1665
  %v3135 = vmul.f32 %v3127, %v1666
  %v3136 = vmul.f32 %v3128, %v1667
  %v3137 = vmul.f32 %v3129, %v1668
  %v3138 = vmul.f32 %v3130, %v1669
  %v3139 = vmul.f32 %v3131, %v1670
  %v3140 = vmul.f32 %v3132, %v1671
  %v3141 = vsel %vm255, %v3133, 0.0
  %v3142 = vsel %vm255, %v3134, 0.0
  %v3143 = vadd.f32 %v3141, %v3142
  %v3144 = vsel %vm255, %v3135, 0.0
  %v3145 = vadd.f32 %v3143, %v3144
  %v3146 = vsel %vm255, %v3136, 0.0
  %v3147 = vadd.f32 %v3145, %v3146
  %v3148 = vsel %vm255, %v3137, 0.0
  %v3149 = vadd.f32 %v3147, %v3148
  %v3150 = vsel %vm255, %v3138, 0.0
  %v3151 = vadd.f32 %v3149, %v3150
  %v3152 = vsel %vm255, %v3139, 0.0
  %v3153 = vadd.f32 %v3151, %v3152
  %v3154 = vsel %vm255, %v3140, 0.0
  %v3155 = vadd.f32 %v3153, %v3154
  %3157 = vrot.lane.b32.xlu0 %v3155, 16
  %v3158 = vpop.permute.xlu0 %3157
  %3160 = vrot.lane.b32.xlu0 %v2845, 112
  %v3161 = vpop.permute.xlu0 %3160
  %v3163 = vsel %vm139, %v3051, %v3158
  %v3164 = vsel %vm65, %v3163, %v3161
  %v3165 = vld [vmem:[%s7] sm:$0xff]
  %v3166 = vld [vmem:[%s7 + $0x8] sm:$0xff]
  %v3167 = vld [vmem:[%s7 + $0x10] sm:$0xff]
  %v3168 = vld [vmem:[%s7 + $0x18] sm:$0xff]
  %v3169 = vld [vmem:[%s7 + $0x20] sm:$0xff]
  %v3170 = vld [vmem:[%s7 + $0x28] sm:$0xff]
  %v3171 = vld [vmem:[%s7 + $0x30] sm:$0xff]
  %v3172 = vld [vmem:[%s7 + $0x38] sm:$0xff]
  %v3173 = vld [vmem:[%s7 + $0x40] sm:$0xff]
  %v3174 = vld [vmem:[%s7 + $0x48] sm:$0xff]
  %v3175 = vld [vmem:[%s8] sm:$0x1]
  %v3177 = vlaneseq
  %v3178 = vshrl.u32 %v3177, 7
  %v3179 = vsub.s32 0, %v3178
  %v3180 = vrot.slane %v3175, %v3179
  %v3183 = vsel %vm1882, %v3164, 0
  %3185 = vmatprep.subr.mxu0 0.0
  %3186 = vmatpush1.msra.mxu0 %v3165
  %3187 = vmatprep.subr.mxu0 0.0
  %3188 = vmatpush1.msra.mxu0 %v3166
  %3189 = vmatprep.subr.mxu0 0.0
  %3190 = vmatpush1.msra.mxu0 %v3167
  %3191 = vmatprep.subr.mxu0 0.0
  %3192 = vmatpush1.msra.mxu0 %v3168
  %3193 = vmatprep.subr.mxu0 0.0
  %3194 = vmatpush1.msra.mxu0 %v3169
  %3195 = vmatprep.subr.mxu0 0.0
  %3196 = vmatpush1.msra.mxu0 %v3170
  %3197 = vmatprep.subr.mxu0 0.0
  %3198 = vmatpush1.msra.mxu0 %v3171
  %3199 = vmatprep.subr.mxu0 0.0
  %3200 = vmatpush1.msra.mxu0 %v3172
  %3201 = vmatprep.subr.mxu0 0.0
  %3202 = vmatpush1.msra.mxu0 %v3173
  %3203 = vmatprep.subr.mxu0 0.0
  %3204 = vmatpush1.msra.mxu0 %v3174
  %3205 = vmatprep.subr.mxu0 0.0
  %3206 = vmatpush1.msra.mxu0 0.0
  %3207 = vmatprep.subr.mxu0 0.0
  %3208 = vmatpush1.msra.mxu0 0.0
  %3209 = vmatprep.subr.mxu0 0.0
  %3210 = vmatpush1.msra.mxu0 0.0
  %3211 = vmatprep.subr.mxu0 0.0
  %3212 = vmatpush1.msra.mxu0 0.0
  %3213 = vmatprep.subr.mxu0 0.0
  %3214 = vmatpush1.msra.mxu0 0.0
  %3215 = vmatprep.subr.mxu0 0.0
  %3216 = vmatpush1.msra.mxu0 0.0
  %3217 = vmatprep.subr.mxu0 0.0
  %3218 = vmatpush1.msra.mxu0 0.0
  %3219 = vmatprep.subr.mxu0 0.0
  %3220 = vmatpush1.msra.mxu0 0.0
  %3221 = vmatprep.subr.mxu0 0.0
  %3222 = vmatpush1.msra.mxu0 0.0
  %3223 = vmatprep.subr.mxu0 0.0
  %3224 = vmatpush1.msra.mxu0 0.0
  %3225 = vmatprep.subr.mxu0 0.0
  %3226 = vmatpush1.msra.mxu0 0.0
  %3227 = vmatprep.subr.mxu0 0.0
  %3228 = vmatpush1.msra.mxu0 0.0
  %3229 = vmatprep.subr.mxu0 0.0
  %3230 = vmatpush1.msra.mxu0 0.0
  %3231 = vmatprep.subr.mxu0 0.0
  %3232 = vmatpush1.msra.mxu0 0.0
  %3233 = vmatprep.subr.mxu0 0.0
  %3234 = vmatpush1.msra.mxu0 0.0
  %3235 = vmatprep.subr.mxu0 0.0
  %3236 = vmatpush1.msra.mxu0 0.0
  %3237 = vmatprep.subr.mxu0 0.0
  %3238 = vmatpush1.msra.mxu0 0.0
  %3239 = vmatprep.subr.mxu0 0.0
  %3240 = vmatpush1.msra.mxu0 0.0
  %3241 = vmatprep.subr.mxu0 0.0
  %3242 = vmatpush1.msra.mxu0 0.0
  %3243 = vmatprep.subr.mxu0 0.0
  %3244 = vmatpush1.msra.mxu0 0.0
  %3245 = vmatprep.subr.mxu0 0.0
  %3246 = vmatpush1.msra.mxu0 0.0
  %3247 = vmatprep.subr.mxu0 0.0
  %3248 = vmatpush1.msra.mxu0 0.0
  %3249 = vmatprep.mubr.f32.mxu0 0.0
  %3250 = vmatmul.mubr.f32.gmra.mrb[0].mxu0 %v3183
  %v3251 = vpop.f32.mrb[0].mxu0
  %v3252 = vadd.f32 %v3180, %v3251
  %v3253 = vpop.f32.mrb[0].mxu0
  %3254 = vdwg.mxu0
  %v3255 = vxor.u32 %v3252, 2147483648
  %v3256 = vmul.f32 %v3255, 1.442695
  %v3257 = vpow.pop %v3256
  %v3258 = vadd.f32 %v3257, 1.0
  %v3259 = vrcp.pop %v3258
  %v3260 = vmul.f32 1.0, %v3259
  %v3261 = vtanh.pop %v3252
  %v3262 = vmul.f32 %v3260, %v2839
  %3264 = vrot.lane.b32.xlu0 %v3261, 32
  %v3265 = vpop.permute.xlu0 %3264
  %v3267 = vmul.f32 %v3260, %v3265
  %3269 = vrot.lane.b32.xlu0 %v3267, 32
  %v3270 = vpop.permute.xlu0 %3269
  %v3272 = vadd.f32 %v3262, %v3270
  %v3273 = vtanh.pop %v3272
  %3275 = vrot.lane.b32.xlu0 %v3273, 32
  %v3276 = vpop.permute.xlu0 %3275
  %v3278 = vmul.f32 %v3260, %v3276
  %3280 = vrot.lane.b32.xlu0 %v3278, 64
  %v3281 = vpop.permute.xlu0 %3280
  %3283 = vrot.lane.b32.xlu0 %v3155, 32
  %v3284 = vpop.permute.xlu0 %3283
  %v3286 = vsel %vm255, %v3281, %v3284
  %v3287 = vld [vmem:[%s9] sm:$0xff]
  %v3288 = vld [vmem:[%s9 + $0x8] sm:$0xff]
  %v3289 = vld [vmem:[%s9 + $0x10] sm:$0xff]
  %v3290 = vld [vmem:[%s9 + $0x18] sm:$0xff]
  %v3291 = vld [vmem:[%s9 + $0x20] sm:$0xff]
  %v3292 = vld [vmem:[%s9 + $0x28] sm:$0xff]
  %v3293 = vld [vmem:[%s9 + $0x30] sm:$0xff]
  %v3294 = vld [vmem:[%s9 + $0x38] sm:$0xff]
  %v3295 = vld [vmem:[%s10] sm:$0x1]
  %v3297 = vlaneseq
  %v3298 = vshrl.u32 %v3297, 7
  %v3299 = vsub.s32 0, %v3298
  %v3300 = vrot.slane %v3295, %v3299
  %v3303 = vsel %vm1672, %v3286, 0
  %3305 = vmatprep.subr.mxu0 0.0
  %3306 = vmatpush1.msra.mxu0 %v3287
  %3307 = vmatprep.subr.mxu0 0.0
  %3308 = vmatpush1.msra.mxu0 %v3288
  %3309 = vmatprep.subr.mxu0 0.0
  %3310 = vmatpush1.msra.mxu0 %v3289
  %3311 = vmatprep.subr.mxu0 0.0
  %3312 = vmatpush1.msra.mxu0 %v3290
  %3313 = vmatprep.subr.mxu0 0.0
  %3314 = vmatpush1.msra.mxu0 %v3291
  %3315 = vmatprep.subr.mxu0 0.0
  %3316 = vmatpush1.msra.mxu0 %v3292
  %3317 = vmatprep.subr.mxu0 0.0
  %3318 = vmatpush1.msra.mxu0 %v3293
  %3319 = vmatprep.subr.mxu0 0.0
  %3320 = vmatpush1.msra.mxu0 %v3294
  %3321 = vmatprep.subr.mxu0 0.0
  %3322 = vmatpush1.msra.mxu0 0.0
  %3323 = vmatprep.subr.mxu0 0.0
  %3324 = vmatpush1.msra.mxu0 0.0
  %3325 = vmatprep.subr.mxu0 0.0
  %3326 = vmatpush1.msra.mxu0 0.0
  %3327 = vmatprep.subr.mxu0 0.0
  %3328 = vmatpush1.msra.mxu0 0.0
  %3329 = vmatprep.subr.mxu0 0.0
  %3330 = vmatpush1.msra.mxu0 0.0
  %3331 = vmatprep.subr.mxu0 0.0
  %3332 = vmatpush1.msra.mxu0 0.0
  %3333 = vmatprep.subr.mxu0 0.0
  %3334 = vmatpush1.msra.mxu0 0.0
  %3335 = vmatprep.subr.mxu0 0.0
  %3336 = vmatpush1.msra.mxu0 0.0
  %3337 = vmatprep.subr.mxu0 0.0
  %3338 = vmatpush1.msra.mxu0 0.0
  %3339 = vmatprep.subr.mxu0 0.0
  %3340 = vmatpush1.msra.mxu0 0.0
  %3341 = vmatprep.subr.mxu0 0.0
  %3342 = vmatpush1.msra.mxu0 0.0
  %3343 = vmatprep.subr.mxu0 0.0
  %3344 = vmatpush1.msra.mxu0 0.0
  %3345 = vmatprep.subr.mxu0 0.0
  %3346 = vmatpush1.msra.mxu0 0.0
  %3347 = vmatprep.subr.mxu0 0.0
  %3348 = vmatpush1.msra.mxu0 0.0
  %3349 = vmatprep.subr.mxu0 0.0
  %3350 = vmatpush1.msra.mxu0 0.0
  %3351 = vmatprep.subr.mxu0 0.0
  %3352 = vmatpush1.msra.mxu0 0.0
  %3353 = vmatprep.subr.mxu0 0.0
  %3354 = vmatpush1.msra.mxu0 0.0
  %3355 = vmatprep.subr.mxu0 0.0
  %3356 = vmatpush1.msra.mxu0 0.0
  %3357 = vmatprep.subr.mxu0 0.0
  %3358 = vmatpush1.msra.mxu0 0.0
  %3359 = vmatprep.subr.mxu0 0.0
  %3360 = vmatpush1.msra.mxu0 0.0
  %3361 = vmatprep.subr.mxu0 0.0
  %3362 = vmatpush1.msra.mxu0 0.0
  %3363 = vmatprep.subr.mxu0 0.0
  %3364 = vmatpush1.msra.mxu0 0.0
  %3365 = vmatprep.subr.mxu0 0.0
  %3366 = vmatpush1.msra.mxu0 0.0
  %3367 = vmatprep.subr.mxu0 0.0
  %3368 = vmatpush1.msra.mxu0 0.0
  %3369 = vmatprep.mubr.f32.mxu0 0.0
  %3370 = vmatmul.mubr.f32.gmra.mrb[0].mxu0 %v3303
  %v3371 = vpop.f32.mrb[0].mxu0
  %v3372 = vadd.f32 %v3300, %v3371
  %v3373 = vpop.f32.mrb[0].mxu0
  %3374 = vdwg.mxu0
  %s3375 = scalar_lea.vmem %s11, 32
  %3376 = vst.msk [vmem:[%s3375] sm:$0xff] %vm1672, %v3372
  %v3377 = vsel %vm1672, %v3372, -inf
  %3378 = vmax.xlane.f32.xlu0 %v3377
  %v3379 = vpop.xlane.xlu0 %3378
  %vm3380 = vcmp.ge.f32.partialorder %v3372, %v3379
  %v3381 = vsel %vm3380, %v43, 64
  %v3382 = vsel %vm1672, %v3381, 2147483647
  %v3383 = vand.u32 %v3382, 65535
  %v3384 = vshra.s32 %v3382, 16
  %v3385 = vcvt.s32.f32 %v3383
  %v3386 = vcvt.s32.f32 %v3384
  %3387 = vmin.xlane.f32.xlu0 %v3386
  %v3388 = vpop.xlane.xlu0 %3387
  %vm3389 = vcmp.eq.f32.partialorder %v3386, %v3388
  %v3390 = vsel %vm3389, %v3385, inf
  %3391 = vmin.xlane.f32.xlu0 %v3390
  %v3392 = vpop.xlane.xlu0 %3391
  %v3393 = vcvt.f32.s32 %v3392
  %v3394 = vcvt.f32.s32 %v3388
  %v3395 = vshll.u32 %v3394, 16
  %v3396 = vadd.s32 %v3395, %v3393
  %vm3397 = vcmp.eq.s32.totalorder %v43, %v3396
  %v3398 = vsel %vm3397, 1, 0
  %v3399 = vcvt.s32.f32 %v3398
  %s3400 = scalar_lea.vmem %s2, 32
  %v3401 = vld [vmem:[%s3400] sm:$0xff]
  %3402 = vset.pattern.permute.xlu0 0
  %3403 = vperm.xlu0 %3402, %v3401
  %v3404 = vpop.permute.xlu0 %3403
  %vm3405 = vcmp.eq.s32.totalorder %v43, %v3404
  %v3406 = vsel %vm3405, 1, 0
  %v3407 = vcvt.s32.f32 %v3406
  %s3408 = sld [smem:[#allocation4 + $0x3]]
  %p3409 = scmp.ne.s32.totalorder %s3408, 0
  %s3410 = scalar_select %p3409, 1, 0
  %v3411 = vstv %s3410
  %vm3412 = vcmp.eq.s32.totalorder %v3411, 1
  %v3413 = vsel %vm3412, %v3407, %v3399
  %v3415 = vsel %vm1672, %v3413, 0
  %3417 = vmatprep.subr.mxu0 0.0
  %3418 = vmatpush1.msra.mxu0 %v50
  %3419 = vmatprep.subr.mxu0 0.0
  %3420 = vmatpush1.msra.mxu0 %v51
  %3421 = vmatprep.subr.mxu0 0.0
  %3422 = vmatpush1.msra.mxu0 %v52
  %3423 = vmatprep.subr.mxu0 0.0
  %3424 = vmatpush1.msra.mxu0 %v53
  %3425 = vmatprep.subr.mxu0 0.0
  %3426 = vmatpush1.msra.mxu0 %v54
  %3427 = vmatprep.subr.mxu0 0.0
  %3428 = vmatpush1.msra.mxu0 %v55
  %3429 = vmatprep.subr.mxu0 0.0
  %3430 = vmatpush1.msra.mxu0 %v56
  %3431 = vmatprep.subr.mxu0 0.0
  %3432 = vmatpush1.msra.mxu0 %v57
  %3433 = vmatprep.subr.mxu0 0.0
  %3434 = vmatpush1.msra.mxu0 0.0
  %3435 = vmatprep.subr.mxu0 0.0
  %3436 = vmatpush1.msra.mxu0 0.0
  %3437 = vmatprep.subr.mxu0 0.0
  %3438 = vmatpush1.msra.mxu0 0.0
  %3439 = vmatprep.subr.mxu0 0.0
  %3440 = vmatpush1.msra.mxu0 0.0
  %3441 = vmatprep.subr.mxu0 0.0
  %3442 = vmatpush1.msra.mxu0 0.0
  %3443 = vmatprep.subr.mxu0 0.0
  %3444 = vmatpush1.msra.mxu0 0.0
  %3445 = vmatprep.subr.mxu0 0.0
  %3446 = vmatpush1.msra.mxu0 0.0
  %3447 = vmatprep.subr.mxu0 0.0
  %3448 = vmatpush1.msra.mxu0 0.0
  %3449 = vmatprep.subr.mxu0 0.0
  %3450 = vmatpush1.msra.mxu0 0.0
  %3451 = vmatprep.subr.mxu0 0.0
  %3452 = vmatpush1.msra.mxu0 0.0
  %3453 = vmatprep.subr.mxu0 0.0
  %3454 = vmatpush1.msra.mxu0 0.0
  %3455 = vmatprep.subr.mxu0 0.0
  %3456 = vmatpush1.msra.mxu0 0.0
  %3457 = vmatprep.subr.mxu0 0.0
  %3458 = vmatpush1.msra.mxu0 0.0
  %3459 = vmatprep.subr.mxu0 0.0
  %3460 = vmatpush1.msra.mxu0 0.0
  %3461 = vmatprep.subr.mxu0 0.0
  %3462 = vmatpush1.msra.mxu0 0.0
  %3463 = vmatprep.subr.mxu0 0.0
  %3464 = vmatpush1.msra.mxu0 0.0
  %3465 = vmatprep.subr.mxu0 0.0
  %3466 = vmatpush1.msra.mxu0 0.0
  %3467 = vmatprep.subr.mxu0 0.0
  %3468 = vmatpush1.msra.mxu0 0.0
  %3469 = vmatprep.subr.mxu0 0.0
  %3470 = vmatpush1.msra.mxu0 0.0
  %3471 = vmatprep.subr.mxu0 0.0
  %3472 = vmatpush1.msra.mxu0 0.0
  %3473 = vmatprep.subr.mxu0 0.0
  %3474 = vmatpush1.msra.mxu0 0.0
  %3475 = vmatprep.subr.mxu0 0.0
  %3476 = vmatpush1.msra.mxu0 0.0
  %3477 = vmatprep.subr.mxu0 0.0
  %3478 = vmatpush1.msra.mxu0 0.0
  %3479 = vmatprep.subr.mxu0 0.0
  %3480 = vmatpush1.msra.mxu0 0.0
  %3481 = vmatprep.mubr.f32.mxu0 0.0
  %3482 = vmatmul.mubr.f32.gmra.mrb[0].mxu0 %v3415
  %v3483 = vpop.f32.mrb[0].mxu0
  %v3484 = vadd.f32 0.0, %v3483
  %v3485 = vpop.f32.mrb[0].mxu0
  %3486 = vdwg.mxu0
  %v3487 = vmul.f32 %v1664, %v3281
  %v3488 = vmul.f32 %v1665, %v3281
  %v3489 = vmul.f32 %v1666, %v3281
  %v3490 = vmul.f32 %v1667, %v3281
  %v3491 = vmul.f32 %v1668, %v3281
  %v3492 = vmul.f32 %v1669, %v3281
  %v3493 = vmul.f32 %v1670, %v3281
  %v3494 = vmul.f32 %v1671, %v3281
  %v3495 = vsel %vm255, %v3487, 0.0
  %3496 = vadd.xlane.f32.xlu0 %v3495
  %v3497 = vpop.xlane.xlu0 %3496
  %v3498 = vsel %vm255, %v3488, 0.0
  %3499 = vadd.xlane.f32.xlu0 %v3498
  %v3500 = vpop.xlane.xlu0 %3499
  %v3501 = vsel %vm255, %v3489, 0.0
  %3502 = vadd.xlane.f32.xlu0 %v3501
  %v3503 = vpop.xlane.xlu0 %3502
  %v3504 = vsel %vm255, %v3490, 0.0
  %3505 = vadd.xlane.f32.xlu0 %v3504
  %v3506 = vpop.xlane.xlu0 %3505
  %v3507 = vsel %vm255, %v3491, 0.0
  %3508 = vadd.xlane.f32.xlu0 %v3507
  %v3509 = vpop.xlane.xlu0 %3508
  %v3510 = vsel %vm255, %v3492, 0.0
  %3511 = vadd.xlane.f32.xlu0 %v3510
  %v3512 = vpop.xlane.xlu0 %3511
  %v3513 = vsel %vm255, %v3493, 0.0
  %3514 = vadd.xlane.f32.xlu0 %v3513
  %v3515 = vpop.xlane.xlu0 %3514
  %v3516 = vsel %vm255, %v3494, 0.0
  %3517 = vadd.xlane.f32.xlu0 %v3516
  %v3518 = vpop.xlane.xlu0 %3517
  %v3519 = vmax.f32 %v3497, %v3509
  %v3520 = vmax.f32 %v3500, %v3512
  %v3521 = vmax.f32 %v3503, %v3515
  %v3522 = vmax.f32 %v3506, %v3518
  %v3523 = vmax.f32 %v3519, %v3520
  %v3524 = vmax.f32 %v3521, %v3522
  %v3525 = vmax.f32 %v3523, %v3524
  %v3526 = vsub.f32 %v3497, %v3525
  %v3527 = vsub.f32 %v3500, %v3525
  %v3528 = vsub.f32 %v3503, %v3525
  %v3529 = vsub.f32 %v3506, %v3525
  %v3530 = vsub.f32 %v3509, %v3525
  %v3531 = vsub.f32 %v3512, %v3525
  %v3532 = vsub.f32 %v3515, %v3525
  %v3533 = vsub.f32 %v3518, %v3525
  %v3534 = vmul.f32 %v3526, 1.442695
  %v3535 = vpow.pop %v3534
  %v3536 = vmul.f32 %v3527, 1.442695
  %v3537 = vpow.pop %v3536
  %v3538 = vmul.f32 %v3528, 1.442695
  %v3539 = vpow.pop %v3538
  %v3540 = vmul.f32 %v3529, 1.442695
  %v3541 = vpow.pop %v3540
  %v3542 = vmul.f32 %v3530, 1.442695
  %v3543 = vpow.pop %v3542
  %v3544 = vmul.f32 %v3531, 1.442695
  %v3545 = vpow.pop %v3544
  %v3546 = vmul.f32 %v3532, 1.442695
  %v3547 = vpow.pop %v3546
  %v3548 = vmul.f32 %v3533, 1.442695
  %v3549 = vpow.pop %v3548
  %v3550 = vadd.f32 %v3535, %v3537
  %v3551 = vadd.f32 %v3550, %v3539
  %v3552 = vadd.f32 %v3551, %v3541
  %v3553 = vadd.f32 %v3552, %v3543
  %v3554 = vadd.f32 %v3553, %v3545
  %v3555 = vadd.f32 %v3554, %v3547
  %v3556 = vadd.f32 %v3555, %v3549
  %v3557 = vrcp.pop %v3556
  %v3558 = vmul.f32 %v3535, %v3557
  %v3559 = vmul.f32 %v3537, %v3557
  %v3560 = vmul.f32 %v3539, %v3557
  %v3561 = vmul.f32 %v3541, %v3557
  %v3562 = vmul.f32 %v3543, %v3557
  %v3563 = vmul.f32 %v3545, %v3557
  %v3564 = vmul.f32 %v3547, %v3557
  %v3565 = vmul.f32 %v3549, %v3557
  %v3566 = vmul.f32 %v3558, %v1664
  %v3567 = vmul.f32 %v3559, %v1665
  %v3568 = vmul.f32 %v3560, %v1666
  %v3569 = vmul.f32 %v3561, %v1667
  %v3570 = vmul.f32 %v3562, %v1668
  %v3571 = vmul.f32 %v3563, %v1669
  %v3572 = vmul.f32 %v3564, %v1670
  %v3573 = vmul.f32 %v3565, %v1671
  %v3574 = vsel %vm255, %v3566, 0.0
  %v3575 = vsel %vm255, %v3567, 0.0
  %v3576 = vadd.f32 %v3574, %v3575
  %v3577 = vsel %vm255, %v3568, 0.0
  %v3578 = vadd.f32 %v3576, %v3577
  %v3579 = vsel %vm255, %v3569, 0.0
  %v3580 = vadd.f32 %v3578, %v3579
  %v3581 = vsel %vm255, %v3570, 0.0
  %v3582 = vadd.f32 %v3580, %v3581
  %v3583 = vsel %vm255, %v3571, 0.0
  %v3584 = vadd.f32 %v3582, %v3583
  %v3585 = vsel %vm255, %v3572, 0.0
  %v3586 = vadd.f32 %v3584, %v3585
  %v3587 = vsel %vm255, %v3573, 0.0
  %v3588 = vadd.f32 %v3586, %v3587
  %3590 = vrot.lane.b32.xlu0 %v3588, 16
  %v3591 = vpop.permute.xlu0 %3590
  %3593 = vrot.lane.b32.xlu0 %v3278, 112
  %v3594 = vpop.permute.xlu0 %3593
  %v3596 = vsel %vm139, %v3484, %v3591
  %v3597 = vsel %vm65, %v3596, %v3594
  %v3598 = vld [vmem:[%s7] sm:$0xff]
  %v3599 = vld [vmem:[%s7 + $0x8] sm:$0xff]
  %v3600 = vld [vmem:[%s7 + $0x10] sm:$0xff]
  %v3601 = vld [vmem:[%s7 + $0x18] sm:$0xff]
  %v3602 = vld [vmem:[%s7 + $0x20] sm:$0xff]
  %v3603 = vld [vmem:[%s7 + $0x28] sm:$0xff]
  %v3604 = vld [vmem:[%s7 + $0x30] sm:$0xff]
  %v3605 = vld [vmem:[%s7 + $0x38] sm:$0xff]
  %v3606 = vld [vmem:[%s7 + $0x40] sm:$0xff]
  %v3607 = vld [vmem:[%s7 + $0x48] sm:$0xff]
  %v3608 = vld [vmem:[%s8] sm:$0x1]
  %v3610 = vlaneseq
  %v3611 = vshrl.u32 %v3610, 7
  %v3612 = vsub.s32 0, %v3611
  %v3613 = vrot.slane %v3608, %v3612
  %v3616 = vsel %vm1882, %v3597, 0
  %3618 = vmatprep.subr.mxu0 0.0
  %3619 = vmatpush1.msra.mxu0 %v3598
  %3620 = vmatprep.subr.mxu0 0.0
  %3621 = vmatpush1.msra.mxu0 %v3599
  %3622 = vmatprep.subr.mxu0 0.0
  %3623 = vmatpush1.msra.mxu0 %v3600
  %3624 = vmatprep.subr.mxu0 0.0
  %3625 = vmatpush1.msra.mxu0 %v3601
  %3626 = vmatprep.subr.mxu0 0.0
  %3627 = vmatpush1.msra.mxu0 %v3602
  %3628 = vmatprep.subr.mxu0 0.0
  %3629 = vmatpush1.msra.mxu0 %v3603
  %3630 = vmatprep.subr.mxu0 0.0
  %3631 = vmatpush1.msra.mxu0 %v3604
  %3632 = vmatprep.subr.mxu0 0.0
  %3633 = vmatpush1.msra.mxu0 %v3605
  %3634 = vmatprep.subr.mxu0 0.0
  %3635 = vmatpush1.msra.mxu0 %v3606
  %3636 = vmatprep.subr.mxu0 0.0
  %3637 = vmatpush1.msra.mxu0 %v3607
  %3638 = vmatprep.subr.mxu0 0.0
  %3639 = vmatpush1.msra.mxu0 0.0
  %3640 = vmatprep.subr.mxu0 0.0
  %3641 = vmatpush1.msra.mxu0 0.0
  %3642 = vmatprep.subr.mxu0 0.0
  %3643 = vmatpush1.msra.mxu0 0.0
  %3644 = vmatprep.subr.mxu0 0.0
  %3645 = vmatpush1.msra.mxu0 0.0
  %3646 = vmatprep.subr.mxu0 0.0
  %3647 = vmatpush1.msra.mxu0 0.0
  %3648 = vmatprep.subr.mxu0 0.0
  %3649 = vmatpush1.msra.mxu0 0.0
  %3650 = vmatprep.subr.mxu0 0.0
  %3651 = vmatpush1.msra.mxu0 0.0
  %3652 = vmatprep.subr.mxu0 0.0
  %3653 = vmatpush1.msra.mxu0 0.0
  %3654 = vmatprep.subr.mxu0 0.0
  %3655 = vmatpush1.msra.mxu0 0.0
  %3656 = vmatprep.subr.mxu0 0.0
  %3657 = vmatpush1.msra.mxu0 0.0
  %3658 = vmatprep.subr.mxu0 0.0
  %3659 = vmatpush1.msra.mxu0 0.0
  %3660 = vmatprep.subr.mxu0 0.0
  %3661 = vmatpush1.msra.mxu0 0.0
  %3662 = vmatprep.subr.mxu0 0.0
  %3663 = vmatpush1.msra.mxu0 0.0
  %3664 = vmatprep.subr.mxu0 0.0
  %3665 = vmatpush1.msra.mxu0 0.0
  %3666 = vmatprep.subr.mxu0 0.0
  %3667 = vmatpush1.msra.mxu0 0.0
  %3668 = vmatprep.subr.mxu0 0.0
  %3669 = vmatpush1.msra.mxu0 0.0
  %3670 = vmatprep.subr.mxu0 0.0
  %3671 = vmatpush1.msra.mxu0 0.0
  %3672 = vmatprep.subr.mxu0 0.0
  %3673 = vmatpush1.msra.mxu0 0.0
  %3674 = vmatprep.subr.mxu0 0.0
  %3675 = vmatpush1.msra.mxu0 0.0
  %3676 = vmatprep.subr.mxu0 0.0
  %3677 = vmatpush1.msra.mxu0 0.0
  %3678 = vmatprep.subr.mxu0 0.0
  %3679 = vmatpush1.msra.mxu0 0.0
  %3680 = vmatprep.subr.mxu0 0.0
  %3681 = vmatpush1.msra.mxu0 0.0
  %3682 = vmatprep.mubr.f32.mxu0 0.0
  %3683 = vmatmul.mubr.f32.gmra.mrb[0].mxu0 %v3616
  %v3684 = vpop.f32.mrb[0].mxu0
  %v3685 = vadd.f32 %v3613, %v3684
  %v3686 = vpop.f32.mrb[0].mxu0
  %3687 = vdwg.mxu0
  %v3688 = vxor.u32 %v3685, 2147483648
  %v3689 = vmul.f32 %v3688, 1.442695
  %v3690 = vpow.pop %v3689
  %v3691 = vadd.f32 %v3690, 1.0
  %v3692 = vrcp.pop %v3691
  %v3693 = vmul.f32 1.0, %v3692
  %v3694 = vtanh.pop %v3685
  %v3695 = vmul.f32 %v3693, %v3272
  %3697 = vrot.lane.b32.xlu0 %v3694, 32
  %v3698 = vpop.permute.xlu0 %3697
  %v3700 = vmul.f32 %v3693, %v3698
  %3702 = vrot.lane.b32.xlu0 %v3700, 32
  %v3703 = vpop.permute.xlu0 %3702
  %v3705 = vadd.f32 %v3695, %v3703
  %v3706 = vtanh.pop %v3705
  %3708 = vrot.lane.b32.xlu0 %v3706, 32
  %v3709 = vpop.permute.xlu0 %3708
  %v3711 = vmul.f32 %v3693, %v3709
  %3713 = vrot.lane.b32.xlu0 %v3711, 64
  %v3714 = vpop.permute.xlu0 %3713
  %3716 = vrot.lane.b32.xlu0 %v3588, 32
  %v3717 = vpop.permute.xlu0 %3716
  %v3719 = vsel %vm255, %v3714, %v3717
  %v3720 = vld [vmem:[%s9] sm:$0xff]
  %v3721 = vld [vmem:[%s9 + $0x8] sm:$0xff]
  %v3722 = vld [vmem:[%s9 + $0x10] sm:$0xff]
  %v3723 = vld [vmem:[%s9 + $0x18] sm:$0xff]
  %v3724 = vld [vmem:[%s9 + $0x20] sm:$0xff]
  %v3725 = vld [vmem:[%s9 + $0x28] sm:$0xff]
  %v3726 = vld [vmem:[%s9 + $0x30] sm:$0xff]
  %v3727 = vld [vmem:[%s9 + $0x38] sm:$0xff]
  %v3728 = vld [vmem:[%s10] sm:$0x1]
  %v3730 = vlaneseq
  %v3731 = vshrl.u32 %v3730, 7
  %v3732 = vsub.s32 0, %v3731
  %v3733 = vrot.slane %v3728, %v3732
  %v3736 = vsel %vm1672, %v3719, 0
  %3738 = vmatprep.subr.mxu0 0.0
  %3739 = vmatpush1.msra.mxu0 %v3720
  %3740 = vmatprep.subr.mxu0 0.0
  %3741 = vmatpush1.msra.mxu0 %v3721
  %3742 = vmatprep.subr.mxu0 0.0
  %3743 = vmatpush1.msra.mxu0 %v3722
  %3744 = vmatprep.subr.mxu0 0.0
  %3745 = vmatpush1.msra.mxu0 %v3723
  %3746 = vmatprep.subr.mxu0 0.0
  %3747 = vmatpush1.msra.mxu0 %v3724
  %3748 = vmatprep.subr.mxu0 0.0
  %3749 = vmatpush1.msra.mxu0 %v3725
  %3750 = vmatprep.subr.mxu0 0.0
  %3751 = vmatpush1.msra.mxu0 %v3726
  %3752 = vmatprep.subr.mxu0 0.0
  %3753 = vmatpush1.msra.mxu0 %v3727
  %3754 = vmatprep.subr.mxu0 0.0
  %3755 = vmatpush1.msra.mxu0 0.0
  %3756 = vmatprep.subr.mxu0 0.0
  %3757 = vmatpush1.msra.mxu0 0.0
  %3758 = vmatprep.subr.mxu0 0.0
  %3759 = vmatpush1.msra.mxu0 0.0
  %3760 = vmatprep.subr.mxu0 0.0
  %3761 = vmatpush1.msra.mxu0 0.0
  %3762 = vmatprep.subr.mxu0 0.0
  %3763 = vmatpush1.msra.mxu0 0.0
  %3764 = vmatprep.subr.mxu0 0.0
  %3765 = vmatpush1.msra.mxu0 0.0
  %3766 = vmatprep.subr.mxu0 0.0
  %3767 = vmatpush1.msra.mxu0 0.0
  %3768 = vmatprep.subr.mxu0 0.0
  %3769 = vmatpush1.msra.mxu0 0.0
  %3770 = vmatprep.subr.mxu0 0.0
  %3771 = vmatpush1.msra.mxu0 0.0
  %3772 = vmatprep.subr.mxu0 0.0
  %3773 = vmatpush1.msra.mxu0 0.0
  %3774 = vmatprep.subr.mxu0 0.0
  %3775 = vmatpush1.msra.mxu0 0.0
  %3776 = vmatprep.subr.mxu0 0.0
  %3777 = vmatpush1.msra.mxu0 0.0
  %3778 = vmatprep.subr.mxu0 0.0
  %3779 = vmatpush1.msra.mxu0 0.0
  %3780 = vmatprep.subr.mxu0 0.0
  %3781 = vmatpush1.msra.mxu0 0.0
  %3782 = vmatprep.subr.mxu0 0.0
  %3783 = vmatpush1.msra.mxu0 0.0
  %3784 = vmatprep.subr.mxu0 0.0
  %3785 = vmatpush1.msra.mxu0 0.0
  %3786 = vmatprep.subr.mxu0 0.0
  %3787 = vmatpush1.msra.mxu0 0.0
  %3788 = vmatprep.subr.mxu0 0.0
  %3789 = vmatpush1.msra.mxu0 0.0
  %3790 = vmatprep.subr.mxu0 0.0
  %3791 = vmatpush1.msra.mxu0 0.0
  %3792 = vmatprep.subr.mxu0 0.0
  %3793 = vmatpush1.msra.mxu0 0.0
  %3794 = vmatprep.subr.mxu0 0.0
  %3795 = vmatpush1.msra.mxu0 0.0
  %3796 = vmatprep.subr.mxu0 0.0
  %3797 = vmatpush1.msra.mxu0 0.0
  %3798 = vmatprep.subr.mxu0 0.0
  %3799 = vmatpush1.msra.mxu0 0.0
  %3800 = vmatprep.subr.mxu0 0.0
  %3801 = vmatpush1.msra.mxu0 0.0
  %3802 = vmatprep.mubr.f32.mxu0 0.0
  %3803 = vmatmul.mubr.f32.gmra.mrb[0].mxu0 %v3736
  %v3804 = vpop.f32.mrb[0].mxu0
  %v3805 = vadd.f32 %v3733, %v3804
  %v3806 = vpop.f32.mrb[0].mxu0
  %3807 = vdwg.mxu0
  %s3808 = scalar_lea.vmem %s11, 40
  %3809 = vst.msk [vmem:[%s3808] sm:$0xff] %vm1672, %v3805
  %v3810 = vsel %vm1672, %v3805, -inf
  %3811 = vmax.xlane.f32.xlu0 %v3810
  %v3812 = vpop.xlane.xlu0 %3811
  %vm3813 = vcmp.ge.f32.partialorder %v3805, %v3812
  %v3814 = vsel %vm3813, %v43, 64
  %v3815 = vsel %vm1672, %v3814, 2147483647
  %v3816 = vand.u32 %v3815, 65535
  %v3817 = vshra.s32 %v3815, 16
  %v3818 = vcvt.s32.f32 %v3816
  %v3819 = vcvt.s32.f32 %v3817
  %3820 = vmin.xlane.f32.xlu0 %v3819
  %v3821 = vpop.xlane.xlu0 %3820
  %vm3822 = vcmp.eq.f32.partialorder %v3819, %v3821
  %v3823 = vsel %vm3822, %v3818, inf
  %3824 = vmin.xlane.f32.xlu0 %v3823
  %v3825 = vpop.xlane.xlu0 %3824
  %v3826 = vcvt.f32.s32 %v3825
  %v3827 = vcvt.f32.s32 %v3821
  %v3828 = vshll.u32 %v3827, 16
  %v3829 = vadd.s32 %v3828, %v3826
  %vm3830 = vcmp.eq.s32.totalorder %v43, %v3829
  %v3831 = vsel %vm3830, 1, 0
  %v3832 = vcvt.s32.f32 %v3831
  %s3833 = scalar_lea.vmem %s2, 40
  %v3834 = vld [vmem:[%s3833] sm:$0xff]
  %3835 = vset.pattern.permute.xlu0 0
  %3836 = vperm.xlu0 %3835, %v3834
  %v3837 = vpop.permute.xlu0 %3836
  %vm3838 = vcmp.eq.s32.totalorder %v43, %v3837
  %v3839 = vsel %vm3838, 1, 0
  %v3840 = vcvt.s32.f32 %v3839
  %s3841 = sld [smem:[#allocation4 + $0x4]]
  %p3842 = scmp.ne.s32.totalorder %s3841, 0
  %s3843 = scalar_select %p3842, 1, 0
  %v3844 = vstv %s3843
  %vm3845 = vcmp.eq.s32.totalorder %v3844, 1
  %v3846 = vsel %vm3845, %v3840, %v3832
  %v3848 = vsel %vm1672, %v3846, 0
  %3850 = vmatprep.subr.mxu0 0.0
  %3851 = vmatpush1.msra.mxu0 %v50
  %3852 = vmatprep.subr.mxu0 0.0
  %3853 = vmatpush1.msra.mxu0 %v51
  %3854 = vmatprep.subr.mxu0 0.0
  %3855 = vmatpush1.msra.mxu0 %v52
  %3856 = vmatprep.subr.mxu0 0.0
  %3857 = vmatpush1.msra.mxu0 %v53
  %3858 = vmatprep.subr.mxu0 0.0
  %3859 = vmatpush1.msra.mxu0 %v54
  %3860 = vmatprep.subr.mxu0 0.0
  %3861 = vmatpush1.msra.mxu0 %v55
  %3862 = vmatprep.subr.mxu0 0.0
  %3863 = vmatpush1.msra.mxu0 %v56
  %3864 = vmatprep.subr.mxu0 0.0
  %3865 = vmatpush1.msra.mxu0 %v57
  %3866 = vmatprep.subr.mxu0 0.0
  %3867 = vmatpush1.msra.mxu0 0.0
  %3868 = vmatprep.subr.mxu0 0.0
  %3869 = vmatpush1.msra.mxu0 0.0
  %3870 = vmatprep.subr.mxu0 0.0
  %3871 = vmatpush1.msra.mxu0 0.0
  %3872 = vmatprep.subr.mxu0 0.0
  %3873 = vmatpush1.msra.mxu0 0.0
  %3874 = vmatprep.subr.mxu0 0.0
  %3875 = vmatpush1.msra.mxu0 0.0
  %3876 = vmatprep.subr.mxu0 0.0
  %3877 = vmatpush1.msra.mxu0 0.0
  %3878 = vmatprep.subr.mxu0 0.0
  %3879 = vmatpush1.msra.mxu0 0.0
  %3880 = vmatprep.subr.mxu0 0.0
  %3881 = vmatpush1.msra.mxu0 0.0
  %3882 = vmatprep.subr.mxu0 0.0
  %3883 = vmatpush1.msra.mxu0 0.0
  %3884 = vmatprep.subr.mxu0 0.0
  %3885 = vmatpush1.msra.mxu0 0.0
  %3886 = vmatprep.subr.mxu0 0.0
  %3887 = vmatpush1.msra.mxu0 0.0
  %3888 = vmatprep.subr.mxu0 0.0
  %3889 = vmatpush1.msra.mxu0 0.0
  %3890 = vmatprep.subr.mxu0 0.0
  %3891 = vmatpush1.msra.mxu0 0.0
  %3892 = vmatprep.subr.mxu0 0.0
  %3893 = vmatpush1.msra.mxu0 0.0
  %3894 = vmatprep.subr.mxu0 0.0
  %3895 = vmatpush1.msra.mxu0 0.0
  %3896 = vmatprep.subr.mxu0 0.0
  %3897 = vmatpush1.msra.mxu0 0.0
  %3898 = vmatprep.subr.mxu0 0.0
  %3899 = vmatpush1.msra.mxu0 0.0
  %3900 = vmatprep.subr.mxu0 0.0
  %3901 = vmatpush1.msra.mxu0 0.0
  %3902 = vmatprep.subr.mxu0 0.0
  %3903 = vmatpush1.msra.mxu0 0.0
  %3904 = vmatprep.subr.mxu0 0.0
  %3905 = vmatpush1.msra.mxu0 0.0
  %3906 = vmatprep.subr.mxu0 0.0
  %3907 = vmatpush1.msra.mxu0 0.0
  %3908 = vmatprep.subr.mxu0 0.0
  %3909 = vmatpush1.msra.mxu0 0.0
  %3910 = vmatprep.subr.mxu0 0.0
  %3911 = vmatpush1.msra.mxu0 0.0
  %3912 = vmatprep.subr.mxu0 0.0
  %3913 = vmatpush1.msra.mxu0 0.0
  %3914 = vmatprep.mubr.f32.mxu0 0.0
  %3915 = vmatmul.mubr.f32.gmra.mrb[0].mxu0 %v3848
  %v3916 = vpop.f32.mrb[0].mxu0
  %v3917 = vadd.f32 0.0, %v3916
  %v3918 = vpop.f32.mrb[0].mxu0
  %3919 = vdwg.mxu0
  %v3920 = vmul.f32 %v1664, %v3714
  %v3921 = vmul.f32 %v1665, %v3714
  %v3922 = vmul.f32 %v1666, %v3714
  %v3923 = vmul.f32 %v1667, %v3714
  %v3924 = vmul.f32 %v1668, %v3714
  %v3925 = vmul.f32 %v1669, %v3714
  %v3926 = vmul.f32 %v1670, %v3714
  %v3927 = vmul.f32 %v1671, %v3714
  %v3928 = vsel %vm255, %v3920, 0.0
  %3929 = vadd.xlane.f32.xlu0 %v3928
  %v3930 = vpop.xlane.xlu0 %3929
  %v3931 = vsel %vm255, %v3921, 0.0
  %3932 = vadd.xlane.f32.xlu0 %v3931
  %v3933 = vpop.xlane.xlu0 %3932
  %v3934 = vsel %vm255, %v3922, 0.0
  %3935 = vadd.xlane.f32.xlu0 %v3934
  %v3936 = vpop.xlane.xlu0 %3935
  %v3937 = vsel %vm255, %v3923, 0.0
  %3938 = vadd.xlane.f32.xlu0 %v3937
  %v3939 = vpop.xlane.xlu0 %3938
  %v3940 = vsel %vm255, %v3924, 0.0
  %3941 = vadd.xlane.f32.xlu0 %v3940
  %v3942 = vpop.xlane.xlu0 %3941
  %v3943 = vsel %vm255, %v3925, 0.0
  %3944 = vadd.xlane.f32.xlu0 %v3943
  %v3945 = vpop.xlane.xlu0 %3944
  %v3946 = vsel %vm255, %v3926, 0.0
  %3947 = vadd.xlane.f32.xlu0 %v3946
  %v3948 = vpop.xlane.xlu0 %3947
  %v3949 = vsel %vm255, %v3927, 0.0
  %3950 = vadd.xlane.f32.xlu0 %v3949
  %v3951 = vpop.xlane.xlu0 %3950
  %v3952 = vmax.f32 %v3930, %v3942
  %v3953 = vmax.f32 %v3933, %v3945
  %v3954 = vmax.f32 %v3936, %v3948
  %v3955 = vmax.f32 %v3939, %v3951
  %v3956 = vmax.f32 %v3952, %v3953
  %v3957 = vmax.f32 %v3954, %v3955
  %v3958 = vmax.f32 %v3956, %v3957
  %v3959 = vsub.f32 %v3930, %v3958
  %v3960 = vsub.f32 %v3933, %v3958
  %v3961 = vsub.f32 %v3936, %v3958
  %v3962 = vsub.f32 %v3939, %v3958
  %v3963 = vsub.f32 %v3942, %v3958
  %v3964 = vsub.f32 %v3945, %v3958
  %v3965 = vsub.f32 %v3948, %v3958
  %v3966 = vsub.f32 %v3951, %v3958
  %v3967 = vmul.f32 %v3959, 1.442695
  %v3968 = vpow.pop %v3967
  %v3969 = vmul.f32 %v3960, 1.442695
  %v3970 = vpow.pop %v3969
  %v3971 = vmul.f32 %v3961, 1.442695
  %v3972 = vpow.pop %v3971
  %v3973 = vmul.f32 %v3962, 1.442695
  %v3974 = vpow.pop %v3973
  %v3975 = vmul.f32 %v3963, 1.442695
  %v3976 = vpow.pop %v3975
  %v3977 = vmul.f32 %v3964, 1.442695
  %v3978 = vpow.pop %v3977
  %v3979 = vmul.f32 %v3965, 1.442695
  %v3980 = vpow.pop %v3979
  %v3981 = vmul.f32 %v3966, 1.442695
  %v3982 = vpow.pop %v3981
  %v3983 = vadd.f32 %v3968, %v3970
  %v3984 = vadd.f32 %v3983, %v3972
  %v3985 = vadd.f32 %v3984, %v3974
  %v3986 = vadd.f32 %v3985, %v3976
  %v3987 = vadd.f32 %v3986, %v3978
  %v3988 = vadd.f32 %v3987, %v3980
  %v3989 = vadd.f32 %v3988, %v3982
  %v3990 = vrcp.pop %v3989
  %v3991 = vmul.f32 %v3968, %v3990
  %v3992 = vmul.f32 %v3970, %v3990
  %v3993 = vmul.f32 %v3972, %v3990
  %v3994 = vmul.f32 %v3974, %v3990
  %v3995 = vmul.f32 %v3976, %v3990
  %v3996 = vmul.f32 %v3978, %v3990
  %v3997 = vmul.f32 %v3980, %v3990
  %v3998 = vmul.f32 %v3982, %v3990
  %v3999 = vmul.f32 %v3991, %v1664
  %v4000 = vmul.f32 %v3992, %v1665
  %v4001 = vmul.f32 %v3993, %v1666
  %v4002 = vmul.f32 %v3994, %v1667
  %v4003 = vmul.f32 %v3995, %v1668
  %v4004 = vmul.f32 %v3996, %v1669
  %v4005 = vmul.f32 %v3997, %v1670
  %v4006 = vmul.f32 %v3998, %v1671
  %v4007 = vsel %vm255, %v3999, 0.0
  %v4008 = vsel %vm255, %v4000, 0.0
  %v4009 = vadd.f32 %v4007, %v4008
  %v4010 = vsel %vm255, %v4001, 0.0
  %v4011 = vadd.f32 %v4009, %v4010
  %v4012 = vsel %vm255, %v4002, 0.0
  %v4013 = vadd.f32 %v4011, %v4012
  %v4014 = vsel %vm255, %v4003, 0.0
  %v4015 = vadd.f32 %v4013, %v4014
  %v4016 = vsel %vm255, %v4004, 0.0
  %v4017 = vadd.f32 %v4015, %v4016
  %v4018 = vsel %vm255, %v4005, 0.0
  %v4019 = vadd.f32 %v4017, %v4018
  %v4020 = vsel %vm255, %v4006, 0.0
  %v4021 = vadd.f32 %v4019, %v4020
  %4023 = vrot.lane.b32.xlu0 %v4021, 16
  %v4024 = vpop.permute.xlu0 %4023
  %4026 = vrot.lane.b32.xlu0 %v3711, 112
  %v4027 = vpop.permute.xlu0 %4026
  %v4029 = vsel %vm139, %v3917, %v4024
  %v4030 = vsel %vm65, %v4029, %v4027
  %v4031 = vld [vmem:[%s7] sm:$0xff]
  %v4032 = vld [vmem:[%s7 + $0x8] sm:$0xff]
  %v4033 = vld [vmem:[%s7 + $0x10] sm:$0xff]
  %v4034 = vld [vmem:[%s7 + $0x18] sm:$0xff]
  %v4035 = vld [vmem:[%s7 + $0x20] sm:$0xff]
  %v4036 = vld [vmem:[%s7 + $0x28] sm:$0xff]
  %v4037 = vld [vmem:[%s7 + $0x30] sm:$0xff]
  %v4038 = vld [vmem:[%s7 + $0x38] sm:$0xff]
  %v4039 = vld [vmem:[%s7 + $0x40] sm:$0xff]
  %v4040 = vld [vmem:[%s7 + $0x48] sm:$0xff]
  %v4041 = vld [vmem:[%s8] sm:$0x1]
  %v4043 = vlaneseq
  %v4044 = vshrl.u32 %v4043, 7
  %v4045 = vsub.s32 0, %v4044
  %v4046 = vrot.slane %v4041, %v4045
  %v4049 = vsel %vm1882, %v4030, 0
  %4051 = vmatprep.subr.mxu0 0.0
  %4052 = vmatpush1.msra.mxu0 %v4031
  %4053 = vmatprep.subr.mxu0 0.0
  %4054 = vmatpush1.msra.mxu0 %v4032
  %4055 = vmatprep.subr.mxu0 0.0
  %4056 = vmatpush1.msra.mxu0 %v4033
  %4057 = vmatprep.subr.mxu0 0.0
  %4058 = vmatpush1.msra.mxu0 %v4034
  %4059 = vmatprep.subr.mxu0 0.0
  %4060 = vmatpush1.msra.mxu0 %v4035
  %4061 = vmatprep.subr.mxu0 0.0
  %4062 = vmatpush1.msra.mxu0 %v4036
  %4063 = vmatprep.subr.mxu0 0.0
  %4064 = vmatpush1.msra.mxu0 %v4037
  %4065 = vmatprep.subr.mxu0 0.0
  %4066 = vmatpush1.msra.mxu0 %v4038
  %4067 = vmatprep.subr.mxu0 0.0
  %4068 = vmatpush1.msra.mxu0 %v4039
  %4069 = vmatprep.subr.mxu0 0.0
  %4070 = vmatpush1.msra.mxu0 %v4040
  %4071 = vmatprep.subr.mxu0 0.0
  %4072 = vmatpush1.msra.mxu0 0.0
  %4073 = vmatprep.subr.mxu0 0.0
  %4074 = vmatpush1.msra.mxu0 0.0
  %4075 = vmatprep.subr.mxu0 0.0
  %4076 = vmatpush1.msra.mxu0 0.0
  %4077 = vmatprep.subr.mxu0 0.0
  %4078 = vmatpush1.msra.mxu0 0.0
  %4079 = vmatprep.subr.mxu0 0.0
  %4080 = vmatpush1.msra.mxu0 0.0
  %4081 = vmatprep.subr.mxu0 0.0
  %4082 = vmatpush1.msra.mxu0 0.0
  %4083 = vmatprep.subr.mxu0 0.0
  %4084 = vmatpush1.msra.mxu0 0.0
  %4085 = vmatprep.subr.mxu0 0.0
  %4086 = vmatpush1.msra.mxu0 0.0
  %4087 = vmatprep.subr.mxu0 0.0
  %4088 = vmatpush1.msra.mxu0 0.0
  %4089 = vmatprep.subr.mxu0 0.0
  %4090 = vmatpush1.msra.mxu0 0.0
  %4091 = vmatprep.subr.mxu0 0.0
  %4092 = vmatpush1.msra.mxu0 0.0
  %4093 = vmatprep.subr.mxu0 0.0
  %4094 = vmatpush1.msra.mxu0 0.0
  %4095 = vmatprep.subr.mxu0 0.0
  %4096 = vmatpush1.msra.mxu0 0.0
  %4097 = vmatprep.subr.mxu0 0.0
  %4098 = vmatpush1.msra.mxu0 0.0
  %4099 = vmatprep.subr.mxu0 0.0
  %4100 = vmatpush1.msra.mxu0 0.0
  %4101 = vmatprep.subr.mxu0 0.0
  %4102 = vmatpush1.msra.mxu0 0.0
  %4103 = vmatprep.subr.mxu0 0.0
  %4104 = vmatpush1.msra.mxu0 0.0
  %4105 = vmatprep.subr.mxu0 0.0
  %4106 = vmatpush1.msra.mxu0 0.0
  %4107 = vmatprep.subr.mxu0 0.0
  %4108 = vmatpush1.msra.mxu0 0.0
  %4109 = vmatprep.subr.mxu0 0.0
  %4110 = vmatpush1.msra.mxu0 0.0
  %4111 = vmatprep.subr.mxu0 0.0
  %4112 = vmatpush1.msra.mxu0 0.0
  %4113 = vmatprep.subr.mxu0 0.0
  %4114 = vmatpush1.msra.mxu0 0.0
  %4115 = vmatprep.mubr.f32.mxu0 0.0
  %4116 = vmatmul.mubr.f32.gmra.mrb[0].mxu0 %v4049
  %v4117 = vpop.f32.mrb[0].mxu0
  %v4118 = vadd.f32 %v4046, %v4117
  %v4119 = vpop.f32.mrb[0].mxu0
  %4120 = vdwg.mxu0
  %v4121 = vxor.u32 %v4118, 2147483648
  %v4122 = vmul.f32 %v4121, 1.442695
  %v4123 = vpow.pop %v4122
  %v4124 = vadd.f32 %v4123, 1.0
  %v4125 = vrcp.pop %v4124
  %v4126 = vmul.f32 1.0, %v4125
  %v4127 = vtanh.pop %v4118
  %v4128 = vmul.f32 %v4126, %v3705
  %4130 = vrot.lane.b32.xlu0 %v4127, 32
  %v4131 = vpop.permute.xlu0 %4130
  %v4133 = vmul.f32 %v4126, %v4131
  %4135 = vrot.lane.b32.xlu0 %v4133, 32
  %v4136 = vpop.permute.xlu0 %4135
  %v4138 = vadd.f32 %v4128, %v4136
  %v4139 = vtanh.pop %v4138
  %4141 = vrot.lane.b32.xlu0 %v4139, 32
  %v4142 = vpop.permute.xlu0 %4141
  %v4144 = vmul.f32 %v4126, %v4142
  %4146 = vrot.lane.b32.xlu0 %v4144, 64
  %v4147 = vpop.permute.xlu0 %4146
  %4149 = vrot.lane.b32.xlu0 %v4021, 32
  %v4150 = vpop.permute.xlu0 %4149
  %v4152 = vsel %vm255, %v4147, %v4150
  %v4153 = vld [vmem:[%s9] sm:$0xff]
  %v4154 = vld [vmem:[%s9 + $0x8] sm:$0xff]
  %v4155 = vld [vmem:[%s9 + $0x10] sm:$0xff]
  %v4156 = vld [vmem:[%s9 + $0x18] sm:$0xff]
  %v4157 = vld [vmem:[%s9 + $0x20] sm:$0xff]
  %v4158 = vld [vmem:[%s9 + $0x28] sm:$0xff]
  %v4159 = vld [vmem:[%s9 + $0x30] sm:$0xff]
  %v4160 = vld [vmem:[%s9 + $0x38] sm:$0xff]
  %v4161 = vld [vmem:[%s10] sm:$0x1]
  %v4163 = vlaneseq
  %v4164 = vshrl.u32 %v4163, 7
  %v4165 = vsub.s32 0, %v4164
  %v4166 = vrot.slane %v4161, %v4165
  %v4169 = vsel %vm1672, %v4152, 0
  %4171 = vmatprep.subr.mxu0 0.0
  %4172 = vmatpush1.msra.mxu0 %v4153
  %4173 = vmatprep.subr.mxu0 0.0
  %4174 = vmatpush1.msra.mxu0 %v4154
  %4175 = vmatprep.subr.mxu0 0.0
  %4176 = vmatpush1.msra.mxu0 %v4155
  %4177 = vmatprep.subr.mxu0 0.0
  %4178 = vmatpush1.msra.mxu0 %v4156
  %4179 = vmatprep.subr.mxu0 0.0
  %4180 = vmatpush1.msra.mxu0 %v4157
  %4181 = vmatprep.subr.mxu0 0.0
  %4182 = vmatpush1.msra.mxu0 %v4158
  %4183 = vmatprep.subr.mxu0 0.0
  %4184 = vmatpush1.msra.mxu0 %v4159
  %4185 = vmatprep.subr.mxu0 0.0
  %4186 = vmatpush1.msra.mxu0 %v4160
  %4187 = vmatprep.subr.mxu0 0.0
  %4188 = vmatpush1.msra.mxu0 0.0
  %4189 = vmatprep.subr.mxu0 0.0
  %4190 = vmatpush1.msra.mxu0 0.0
  %4191 = vmatprep.subr.mxu0 0.0
  %4192 = vmatpush1.msra.mxu0 0.0
  %4193 = vmatprep.subr.mxu0 0.0
  %4194 = vmatpush1.msra.mxu0 0.0
  %4195 = vmatprep.subr.mxu0 0.0
  %4196 = vmatpush1.msra.mxu0 0.0
  %4197 = vmatprep.subr.mxu0 0.0
  %4198 = vmatpush1.msra.mxu0 0.0
  %4199 = vmatprep.subr.mxu0 0.0
  %4200 = vmatpush1.msra.mxu0 0.0
  %4201 = vmatprep.subr.mxu0 0.0
  %4202 = vmatpush1.msra.mxu0 0.0
  %4203 = vmatprep.subr.mxu0 0.0
  %4204 = vmatpush1.msra.mxu0 0.0
  %4205 = vmatprep.subr.mxu0 0.0
  %4206 = vmatpush1.msra.mxu0 0.0
  %4207 = vmatprep.subr.mxu0 0.0
  %4208 = vmatpush1.msra.mxu0 0.0
  %4209 = vmatprep.subr.mxu0 0.0
  %4210 = vmatpush1.msra.mxu0 0.0
  %4211 = vmatprep.subr.mxu0 0.0
  %4212 = vmatpush1.msra.mxu0 0.0
  %4213 = vmatprep.subr.mxu0 0.0
  %4214 = vmatpush1.msra.mxu0 0.0
  %4215 = vmatprep.subr.mxu0 0.0
  %4216 = vmatpush1.msra.mxu0 0.0
  %4217 = vmatprep.subr.mxu0 0.0
  %4218 = vmatpush1.msra.mxu0 0.0
  %4219 = vmatprep.subr.mxu0 0.0
  %4220 = vmatpush1.msra.mxu0 0.0
  %4221 = vmatprep.subr.mxu0 0.0
  %4222 = vmatpush1.msra.mxu0 0.0
  %4223 = vmatprep.subr.mxu0 0.0
  %4224 = vmatpush1.msra.mxu0 0.0
  %4225 = vmatprep.subr.mxu0 0.0
  %4226 = vmatpush1.msra.mxu0 0.0
  %4227 = vmatprep.subr.mxu0 0.0
  %4228 = vmatpush1.msra.mxu0 0.0
  %4229 = vmatprep.subr.mxu0 0.0
  %4230 = vmatpush1.msra.mxu0 0.0
  %4231 = vmatprep.subr.mxu0 0.0
  %4232 = vmatpush1.msra.mxu0 0.0
  %4233 = vmatprep.subr.mxu0 0.0
  %4234 = vmatpush1.msra.mxu0 0.0
  %4235 = vmatprep.mubr.f32.mxu0 0.0
  %4236 = vmatmul.mubr.f32.gmra.mrb[0].mxu0 %v4169
  %v4237 = vpop.f32.mrb[0].mxu0
  %v4238 = vadd.f32 %v4166, %v4237
  %v4239 = vpop.f32.mrb[0].mxu0
  %4240 = vdwg.mxu0
  %s4241 = scalar_lea.vmem %s11, 48
  %4242 = vst.msk [vmem:[%s4241] sm:$0xff] %vm1672, %v4238
  %v4243 = vsel %vm1672, %v4238, -inf
  %4244 = vmax.xlane.f32.xlu0 %v4243
  %v4245 = vpop.xlane.xlu0 %4244
  %vm4246 = vcmp.ge.f32.partialorder %v4238, %v4245
  %v4247 = vsel %vm4246, %v43, 64
  %v4248 = vsel %vm1672, %v4247, 2147483647
  %v4249 = vand.u32 %v4248, 65535
  %v4250 = vshra.s32 %v4248, 16
  %v4251 = vcvt.s32.f32 %v4249
  %v4252 = vcvt.s32.f32 %v4250
  %4253 = vmin.xlane.f32.xlu0 %v4252
  %v4254 = vpop.xlane.xlu0 %4253
  %vm4255 = vcmp.eq.f32.partialorder %v4252, %v4254
  %v4256 = vsel %vm4255, %v4251, inf
  %4257 = vmin.xlane.f32.xlu0 %v4256
  %v4258 = vpop.xlane.xlu0 %4257
  %v4259 = vcvt.f32.s32 %v4258
  %v4260 = vcvt.f32.s32 %v4254
  %v4261 = vshll.u32 %v4260, 16
  %v4262 = vadd.s32 %v4261, %v4259
  %vm4263 = vcmp.eq.s32.totalorder %v43, %v4262
  %v4264 = vsel %vm4263, 1, 0
  %v4265 = vcvt.s32.f32 %v4264
  %s4266 = scalar_lea.vmem %s2, 48
  %v4267 = vld [vmem:[%s4266] sm:$0xff]
  %4268 = vset.pattern.permute.xlu0 0
  %4269 = vperm.xlu0 %4268, %v4267
  %v4270 = vpop.permute.xlu0 %4269
  %vm4271 = vcmp.eq.s32.totalorder %v43, %v4270
  %v4272 = vsel %vm4271, 1, 0
  %v4273 = vcvt.s32.f32 %v4272
  %s4274 = sld [smem:[#allocation4 + $0x5]]
  %p4275 = scmp.ne.s32.totalorder %s4274, 0
  %s4276 = scalar_select %p4275, 1, 0
  %v4277 = vstv %s4276
  %vm4278 = vcmp.eq.s32.totalorder %v4277, 1
  %v4279 = vsel %vm4278, %v4273, %v4265
  %v4281 = vsel %vm1672, %v4279, 0
  %4283 = vmatprep.subr.mxu0 0.0
  %4284 = vmatpush1.msra.mxu0 %v50
  %4285 = vmatprep.subr.mxu0 0.0
  %4286 = vmatpush1.msra.mxu0 %v51
  %4287 = vmatprep.subr.mxu0 0.0
  %4288 = vmatpush1.msra.mxu0 %v52
  %4289 = vmatprep.subr.mxu0 0.0
  %4290 = vmatpush1.msra.mxu0 %v53
  %4291 = vmatprep.subr.mxu0 0.0
  %4292 = vmatpush1.msra.mxu0 %v54
  %4293 = vmatprep.subr.mxu0 0.0
  %4294 = vmatpush1.msra.mxu0 %v55
  %4295 = vmatprep.subr.mxu0 0.0
  %4296 = vmatpush1.msra.mxu0 %v56
  %4297 = vmatprep.subr.mxu0 0.0
  %4298 = vmatpush1.msra.mxu0 %v57
  %4299 = vmatprep.subr.mxu0 0.0
  %4300 = vmatpush1.msra.mxu0 0.0
  %4301 = vmatprep.subr.mxu0 0.0
  %4302 = vmatpush1.msra.mxu0 0.0
  %4303 = vmatprep.subr.mxu0 0.0
  %4304 = vmatpush1.msra.mxu0 0.0
  %4305 = vmatprep.subr.mxu0 0.0
  %4306 = vmatpush1.msra.mxu0 0.0
  %4307 = vmatprep.subr.mxu0 0.0
  %4308 = vmatpush1.msra.mxu0 0.0
  %4309 = vmatprep.subr.mxu0 0.0
  %4310 = vmatpush1.msra.mxu0 0.0
  %4311 = vmatprep.subr.mxu0 0.0
  %4312 = vmatpush1.msra.mxu0 0.0
  %4313 = vmatprep.subr.mxu0 0.0
  %4314 = vmatpush1.msra.mxu0 0.0
  %4315 = vmatprep.subr.mxu0 0.0
  %4316 = vmatpush1.msra.mxu0 0.0
  %4317 = vmatprep.subr.mxu0 0.0
  %4318 = vmatpush1.msra.mxu0 0.0
  %4319 = vmatprep.subr.mxu0 0.0
  %4320 = vmatpush1.msra.mxu0 0.0
  %4321 = vmatprep.subr.mxu0 0.0
  %4322 = vmatpush1.msra.mxu0 0.0
  %4323 = vmatprep.subr.mxu0 0.0
  %4324 = vmatpush1.msra.mxu0 0.0
  %4325 = vmatprep.subr.mxu0 0.0
  %4326 = vmatpush1.msra.mxu0 0.0
  %4327 = vmatprep.subr.mxu0 0.0
  %4328 = vmatpush1.msra.mxu0 0.0
  %4329 = vmatprep.subr.mxu0 0.0
  %4330 = vmatpush1.msra.mxu0 0.0
  %4331 = vmatprep.subr.mxu0 0.0
  %4332 = vmatpush1.msra.mxu0 0.0
  %4333 = vmatprep.subr.mxu0 0.0
  %4334 = vmatpush1.msra.mxu0 0.0
  %4335 = vmatprep.subr.mxu0 0.0
  %4336 = vmatpush1.msra.mxu0 0.0
  %4337 = vmatprep.subr.mxu0 0.0
  %4338 = vmatpush1.msra.mxu0 0.0
  %4339 = vmatprep.subr.mxu0 0.0
  %4340 = vmatpush1.msra.mxu0 0.0
  %4341 = vmatprep.subr.mxu0 0.0
  %4342 = vmatpush1.msra.mxu0 0.0
  %4343 = vmatprep.subr.mxu0 0.0
  %4344 = vmatpush1.msra.mxu0 0.0
  %4345 = vmatprep.subr.mxu0 0.0
  %4346 = vmatpush1.msra.mxu0 0.0
  %4347 = vmatprep.mubr.f32.mxu0 0.0
  %4348 = vmatmul.mubr.f32.gmra.mrb[0].mxu0 %v4281
  %v4349 = vpop.f32.mrb[0].mxu0
  %v4350 = vadd.f32 0.0, %v4349
  %v4351 = vpop.f32.mrb[0].mxu0
  %4352 = vdwg.mxu0
  %v4353 = vmul.f32 %v1664, %v4147
  %v4354 = vmul.f32 %v1665, %v4147
  %v4355 = vmul.f32 %v1666, %v4147
  %v4356 = vmul.f32 %v1667, %v4147
  %v4357 = vmul.f32 %v1668, %v4147
  %v4358 = vmul.f32 %v1669, %v4147
  %v4359 = vmul.f32 %v1670, %v4147
  %v4360 = vmul.f32 %v1671, %v4147
  %v4361 = vsel %vm255, %v4353, 0.0
  %4362 = vadd.xlane.f32.xlu0 %v4361
  %v4363 = vpop.xlane.xlu0 %4362
  %v4364 = vsel %vm255, %v4354, 0.0
  %4365 = vadd.xlane.f32.xlu0 %v4364
  %v4366 = vpop.xlane.xlu0 %4365
  %v4367 = vsel %vm255, %v4355, 0.0
  %4368 = vadd.xlane.f32.xlu0 %v4367
  %v4369 = vpop.xlane.xlu0 %4368
  %v4370 = vsel %vm255, %v4356, 0.0
  %4371 = vadd.xlane.f32.xlu0 %v4370
  %v4372 = vpop.xlane.xlu0 %4371
  %v4373 = vsel %vm255, %v4357, 0.0
  %4374 = vadd.xlane.f32.xlu0 %v4373
  %v4375 = vpop.xlane.xlu0 %4374
  %v4376 = vsel %vm255, %v4358, 0.0
  %4377 = vadd.xlane.f32.xlu0 %v4376
  %v4378 = vpop.xlane.xlu0 %4377
  %v4379 = vsel %vm255, %v4359, 0.0
  %4380 = vadd.xlane.f32.xlu0 %v4379
  %v4381 = vpop.xlane.xlu0 %4380
  %v4382 = vsel %vm255, %v4360, 0.0
  %4383 = vadd.xlane.f32.xlu0 %v4382
  %v4384 = vpop.xlane.xlu0 %4383
  %v4385 = vmax.f32 %v4363, %v4375
  %v4386 = vmax.f32 %v4366, %v4378
  %v4387 = vmax.f32 %v4369, %v4381
  %v4388 = vmax.f32 %v4372, %v4384
  %v4389 = vmax.f32 %v4385, %v4386
  %v4390 = vmax.f32 %v4387, %v4388
  %v4391 = vmax.f32 %v4389, %v4390
  %v4392 = vsub.f32 %v4363, %v4391
  %v4393 = vsub.f32 %v4366, %v4391
  %v4394 = vsub.f32 %v4369, %v4391
  %v4395 = vsub.f32 %v4372, %v4391
  %v4396 = vsub.f32 %v4375, %v4391
  %v4397 = vsub.f32 %v4378, %v4391
  %v4398 = vsub.f32 %v4381, %v4391
  %v4399 = vsub.f32 %v4384, %v4391
  %v4400 = vmul.f32 %v4392, 1.442695
  %v4401 = vpow.pop %v4400
  %v4402 = vmul.f32 %v4393, 1.442695
  %v4403 = vpow.pop %v4402
  %v4404 = vmul.f32 %v4394, 1.442695
  %v4405 = vpow.pop %v4404
  %v4406 = vmul.f32 %v4395, 1.442695
  %v4407 = vpow.pop %v4406
  %v4408 = vmul.f32 %v4396, 1.442695
  %v4409 = vpow.pop %v4408
  %v4410 = vmul.f32 %v4397, 1.442695
  %v4411 = vpow.pop %v4410
  %v4412 = vmul.f32 %v4398, 1.442695
  %v4413 = vpow.pop %v4412
  %v4414 = vmul.f32 %v4399, 1.442695
  %v4415 = vpow.pop %v4414
  %v4416 = vadd.f32 %v4401, %v4403
  %v4417 = vadd.f32 %v4416, %v4405
  %v4418 = vadd.f32 %v4417, %v4407
  %v4419 = vadd.f32 %v4418, %v4409
  %v4420 = vadd.f32 %v4419, %v4411
  %v4421 = vadd.f32 %v4420, %v4413
  %v4422 = vadd.f32 %v4421, %v4415
  %v4423 = vrcp.pop %v4422
  %v4424 = vmul.f32 %v4401, %v4423
  %v4425 = vmul.f32 %v4403, %v4423
  %v4426 = vmul.f32 %v4405, %v4423
  %v4427 = vmul.f32 %v4407, %v4423
  %v4428 = vmul.f32 %v4409, %v4423
  %v4429 = vmul.f32 %v4411, %v4423
  %v4430 = vmul.f32 %v4413, %v4423
  %v4431 = vmul.f32 %v4415, %v4423
  %v4432 = vmul.f32 %v4424, %v1664
  %v4433 = vmul.f32 %v4425, %v1665
  %v4434 = vmul.f32 %v4426, %v1666
  %v4435 = vmul.f32 %v4427, %v1667
  %v4436 = vmul.f32 %v4428, %v1668
  %v4437 = vmul.f32 %v4429, %v1669
  %v4438 = vmul.f32 %v4430, %v1670
  %v4439 = vmul.f32 %v4431, %v1671
  %v4440 = vsel %vm255, %v4432, 0.0
  %v4441 = vsel %vm255, %v4433, 0.0
  %v4442 = vadd.f32 %v4440, %v4441
  %v4443 = vsel %vm255, %v4434, 0.0
  %v4444 = vadd.f32 %v4442, %v4443
  %v4445 = vsel %vm255, %v4435, 0.0
  %v4446 = vadd.f32 %v4444, %v4445
  %v4447 = vsel %vm255, %v4436, 0.0
  %v4448 = vadd.f32 %v4446, %v4447
  %v4449 = vsel %vm255, %v4437, 0.0
  %v4450 = vadd.f32 %v4448, %v4449
  %v4451 = vsel %vm255, %v4438, 0.0
  %v4452 = vadd.f32 %v4450, %v4451
  %v4453 = vsel %vm255, %v4439, 0.0
  %v4454 = vadd.f32 %v4452, %v4453
  %4456 = vrot.lane.b32.xlu0 %v4454, 16
  %v4457 = vpop.permute.xlu0 %4456
  %4459 = vrot.lane.b32.xlu0 %v4144, 112
  %v4460 = vpop.permute.xlu0 %4459
  %v4462 = vsel %vm139, %v4350, %v4457
  %v4463 = vsel %vm65, %v4462, %v4460
  %v4464 = vld [vmem:[%s7] sm:$0xff]
  %v4465 = vld [vmem:[%s7 + $0x8] sm:$0xff]
  %v4466 = vld [vmem:[%s7 + $0x10] sm:$0xff]
  %v4467 = vld [vmem:[%s7 + $0x18] sm:$0xff]
  %v4468 = vld [vmem:[%s7 + $0x20] sm:$0xff]
  %v4469 = vld [vmem:[%s7 + $0x28] sm:$0xff]
  %v4470 = vld [vmem:[%s7 + $0x30] sm:$0xff]
  %v4471 = vld [vmem:[%s7 + $0x38] sm:$0xff]
  %v4472 = vld [vmem:[%s7 + $0x40] sm:$0xff]
  %v4473 = vld [vmem:[%s7 + $0x48] sm:$0xff]
  %v4474 = vld [vmem:[%s8] sm:$0x1]
  %v4476 = vlaneseq
  %v4477 = vshrl.u32 %v4476, 7
  %v4478 = vsub.s32 0, %v4477
  %v4479 = vrot.slane %v4474, %v4478
  %v4482 = vsel %vm1882, %v4463, 0
  %4484 = vmatprep.subr.mxu0 0.0
  %4485 = vmatpush1.msra.mxu0 %v4464
  %4486 = vmatprep.subr.mxu0 0.0
  %4487 = vmatpush1.msra.mxu0 %v4465
  %4488 = vmatprep.subr.mxu0 0.0
  %4489 = vmatpush1.msra.mxu0 %v4466
  %4490 = vmatprep.subr.mxu0 0.0
  %4491 = vmatpush1.msra.mxu0 %v4467
  %4492 = vmatprep.subr.mxu0 0.0
  %4493 = vmatpush1.msra.mxu0 %v4468
  %4494 = vmatprep.subr.mxu0 0.0
  %4495 = vmatpush1.msra.mxu0 %v4469
  %4496 = vmatprep.subr.mxu0 0.0
  %4497 = vmatpush1.msra.mxu0 %v4470
  %4498 = vmatprep.subr.mxu0 0.0
  %4499 = vmatpush1.msra.mxu0 %v4471
  %4500 = vmatprep.subr.mxu0 0.0
  %4501 = vmatpush1.msra.mxu0 %v4472
  %4502 = vmatprep.subr.mxu0 0.0
  %4503 = vmatpush1.msra.mxu0 %v4473
  %4504 = vmatprep.subr.mxu0 0.0
  %4505 = vmatpush1.msra.mxu0 0.0
  %4506 = vmatprep.subr.mxu0 0.0
  %4507 = vmatpush1.msra.mxu0 0.0
  %4508 = vmatprep.subr.mxu0 0.0
  %4509 = vmatpush1.msra.mxu0 0.0
  %4510 = vmatprep.subr.mxu0 0.0
  %4511 = vmatpush1.msra.mxu0 0.0
  %4512 = vmatprep.subr.mxu0 0.0
  %4513 = vmatpush1.msra.mxu0 0.0
  %4514 = vmatprep.subr.mxu0 0.0
  %4515 = vmatpush1.msra.mxu0 0.0
  %4516 = vmatprep.subr.mxu0 0.0
  %4517 = vmatpush1.msra.mxu0 0.0
  %4518 = vmatprep.subr.mxu0 0.0
  %4519 = vmatpush1.msra.mxu0 0.0
  %4520 = vmatprep.subr.mxu0 0.0
  %4521 = vmatpush1.msra.mxu0 0.0
  %4522 = vmatprep.subr.mxu0 0.0
  %4523 = vmatpush1.msra.mxu0 0.0
  %4524 = vmatprep.subr.mxu0 0.0
  %4525 = vmatpush1.msra.mxu0 0.0
  %4526 = vmatprep.subr.mxu0 0.0
  %4527 = vmatpush1.msra.mxu0 0.0
  %4528 = vmatprep.subr.mxu0 0.0
  %4529 = vmatpush1.msra.mxu0 0.0
  %4530 = vmatprep.subr.mxu0 0.0
  %4531 = vmatpush1.msra.mxu0 0.0
  %4532 = vmatprep.subr.mxu0 0.0
  %4533 = vmatpush1.msra.mxu0 0.0
  %4534 = vmatprep.subr.mxu0 0.0
  %4535 = vmatpush1.msra.mxu0 0.0
  %4536 = vmatprep.subr.mxu0 0.0
  %4537 = vmatpush1.msra.mxu0 0.0
  %4538 = vmatprep.subr.mxu0 0.0
  %4539 = vmatpush1.msra.mxu0 0.0
  %4540 = vmatprep.subr.mxu0 0.0
  %4541 = vmatpush1.msra.mxu0 0.0
  %4542 = vmatprep.subr.mxu0 0.0
  %4543 = vmatpush1.msra.mxu0 0.0
  %4544 = vmatprep.subr.mxu0 0.0
  %4545 = vmatpush1.msra.mxu0 0.0
  %4546 = vmatprep.subr.mxu0 0.0
  %4547 = vmatpush1.msra.mxu0 0.0
  %4548 = vmatprep.mubr.f32.mxu0 0.0
  %4549 = vmatmul.mubr.f32.gmra.mrb[0].mxu0 %v4482
  %v4550 = vpop.f32.mrb[0].mxu0
  %v4551 = vadd.f32 %v4479, %v4550
  %v4552 = vpop.f32.mrb[0].mxu0
  %4553 = vdwg.mxu0
  %v4554 = vxor.u32 %v4551, 2147483648
  %v4555 = vmul.f32 %v4554, 1.442695
  %v4556 = vpow.pop %v4555
  %v4557 = vadd.f32 %v4556, 1.0
  %v4558 = vrcp.pop %v4557
  %v4559 = vmul.f32 1.0, %v4558
  %v4560 = vtanh.pop %v4551
  %v4561 = vmul.f32 %v4559, %v4138
  %4563 = vrot.lane.b32.xlu0 %v4560, 32
  %v4564 = vpop.permute.xlu0 %4563
  %v4566 = vmul.f32 %v4559, %v4564
  %4568 = vrot.lane.b32.xlu0 %v4566, 32
  %v4569 = vpop.permute.xlu0 %4568
  %v4571 = vadd.f32 %v4561, %v4569
  %v4572 = vtanh.pop %v4571
  %4574 = vrot.lane.b32.xlu0 %v4572, 32
  %v4575 = vpop.permute.xlu0 %4574
  %v4577 = vmul.f32 %v4559, %v4575
  %4579 = vrot.lane.b32.xlu0 %v4577, 64
  %v4580 = vpop.permute.xlu0 %4579
  %4582 = vrot.lane.b32.xlu0 %v4454, 32
  %v4583 = vpop.permute.xlu0 %4582
  %v4585 = vsel %vm255, %v4580, %v4583
  %v4586 = vld [vmem:[%s9] sm:$0xff]
  %v4587 = vld [vmem:[%s9 + $0x8] sm:$0xff]
  %v4588 = vld [vmem:[%s9 + $0x10] sm:$0xff]
  %v4589 = vld [vmem:[%s9 + $0x18] sm:$0xff]
  %v4590 = vld [vmem:[%s9 + $0x20] sm:$0xff]
  %v4591 = vld [vmem:[%s9 + $0x28] sm:$0xff]
  %v4592 = vld [vmem:[%s9 + $0x30] sm:$0xff]
  %v4593 = vld [vmem:[%s9 + $0x38] sm:$0xff]
  %v4594 = vld [vmem:[%s10] sm:$0x1]
  %v4596 = vlaneseq
  %v4597 = vshrl.u32 %v4596, 7
  %v4598 = vsub.s32 0, %v4597
  %v4599 = vrot.slane %v4594, %v4598
  %v4602 = vsel %vm1672, %v4585, 0
  %4604 = vmatprep.subr.mxu0 0.0
  %4605 = vmatpush1.msra.mxu0 %v4586
  %4606 = vmatprep.subr.mxu0 0.0
  %4607 = vmatpush1.msra.mxu0 %v4587
  %4608 = vmatprep.subr.mxu0 0.0
  %4609 = vmatpush1.msra.mxu0 %v4588
  %4610 = vmatprep.subr.mxu0 0.0
  %4611 = vmatpush1.msra.mxu0 %v4589
  %4612 = vmatprep.subr.mxu0 0.0
  %4613 = vmatpush1.msra.mxu0 %v4590
  %4614 = vmatprep.subr.mxu0 0.0
  %4615 = vmatpush1.msra.mxu0 %v4591
  %4616 = vmatprep.subr.mxu0 0.0
  %4617 = vmatpush1.msra.mxu0 %v4592
  %4618 = vmatprep.subr.mxu0 0.0
  %4619 = vmatpush1.msra.mxu0 %v4593
  %4620 = vmatprep.subr.mxu0 0.0
  %4621 = vmatpush1.msra.mxu0 0.0
  %4622 = vmatprep.subr.mxu0 0.0
  %4623 = vmatpush1.msra.mxu0 0.0
  %4624 = vmatprep.subr.mxu0 0.0
  %4625 = vmatpush1.msra.mxu0 0.0
  %4626 = vmatprep.subr.mxu0 0.0
  %4627 = vmatpush1.msra.mxu0 0.0
  %4628 = vmatprep.subr.mxu0 0.0
  %4629 = vmatpush1.msra.mxu0 0.0
  %4630 = vmatprep.subr.mxu0 0.0
  %4631 = vmatpush1.msra.mxu0 0.0
  %4632 = vmatprep.subr.mxu0 0.0
  %4633 = vmatpush1.msra.mxu0 0.0
  %4634 = vmatprep.subr.mxu0 0.0
  %4635 = vmatpush1.msra.mxu0 0.0
  %4636 = vmatprep.subr.mxu0 0.0
  %4637 = vmatpush1.msra.mxu0 0.0
  %4638 = vmatprep.subr.mxu0 0.0
  %4639 = vmatpush1.msra.mxu0 0.0
  %4640 = vmatprep.subr.mxu0 0.0
  %4641 = vmatpush1.msra.mxu0 0.0
  %4642 = vmatprep.subr.mxu0 0.0
  %4643 = vmatpush1.msra.mxu0 0.0
  %4644 = vmatprep.subr.mxu0 0.0
  %4645 = vmatpush1.msra.mxu0 0.0
  %4646 = vmatprep.subr.mxu0 0.0
  %4647 = vmatpush1.msra.mxu0 0.0
  %4648 = vmatprep.subr.mxu0 0.0
  %4649 = vmatpush1.msra.mxu0 0.0
  %4650 = vmatprep.subr.mxu0 0.0
  %4651 = vmatpush1.msra.mxu0 0.0
  %4652 = vmatprep.subr.mxu0 0.0
  %4653 = vmatpush1.msra.mxu0 0.0
  %4654 = vmatprep.subr.mxu0 0.0
  %4655 = vmatpush1.msra.mxu0 0.0
  %4656 = vmatprep.subr.mxu0 0.0
  %4657 = vmatpush1.msra.mxu0 0.0
  %4658 = vmatprep.subr.mxu0 0.0
  %4659 = vmatpush1.msra.mxu0 0.0
  %4660 = vmatprep.subr.mxu0 0.0
  %4661 = vmatpush1.msra.mxu0 0.0
  %4662 = vmatprep.subr.mxu0 0.0
  %4663 = vmatpush1.msra.mxu0 0.0
  %4664 = vmatprep.subr.mxu0 0.0
  %4665 = vmatpush1.msra.mxu0 0.0
  %4666 = vmatprep.subr.mxu0 0.0
  %4667 = vmatpush1.msra.mxu0 0.0
  %4668 = vmatprep.mubr.f32.mxu0 0.0
  %4669 = vmatmul.mubr.f32.gmra.mrb[0].mxu0 %v4602
  %v4670 = vpop.f32.mrb[0].mxu0
  %v4671 = vadd.f32 %v4599, %v4670
  %v4672 = vpop.f32.mrb[0].mxu0
  %4673 = vdwg.mxu0
  %s4674 = scalar_lea.vmem %s11, 56
  %4675 = vst.msk [vmem:[%s4674] sm:$0xff] %vm1672, %v4671
  // Predicated region
  $region42: #{seq2seq_forward.1} parent=0 // pred_check
    _
  $region43: #{seq2seq_forward.1} parent=0 // pred_check_branch
    %4677 = sbr.rel (0) target = $region45
  $region44: #{seq2seq_forward.1} parent=0 // pred_region
    _
  $region45: #{seq2seq_forward.1} parent=0 // pred_fallthru
    _
  // Predicated region
  $region46: #{seq2seq_forward.1} parent=0 // pred_check
    _
  $region47: #{seq2seq_forward.1} parent=0 // pred_check_branch
    %4679 = sbr.rel (0) target = $region49
  $region48: #{seq2seq_forward.1} parent=0 // pred_region
    _
  $region49: #{seq2seq_forward.1} parent=0 // pred_fallthru
    _

</llo_original>
